<compile_context>
chip_gen: v7x
topology: tpu7x:2x2x1
jax: 0.10.0
libtpu: 0.0.40
codegen_flags: <defaults>
</compile_context>

<pallas_src>
import functools

import jax
import jax.numpy as jnp
import numpy as np
from jax import lax
from jax.experimental import pallas as pl
from jax.experimental.pallas import tpu as pltpu


def _bottleneck_kernel(x_ref, w1_ref, s1_ref, b1_ref, w2_ref, s2_ref, b2_ref,
                       w3_ref, s3_ref, b3_ref, out_ref, *, D, H, W, mid):
    DHW = D * H * W

    # ---- conv1 (1x1x1) + folded BN1 + ReLU --------------------------------
    # bf16 MXU operands, f32 accumulation / epilogue.
    y1 = jnp.dot(x_ref[0].astype(jnp.bfloat16), w1_ref[...],
                 preferred_element_type=jnp.float32)                # (DHW, mid)
    y1 = jnp.maximum(y1 * s1_ref[...] + b1_ref[...], 0.0)
    y1 = y1.astype(jnp.bfloat16)

    # ---- conv2 (3x3x3, grouped, stride=1, padding=1) -----------------------
    # Zero-pad via value concatenation (no scratch buffer / masked stores).
    y1_4d = y1.reshape(D, H, W, mid)
    zw = jnp.zeros((D, H, 1, mid), jnp.bfloat16)
    yp = jnp.concatenate([zw, y1_4d, zw], axis=2)                   # (D, H, W+2, mid)
    zh = jnp.zeros((D, 1, W + 2, mid), jnp.bfloat16)
    yp = jnp.concatenate([zh, yp, zh], axis=1)                      # (D, H+2, W+2, mid)
    zd = jnp.zeros((1, H + 2, W + 2, mid), jnp.bfloat16)
    yp = jnp.concatenate([zd, yp, zd], axis=0)                      # (D+2, H+2, W+2, mid)

    # im2col: 27 shifted taps concatenated on the channel (lane) axis, then a
    # single K = 27*mid matmul against the dense block-diagonal weights.
    taps = [yp[kd:kd + D, kh:kh + H, kw:kw + W, :]
            for kd in range(3) for kh in range(3) for kw in range(3)]
    col = jnp.concatenate(taps, axis=-1).reshape(DHW, 27 * mid)     # (DHW, 27*mid)
    y2 = jnp.dot(col, w2_ref[...], preferred_element_type=jnp.float32)
    y2 = jnp.maximum(y2 * s2_ref[...] + b2_ref[...], 0.0)           # (DHW, mid)

    # ---- conv3 (1x1x1) + folded BN3 + identity residual + ReLU -------------
    y3 = jnp.dot(y2.astype(jnp.bfloat16), w3_ref[...],
                 preferred_element_type=jnp.float32)                # (DHW, Cout)
    y3 = y3 * s3_ref[...] + b3_ref[...]
    # Re-read the residual from VMEM here instead of holding it live above.
    out_ref[0] = jnp.maximum(y3 + x_ref[0], 0.0).astype(out_ref.dtype)


def resnext_bottleneck_forward(x, params, *, cardinality):
    """x: (N, C_in, D, H, W) in PyTorch NCDHW layout (stride=1, downsample=None)."""
    N, C_in, D, H, W = x.shape
    w1, w2, w3 = params["w1"], params["w2"], params["w3"]
    mid = w1.shape[0]
    C_out = w3.shape[0]
    assert C_in == C_out, "downsample=None requires identity residual (C_in == C_out)"
    DHW = D * H * W
    eps = 1e-5

    def fold_bn(gamma, beta, mean, var):
        scale = gamma / jnp.sqrt(var + eps)
        bias = beta - mean * scale
        return (scale.reshape(1, -1).astype(jnp.float32),
                bias.reshape(1, -1).astype(jnp.float32))

    s1, b1 = fold_bn(*params["bn1"])
    s2, b2 = fold_bn(*params["bn2"])
    s3, b3 = fold_bn(*params["bn3"])

    # 1x1x1 conv weights as bf16 matmul operands (channels-last).
    w1t = jnp.transpose(w1.reshape(mid, C_in)).astype(jnp.bfloat16)      # (Cin, mid)
    w3t = jnp.transpose(w3.reshape(C_out, mid)).astype(jnp.bfloat16)     # (mid, Cout)

    # Dense block-diagonal im2col weights for the grouped 3x3x3 conv:
    #   w2flat[t*mid + ci, co] = w2[co, ci - group_base, kd, kh, kw], t = kd*9+kh*3+kw
    # TODO(synk): keep these grouped (not densified) for large cardinality.
    cpg = mid // cardinality     # input channels per group
    opg = mid // cardinality     # output channels per group
    w2_np = np.asarray(w2, dtype=np.float32)            # (mid, cpg, 3, 3, 3)
    w2d = np.zeros((27, mid, mid), dtype=np.float32)    # [t, ci, co]
    for co in range(mid):
        g = co // opg
        for k in range(cpg):
            ci = g * cpg + k
            w2d[:, ci, co] = w2_np[co, k].reshape(27)
    w2flat = jnp.asarray(w2d.reshape(27 * mid, mid), dtype=jnp.bfloat16)

    # NCDHW -> (N, DHW, C); kept f32 so the residual add stays exact.
    x_flat = jnp.transpose(x, (0, 2, 3, 4, 1)).reshape(N, DHW, C_in).astype(jnp.float32)

    kernel = functools.partial(_bottleneck_kernel, D=D, H=H, W=W, mid=mid)

    def full_spec(shape):
        return pl.BlockSpec(shape, lambda b, _n=len(shape): (0,) * _n)

    out_flat = pl.pallas_call(
        kernel,
        out_shape=jax.ShapeDtypeStruct((N, DHW, C_out), jnp.float32),
        grid_spec=pltpu.PrefetchScalarGridSpec(
            num_scalar_prefetch=0,
            grid=(N,),
            in_specs=[
                pl.BlockSpec((1, DHW, C_in), lambda b: (b, 0, 0)),
                full_spec((C_in, mid)),
                full_spec((1, mid)), full_spec((1, mid)),
                full_spec((27 * mid, mid)),
                full_spec((1, mid)), full_spec((1, mid)),
                full_spec((mid, C_out)),
                full_spec((1, C_out)), full_spec((1, C_out)),
            ],
            out_specs=pl.BlockSpec((1, DHW, C_out), lambda b: (b, 0, 0)),
        ),
        compiler_params=pltpu.CompilerParams(dimension_semantics=("parallel",)),
    )(x_flat, w1t, s1, b1, w2flat, s2, b2, w3t, s3, b3)

    # (N, DHW, C_out) -> NCDHW
    return out_flat.reshape(N, D, H, W, C_out).transpose(0, 4, 1, 2, 3)


def ref_forward(x, params, *, cardinality):
    """Pure-JAX reference (lax convs), NCDHW, inference-mode BN."""
    eps = 1e-5

    def bn(y, gamma, beta, mean, var):
        sh = (1, -1, 1, 1, 1)
        return ((y - mean.reshape(sh)) / jnp.sqrt(var.reshape(sh) + eps)
                * gamma.reshape(sh) + beta.reshape(sh))

    dn = ("NCDHW", "OIDHW", "NCDHW")
    y = lax.conv_general_dilated(x, params["w1"], (1, 1, 1), "VALID",
                                 dimension_numbers=dn,
                                 precision=lax.Precision.HIGHEST)
    y = jax.nn.relu(bn(y, *params["bn1"]))
    y = lax.conv_general_dilated(y, params["w2"], (1, 1, 1), [(1, 1)] * 3,
                                 dimension_numbers=dn,
                                 feature_group_count=cardinality,
                                 precision=lax.Precision.HIGHEST)
    y = jax.nn.relu(bn(y, *params["bn2"]))
    y = lax.conv_general_dilated(y, params["w3"], (1, 1, 1), "VALID",
                                 dimension_numbers=dn,
                                 precision=lax.Precision.HIGHEST)
    y = bn(y, *params["bn3"])
    return jax.nn.relu(y + x)


if __name__ == "__main__":
    # ResNeXtBottleneck(inplanes=128, planes=64, cardinality=4, stride=1, downsample=None)
    inplanes, planes, cardinality, expansion = 128, 64, 4, 2
    mid = cardinality * (planes // 32)        # 8
    out_planes = planes * expansion           # 128 == inplanes (identity residual)
    N, D, H, W = 2, 4, 8, 8
    cpg = mid // cardinality

    key = jax.random.PRNGKey(0)
    ks = jax.random.split(key, 8)

    def conv_init(k, shape):
        fan_in = int(np.prod(shape[1:]))
        return jax.random.normal(k, shape, jnp.float32) / np.sqrt(fan_in)

    def bn_init(k, c):
        k1, k2, k3, k4 = jax.random.split(k, 4)
        gamma = jax.random.uniform(k1, (c,), jnp.float32, 0.8, 1.2)
        beta = 0.1 * jax.random.normal(k2, (c,), jnp.float32)
        mean = 0.1 * jax.random.normal(k3, (c,), jnp.float32)
        var = jax.random.uniform(k4, (c,), jnp.float32, 0.8, 1.2)
        return (gamma, beta, mean, var)

    params = {
        "w1": conv_init(ks[0], (mid, inplanes, 1, 1, 1)),
        "w2": conv_init(ks[1], (mid, cpg, 3, 3, 3)),
        "w3": conv_init(ks[2], (out_planes, mid, 1, 1, 1)),
        "bn1": bn_init(ks[3], mid),
        "bn2": bn_init(ks[4], mid),
        "bn3": bn_init(ks[5], out_planes),
    }
    x = jax.random.normal(ks[6], (N, inplanes, D, H, W), jnp.float32)

    out = jax.block_until_ready(
        resnext_bottleneck_forward(x, params, cardinality=cardinality))
    ref = jax.block_until_ready(ref_forward(x, params, cardinality=cardinality))
    # bf16 MXU operands with f32 accumulation: expected abs error ~1e-2.
    np.testing.assert_allclose(np.asarray(out), np.asarray(ref), rtol=2e-2, atol=3e-2)
    print("KERNEL_OK")
</pallas_src>

<mosaic_0001>
module attributes {stable_mosaic.version = 11 : i64} {
  func.func @_bottleneck_kernel(%arg0: i32, %arg1: memref<1x256x128xf32, #tpu.memory_space<vmem>>, %arg2: memref<128x8xbf16, #tpu.memory_space<vmem>>, %arg3: memref<1x8xf32, #tpu.memory_space<vmem>>, %arg4: memref<1x8xf32, #tpu.memory_space<vmem>>, %arg5: memref<216x8xbf16, #tpu.memory_space<vmem>>, %arg6: memref<1x8xf32, #tpu.memory_space<vmem>>, %arg7: memref<1x8xf32, #tpu.memory_space<vmem>>, %arg8: memref<8x128xbf16, #tpu.memory_space<vmem>>, %arg9: memref<1x128xf32, #tpu.memory_space<vmem>>, %arg10: memref<1x128xf32, #tpu.memory_space<vmem>>, %arg11: memref<1x256x128xf32, #tpu.memory_space<vmem>>) attributes {dimension_semantics = [#tpu.dimension_semantics<parallel>], iteration_bounds = array<i64: 2>, scalar_prefetch = 0 : i64, scratch_operands = 0 : i64, tpu.core_type = #tpu.core_type<tc>, window_params = [{transform_indices = @transform_0, window_bounds = array<i64: 1, 256, 128>}, {pipeline_mode = #tpu.pipeline_mode<synchronous>, transform_indices = @transform_1, window_bounds = array<i64: 128, 8>}, {pipeline_mode = #tpu.pipeline_mode<synchronous>, transform_indices = @transform_2, window_bounds = array<i64: 1, 8>}, {pipeline_mode = #tpu.pipeline_mode<synchronous>, transform_indices = @transform_3, window_bounds = array<i64: 1, 8>}, {pipeline_mode = #tpu.pipeline_mode<synchronous>, transform_indices = @transform_4, window_bounds = array<i64: 216, 8>}, {pipeline_mode = #tpu.pipeline_mode<synchronous>, transform_indices = @transform_5, window_bounds = array<i64: 1, 8>}, {pipeline_mode = #tpu.pipeline_mode<synchronous>, transform_indices = @transform_6, window_bounds = array<i64: 1, 8>}, {pipeline_mode = #tpu.pipeline_mode<synchronous>, transform_indices = @transform_7, window_bounds = array<i64: 8, 128>}, {pipeline_mode = #tpu.pipeline_mode<synchronous>, transform_indices = @transform_8, window_bounds = array<i64: 1, 128>}, {pipeline_mode = #tpu.pipeline_mode<synchronous>, transform_indices = @transform_9, window_bounds = array<i64: 1, 128>}, {transform_indices = @transform_10, window_bounds = array<i64: 1, 256, 128>}]} {
    %c0 = arith.constant 0 : index
    %c0_0 = arith.constant 0 : index
    %c0_1 = arith.constant 0 : index
    %0 = vector.load %arg1[%c0, %c0_0, %c0_1] : memref<1x256x128xf32, #tpu.memory_space<vmem>>, vector<1x256x128xf32>
    %1 = vector.shape_cast %0 : vector<1x256x128xf32> to vector<256x128xf32>
    %2 = arith.truncf %1 : vector<256x128xf32> to vector<256x128xbf16>
    %c0_2 = arith.constant 0 : index
    %c0_3 = arith.constant 0 : index
    %3 = vector.load %arg2[%c0_2, %c0_3] : memref<128x8xbf16, #tpu.memory_space<vmem>>, vector<128x8xbf16>
    %cst = arith.constant dense<0.000000e+00> : vector<256x8xf32>
    %4 = tpu.matmul %2, %3, %cst {dimension_numbers = #tpu.dot_dimension_numbers<[1], [0], [0], [1], [0, 0, 1, 1], [], []>} : vector<256x128xbf16>, vector<128x8xbf16>, vector<256x8xf32> -> vector<256x8xf32>
    %c0_4 = arith.constant 0 : index
    %c0_5 = arith.constant 0 : index
    %5 = vector.load %arg3[%c0_4, %c0_5] : memref<1x8xf32, #tpu.memory_space<vmem>>, vector<1x8xf32>
    %6 = vector.broadcast %5 : vector<1x8xf32> to vector<256x8xf32>
    %7 = arith.mulf %4, %6 : vector<256x8xf32>
    %c0_6 = arith.constant 0 : index
    %c0_7 = arith.constant 0 : index
    %8 = vector.load %arg4[%c0_6, %c0_7] : memref<1x8xf32, #tpu.memory_space<vmem>>, vector<1x8xf32>
    %9 = vector.broadcast %8 : vector<1x8xf32> to vector<256x8xf32>
    %10 = arith.addf %7, %9 : vector<256x8xf32>
    %cst_8 = arith.constant 0.000000e+00 : f32
    %11 = vector.broadcast %cst_8 : f32 to vector<256x8xf32>
    %12 = arith.maximumf %10, %11 : vector<256x8xf32>
    %13 = arith.truncf %12 : vector<256x8xf32> to vector<256x8xbf16>
    %14 = vector.shape_cast %13 : vector<256x8xbf16> to vector<4x8x8x8xbf16>
    %cst_9 = arith.constant 0.000000e+00 : bf16
    %15 = vector.broadcast %cst_9 : bf16 to vector<4x8x1x8xbf16>
    %16 = tpu.concatenate %15, %14, %15 in 2 : vector<4x8x1x8xbf16>, vector<4x8x8x8xbf16>, vector<4x8x1x8xbf16> -> vector<4x8x10x8xbf16>
    %cst_10 = arith.constant 0.000000e+00 : bf16
    %17 = vector.broadcast %cst_10 : bf16 to vector<4x1x10x8xbf16>
    %18 = tpu.concatenate %17, %16, %17 in 1 : vector<4x1x10x8xbf16>, vector<4x8x10x8xbf16>, vector<4x1x10x8xbf16> -> vector<4x10x10x8xbf16>
    %cst_11 = arith.constant 0.000000e+00 : bf16
    %19 = vector.broadcast %cst_11 : bf16 to vector<1x10x10x8xbf16>
    %20 = tpu.concatenate %19, %18, %19 in 0 : vector<1x10x10x8xbf16>, vector<4x10x10x8xbf16>, vector<1x10x10x8xbf16> -> vector<6x10x10x8xbf16>
    %21 = vector.extract_strided_slice %20 {offsets = [0, 0, 0, 0], sizes = [4, 8, 8, 8], strides = [1, 1, 1, 1]} : vector<6x10x10x8xbf16> to vector<4x8x8x8xbf16>
    %22 = vector.extract_strided_slice %20 {offsets = [0, 0, 1, 0], sizes = [4, 8, 8, 8], strides = [1, 1, 1, 1]} : vector<6x10x10x8xbf16> to vector<4x8x8x8xbf16>
    %23 = vector.extract_strided_slice %20 {offsets = [0, 0, 2, 0], sizes = [4, 8, 8, 8], strides = [1, 1, 1, 1]} : vector<6x10x10x8xbf16> to vector<4x8x8x8xbf16>
    %24 = vector.extract_strided_slice %20 {offsets = [0, 1, 0, 0], sizes = [4, 8, 8, 8], strides = [1, 1, 1, 1]} : vector<6x10x10x8xbf16> to vector<4x8x8x8xbf16>
    %25 = vector.extract_strided_slice %20 {offsets = [0, 1, 1, 0], sizes = [4, 8, 8, 8], strides = [1, 1, 1, 1]} : vector<6x10x10x8xbf16> to vector<4x8x8x8xbf16>
    %26 = vector.extract_strided_slice %20 {offsets = [0, 1, 2, 0], sizes = [4, 8, 8, 8], strides = [1, 1, 1, 1]} : vector<6x10x10x8xbf16> to vector<4x8x8x8xbf16>
    %27 = vector.extract_strided_slice %20 {offsets = [0, 2, 0, 0], sizes = [4, 8, 8, 8], strides = [1, 1, 1, 1]} : vector<6x10x10x8xbf16> to vector<4x8x8x8xbf16>
    %28 = vector.extract_strided_slice %20 {offsets = [0, 2, 1, 0], sizes = [4, 8, 8, 8], strides = [1, 1, 1, 1]} : vector<6x10x10x8xbf16> to vector<4x8x8x8xbf16>
    %29 = vector.extract_strided_slice %20 {offsets = [0, 2, 2, 0], sizes = [4, 8, 8, 8], strides = [1, 1, 1, 1]} : vector<6x10x10x8xbf16> to vector<4x8x8x8xbf16>
    %30 = vector.extract_strided_slice %20 {offsets = [1, 0, 0, 0], sizes = [4, 8, 8, 8], strides = [1, 1, 1, 1]} : vector<6x10x10x8xbf16> to vector<4x8x8x8xbf16>
    %31 = vector.extract_strided_slice %20 {offsets = [1, 0, 1, 0], sizes = [4, 8, 8, 8], strides = [1, 1, 1, 1]} : vector<6x10x10x8xbf16> to vector<4x8x8x8xbf16>
    %32 = vector.extract_strided_slice %20 {offsets = [1, 0, 2, 0], sizes = [4, 8, 8, 8], strides = [1, 1, 1, 1]} : vector<6x10x10x8xbf16> to vector<4x8x8x8xbf16>
    %33 = vector.extract_strided_slice %20 {offsets = [1, 1, 0, 0], sizes = [4, 8, 8, 8], strides = [1, 1, 1, 1]} : vector<6x10x10x8xbf16> to vector<4x8x8x8xbf16>
    %34 = vector.extract_strided_slice %20 {offsets = [1, 1, 1, 0], sizes = [4, 8, 8, 8], strides = [1, 1, 1, 1]} : vector<6x10x10x8xbf16> to vector<4x8x8x8xbf16>
    %35 = vector.extract_strided_slice %20 {offsets = [1, 1, 2, 0], sizes = [4, 8, 8, 8], strides = [1, 1, 1, 1]} : vector<6x10x10x8xbf16> to vector<4x8x8x8xbf16>
    %36 = vector.extract_strided_slice %20 {offsets = [1, 2, 0, 0], sizes = [4, 8, 8, 8], strides = [1, 1, 1, 1]} : vector<6x10x10x8xbf16> to vector<4x8x8x8xbf16>
    %37 = vector.extract_strided_slice %20 {offsets = [1, 2, 1, 0], sizes = [4, 8, 8, 8], strides = [1, 1, 1, 1]} : vector<6x10x10x8xbf16> to vector<4x8x8x8xbf16>
    %38 = vector.extract_strided_slice %20 {offsets = [1, 2, 2, 0], sizes = [4, 8, 8, 8], strides = [1, 1, 1, 1]} : vector<6x10x10x8xbf16> to vector<4x8x8x8xbf16>
    %39 = vector.extract_strided_slice %20 {offsets = [2, 0, 0, 0], sizes = [4, 8, 8, 8], strides = [1, 1, 1, 1]} : vector<6x10x10x8xbf16> to vector<4x8x8x8xbf16>
    %40 = vector.extract_strided_slice %20 {offsets = [2, 0, 1, 0], sizes = [4, 8, 8, 8], strides = [1, 1, 1, 1]} : vector<6x10x10x8xbf16> to vector<4x8x8x8xbf16>
    %41 = vector.extract_strided_slice %20 {offsets = [2, 0, 2, 0], sizes = [4, 8, 8, 8], strides = [1, 1, 1, 1]} : vector<6x10x10x8xbf16> to vector<4x8x8x8xbf16>
    %42 = vector.extract_strided_slice %20 {offsets = [2, 1, 0, 0], sizes = [4, 8, 8, 8], strides = [1, 1, 1, 1]} : vector<6x10x10x8xbf16> to vector<4x8x8x8xbf16>
    %43 = vector.extract_strided_slice %20 {offsets = [2, 1, 1, 0], sizes = [4, 8, 8, 8], strides = [1, 1, 1, 1]} : vector<6x10x10x8xbf16> to vector<4x8x8x8xbf16>
    %44 = vector.extract_strided_slice %20 {offsets = [2, 1, 2, 0], sizes = [4, 8, 8, 8], strides = [1, 1, 1, 1]} : vector<6x10x10x8xbf16> to vector<4x8x8x8xbf16>
    %45 = vector.extract_strided_slice %20 {offsets = [2, 2, 0, 0], sizes = [4, 8, 8, 8], strides = [1, 1, 1, 1]} : vector<6x10x10x8xbf16> to vector<4x8x8x8xbf16>
    %46 = vector.extract_strided_slice %20 {offsets = [2, 2, 1, 0], sizes = [4, 8, 8, 8], strides = [1, 1, 1, 1]} : vector<6x10x10x8xbf16> to vector<4x8x8x8xbf16>
    %47 = vector.extract_strided_slice %20 {offsets = [2, 2, 2, 0], sizes = [4, 8, 8, 8], strides = [1, 1, 1, 1]} : vector<6x10x10x8xbf16> to vector<4x8x8x8xbf16>
    %48 = tpu.concatenate %21, %22, %23, %24, %25, %26, %27, %28, %29, %30, %31, %32, %33, %34, %35, %36 in 3 : vector<4x8x8x8xbf16>, vector<4x8x8x8xbf16>, vector<4x8x8x8xbf16>, vector<4x8x8x8xbf16>, vector<4x8x8x8xbf16>, vector<4x8x8x8xbf16>, vector<4x8x8x8xbf16>, vector<4x8x8x8xbf16>, vector<4x8x8x8xbf16>, vector<4x8x8x8xbf16>, vector<4x8x8x8xbf16>, vector<4x8x8x8xbf16>, vector<4x8x8x8xbf16>, vector<4x8x8x8xbf16>, vector<4x8x8x8xbf16>, vector<4x8x8x8xbf16> -> vector<4x8x8x128xbf16>
    %49 = tpu.concatenate %37, %38, %39, %40, %41, %42, %43, %44, %45, %46, %47 in 3 : vector<4x8x8x8xbf16>, vector<4x8x8x8xbf16>, vector<4x8x8x8xbf16>, vector<4x8x8x8xbf16>, vector<4x8x8x8xbf16>, vector<4x8x8x8xbf16>, vector<4x8x8x8xbf16>, vector<4x8x8x8xbf16>, vector<4x8x8x8xbf16>, vector<4x8x8x8xbf16>, vector<4x8x8x8xbf16> -> vector<4x8x8x88xbf16>
    %50 = tpu.concatenate %48, %49 in 3 : vector<4x8x8x128xbf16>, vector<4x8x8x88xbf16> -> vector<4x8x8x216xbf16>
    %51 = vector.shape_cast %50 : vector<4x8x8x216xbf16> to vector<256x216xbf16>
    %c0_12 = arith.constant 0 : index
    %c0_13 = arith.constant 0 : index
    %52 = vector.load %arg5[%c0_12, %c0_13] : memref<216x8xbf16, #tpu.memory_space<vmem>>, vector<216x8xbf16>
    %cst_14 = arith.constant dense<0.000000e+00> : vector<256x8xf32>
    %53 = tpu.matmul %51, %52, %cst_14 {dimension_numbers = #tpu.dot_dimension_numbers<[1], [0], [0], [1], [0, 0, 1, 1], [], []>} : vector<256x216xbf16>, vector<216x8xbf16>, vector<256x8xf32> -> vector<256x8xf32>
    %c0_15 = arith.constant 0 : index
    %c0_16 = arith.constant 0 : index
    %54 = vector.load %arg6[%c0_15, %c0_16] : memref<1x8xf32, #tpu.memory_space<vmem>>, vector<1x8xf32>
    %55 = vector.broadcast %54 : vector<1x8xf32> to vector<256x8xf32>
    %56 = arith.mulf %53, %55 : vector<256x8xf32>
    %c0_17 = arith.constant 0 : index
    %c0_18 = arith.constant 0 : index
    %57 = vector.load %arg7[%c0_17, %c0_18] : memref<1x8xf32, #tpu.memory_space<vmem>>, vector<1x8xf32>
    %58 = vector.broadcast %57 : vector<1x8xf32> to vector<256x8xf32>
    %59 = arith.addf %56, %58 : vector<256x8xf32>
    %cst_19 = arith.constant 0.000000e+00 : f32
    %60 = vector.broadcast %cst_19 : f32 to vector<256x8xf32>
    %61 = arith.maximumf %59, %60 : vector<256x8xf32>
    %62 = arith.truncf %61 : vector<256x8xf32> to vector<256x8xbf16>
    %c0_20 = arith.constant 0 : index
    %c0_21 = arith.constant 0 : index
    %63 = vector.load %arg8[%c0_20, %c0_21] : memref<8x128xbf16, #tpu.memory_space<vmem>>, vector<8x128xbf16>
    %cst_22 = arith.constant dense<0.000000e+00> : vector<256x128xf32>
    %64 = tpu.matmul %62, %63, %cst_22 {dimension_numbers = #tpu.dot_dimension_numbers<[1], [0], [0], [1], [0, 0, 1, 1], [], []>} : vector<256x8xbf16>, vector<8x128xbf16>, vector<256x128xf32> -> vector<256x128xf32>
    %c0_23 = arith.constant 0 : index
    %c0_24 = arith.constant 0 : index
    %65 = vector.load %arg9[%c0_23, %c0_24] : memref<1x128xf32, #tpu.memory_space<vmem>>, vector<1x128xf32>
    %66 = vector.broadcast %65 : vector<1x128xf32> to vector<256x128xf32>
    %67 = arith.mulf %64, %66 : vector<256x128xf32>
    %c0_25 = arith.constant 0 : index
    %c0_26 = arith.constant 0 : index
    %68 = vector.load %arg10[%c0_25, %c0_26] : memref<1x128xf32, #tpu.memory_space<vmem>>, vector<1x128xf32>
    %69 = vector.broadcast %68 : vector<1x128xf32> to vector<256x128xf32>
    %70 = arith.addf %67, %69 : vector<256x128xf32>
    %c0_27 = arith.constant 0 : index
    %c0_28 = arith.constant 0 : index
    %c0_29 = arith.constant 0 : index
    %71 = vector.load %arg1[%c0_27, %c0_28, %c0_29] : memref<1x256x128xf32, #tpu.memory_space<vmem>>, vector<1x256x128xf32>
    %72 = vector.shape_cast %71 : vector<1x256x128xf32> to vector<256x128xf32>
    %73 = arith.addf %70, %72 : vector<256x128xf32>
    %cst_30 = arith.constant 0.000000e+00 : f32
    %74 = vector.broadcast %cst_30 : f32 to vector<256x128xf32>
    %75 = arith.maximumf %73, %74 : vector<256x128xf32>
    %c0_31 = arith.constant 0 : index
    %c0_32 = arith.constant 0 : index
    %c0_33 = arith.constant 0 : index
    %76 = vector.load %arg11[%c0_31, %c0_32, %c0_33] : memref<1x256x128xf32, #tpu.memory_space<vmem>>, vector<1x256x128xf32>
    %77 = vector.shape_cast %76 : vector<1x256x128xf32> to vector<256x128xf32>
    %78 = vector.shape_cast %75 : vector<256x128xf32> to vector<1x256x128xf32>
    tpu.vector_store %arg11[%c0_31, %c0_32, %c0_33], %78 {strides = array<i32>} : memref<1x256x128xf32, #tpu.memory_space<vmem>>, vector<1x256x128xf32>,
    return
  }
  func.func @transform_0(%arg0: i32) -> (i32, i32, i32) {
    %c0_i32 = arith.constant 0 : i32
    %c0_i32_0 = arith.constant 0 : i32
    %c0_i32_1 = arith.constant 0 : i32
    return %arg0, %c0_i32, %c0_i32_0 : i32, i32, i32
  }
  func.func @transform_1(%arg0: i32) -> (i32, i32) {
    %c0_i32 = arith.constant 0 : i32
    %c0_i32_0 = arith.constant 0 : i32
    %c0_i32_1 = arith.constant 0 : i32
    return %c0_i32, %c0_i32_0 : i32, i32
  }
  func.func @transform_2(%arg0: i32) -> (i32, i32) {
    %c0_i32 = arith.constant 0 : i32
    %c0_i32_0 = arith.constant 0 : i32
    %c0_i32_1 = arith.constant 0 : i32
    return %c0_i32, %c0_i32_0 : i32, i32
  }
  func.func @transform_3(%arg0: i32) -> (i32, i32) {
    %c0_i32 = arith.constant 0 : i32
    %c0_i32_0 = arith.constant 0 : i32
    %c0_i32_1 = arith.constant 0 : i32
    return %c0_i32, %c0_i32_0 : i32, i32
  }
  func.func @transform_4(%arg0: i32) -> (i32, i32) {
    %c0_i32 = arith.constant 0 : i32
    %c0_i32_0 = arith.constant 0 : i32
    %c0_i32_1 = arith.constant 0 : i32
    return %c0_i32, %c0_i32_0 : i32, i32
  }
  func.func @transform_5(%arg0: i32) -> (i32, i32) {
    %c0_i32 = arith.constant 0 : i32
    %c0_i32_0 = arith.constant 0 : i32
    %c0_i32_1 = arith.constant 0 : i32
    return %c0_i32, %c0_i32_0 : i32, i32
  }
  func.func @transform_6(%arg0: i32) -> (i32, i32) {
    %c0_i32 = arith.constant 0 : i32
    %c0_i32_0 = arith.constant 0 : i32
    %c0_i32_1 = arith.constant 0 : i32
    return %c0_i32, %c0_i32_0 : i32, i32
  }
  func.func @transform_7(%arg0: i32) -> (i32, i32) {
    %c0_i32 = arith.constant 0 : i32
    %c0_i32_0 = arith.constant 0 : i32
    %c0_i32_1 = arith.constant 0 : i32
    return %c0_i32, %c0_i32_0 : i32, i32
  }
  func.func @transform_8(%arg0: i32) -> (i32, i32) {
    %c0_i32 = arith.constant 0 : i32
    %c0_i32_0 = arith.constant 0 : i32
    %c0_i32_1 = arith.constant 0 : i32
    return %c0_i32, %c0_i32_0 : i32, i32
  }
  func.func @transform_9(%arg0: i32) -> (i32, i32) {
    %c0_i32 = arith.constant 0 : i32
    %c0_i32_0 = arith.constant 0 : i32
    %c0_i32_1 = arith.constant 0 : i32
    return %c0_i32, %c0_i32_0 : i32, i32
  }
  func.func @transform_10(%arg0: i32) -> (i32, i32, i32) {
    %c0_i32 = arith.constant 0 : i32
    %c0_i32_0 = arith.constant 0 : i32
    %c0_i32_1 = arith.constant 0 : i32
    return %arg0, %c0_i32, %c0_i32_0 : i32, i32, i32
  }
}

</mosaic_0001>

<llo_original>
// kernel: tpu_custom_call.1
$region0: #{tpu_custom_call.1}
  #allocation0 [shape = 'u32[]', space=smem, size = 0x4, offset = 0x4, fixed_abs, tag = 'smem constant byte address 0x4 - core index']
  #allocation1 [shape = 'u32[144,128]{1,0:T(1,128)}', space=vmem, size = 0x12000, scoped, tag = 'internal scratch']
  %s0 = inlined_call_operand.hbm [shape: f32[2,256,128], index: 0, kind: input, shape index: {}]
  %s1 = inlined_call_operand.vmem [shape: bf16[128,8], index: 1, kind: input, shape index: {}]
  %s2 = inlined_call_operand.vmem [shape: f32[1,8], index: 2, kind: input, shape index: {}]
  %s3 = inlined_call_operand.vmem [shape: f32[1,8], index: 3, kind: input, shape index: {}]
  %s4 = inlined_call_operand.vmem [shape: bf16[216,8], index: 4, kind: input, shape index: {}]
  %s5 = inlined_call_operand.vmem [shape: f32[1,8], index: 5, kind: input, shape index: {}]
  %s6 = inlined_call_operand.vmem [shape: f32[1,8], index: 6, kind: input, shape index: {}]
  %s7 = inlined_call_operand.vmem [shape: bf16[8,128], index: 7, kind: input, shape index: {}]
  %s8 = inlined_call_operand.vmem [shape: f32[1,128], index: 8, kind: input, shape index: {}]
  %s9 = inlined_call_operand.vmem [shape: f32[1,128], index: 9, kind: input, shape index: {}]
  %s10 = inlined_call_operand.hbm [shape: f32[2,256,128], index: 10, kind: output, shape index: {}]
  %s11 = sld [smem:[#allocation0]]
  $region77: #{tpu_custom_call.1} parent=0
    _
  %s13 = ssub.s32 1, %s11
  %s14 = scalar_select 0, %s13, %s11
  $region1: #{tpu_custom_call.1} parent=0
    #allocation2 [shape = 'u8[262144]{0}', space=vmem, size = 0x40000, scoped, tag = 'input window, operand 0']
    #allocation3 [shape = 's32[2]{0}', space=sflag, size = 0x8, scoped, tag = 'scoped memory for tpu_custom_call.1']
    #allocation4 [shape = 's32[2]{0}', space=sflag, size = 0x8, scoped, tag = 'scoped memory for tpu_custom_call.1']
    #allocation5 [shape = 'u8[262144]{0}', space=vmem, size = 0x40000, scoped, tag = 'output window, operand 0']
    %15 = vsyncpa [#allocation3], 0
    %s16 = scalar_lea.sflag [#allocation3], 1
    %17 = vsyncpa %s16, 0
    %18 = vsyncpa [#allocation4], 0
    %s19 = scalar_lea.sflag [#allocation4], 1
    %20 = vsyncpa %s19, 0
    loop: start=0, step=1, limit=4
    $region2: #{tpu_custom_call.1} parent=1 // loop_pre_header
      _
    $region3: #{tpu_custom_call.1} parent=1 // loop_header
      %s22 = sphi 0, %s26
      %p23 = scmp.ge.s32.totalorder %s22, 4
      %s32 = sphi 0, %s34
      %s35 = sphi 0, %s32
      %s36 = sphi 0, %s35
      %s52 = sphi 0, %s36
      %s56 = sphi 0, %s56
      %s58 = sphi 0, %s56
      %s59 = sphi 0, %s58
      %s73 = sphi 0, %s59
      %s77 = sphi 0, %s77
      %s79 = sphi 0, %s77
      %s80 = sphi 0, %s79
      %s94 = sphi 0, %s80
      %s98 = sphi 0, %s98
      %s100 = sphi 0, %s98
      %s101 = sphi 0, %s100
      %s115 = sphi 0, %s101
      %s119 = sphi 0, %s119
      %s121 = sphi 0, %s119
      %s122 = sphi 0, %s121
      %s136 = sphi 0, %s122
      %s140 = sphi 0, %s140
      %s142 = sphi 0, %s140
      %s143 = sphi 0, %s142
      %s157 = sphi 0, %s143
      %s161 = sphi 0, %s161
      %s163 = sphi 0, %s161
      %s164 = sphi 0, %s163
      %s178 = sphi 0, %s164
      %s182 = sphi 0, %s182
      %s184 = sphi 0, %s182
      %s185 = sphi 0, %s184
      %s199 = sphi 0, %s185
      %s203 = sphi 0, %s203
      %s205 = sphi 0, %s203
      %s206 = sphi 0, %s205
      %s220 = sphi 0, %s206
      %s224 = sphi 0, %s224
      %s226 = sphi 0, %s224
      %s227 = sphi 0, %s226
      %s241 = sphi 0, %s227
      %s247 = sphi 0, %s249
      %s250 = sphi 0, %s247
      %s251 = sphi 0, %s250
      %s267 = sphi 0, %s251
    $region4: #{tpu_custom_call.1} parent=1 // loop_header_branch
      %25 = sbr.rel (%p23) target = $region8
    $region5: #{tpu_custom_call.1} parent=1 // loop_body
      %s27 = ssub.s32 %s22, 1
      %s28 = ssub.s32 %s22, 2
      %s29 = sadd.s32 %s22, 1
      %s30 = ssub.s32 %s22, %s29
      %p31 = scmp.eq.s32.totalorder %s30, 0
      %s33 = sadd.s32 %s32, 1
      %s34 = scalar_select %p31, %s32, %s33
      %p37 = pneg %p31
      %p38 = scmp.eq.s32.totalorder %s22, 1
      %p39 = por %p37, %p38
      %p40 = scmp.ne.s32.totalorder %s32, %s35
      %p41 = scmp.eq.s32.totalorder %s22, 0
      %p42 = por %p40, %p41
      %p43 = scmp.ne.s32.totalorder %s32, %s35
      %p44 = scmp.eq.s32.totalorder %s27, 1
      %p45 = por %p43, %p44
      %p46 = scmp.ne.s32.totalorder %s35, %s36
      %p47 = scmp.eq.s32.totalorder %s27, 0
      %p48 = por %p46, %p47
      %p49 = scmp.ne.s32.totalorder %s35, %s36
      %p50 = scmp.eq.s32.totalorder %s28, 1
      %p51 = por %p49, %p50
      %p53 = scmp.ne.s32.totalorder %s36, %s52
      %p54 = scmp.eq.s32.totalorder %s28, 0
      %p55 = por %p53, %p54
      %s57 = sadd.s32 %s56, 1
      %p60 = scmp.eq.s32.totalorder %s22, 1
      %p61 = scmp.ne.s32.totalorder %s56, %s58
      %p62 = scmp.eq.s32.totalorder %s22, 0
      %p63 = por %p61, %p62
      %p64 = scmp.ne.s32.totalorder %s56, %s58
      %p65 = scmp.eq.s32.totalorder %s27, 1
      %p66 = por %p64, %p65
      %p67 = scmp.ne.s32.totalorder %s58, %s59
      %p68 = scmp.eq.s32.totalorder %s27, 0
      %p69 = por %p67, %p68
      %p70 = scmp.ne.s32.totalorder %s58, %s59
      %p71 = scmp.eq.s32.totalorder %s28, 1
      %p72 = por %p70, %p71
      %p74 = scmp.ne.s32.totalorder %s59, %s73
      %p75 = scmp.eq.s32.totalorder %s28, 0
      %p76 = por %p74, %p75
      %s78 = sadd.s32 %s77, 1
      %p81 = scmp.eq.s32.totalorder %s22, 1
      %p82 = scmp.ne.s32.totalorder %s77, %s79
      %p83 = scmp.eq.s32.totalorder %s22, 0
      %p84 = por %p82, %p83
      %p85 = scmp.ne.s32.totalorder %s77, %s79
      %p86 = scmp.eq.s32.totalorder %s27, 1
      %p87 = por %p85, %p86
      %p88 = scmp.ne.s32.totalorder %s79, %s80
      %p89 = scmp.eq.s32.totalorder %s27, 0
      %p90 = por %p88, %p89
      %p91 = scmp.ne.s32.totalorder %s79, %s80
      %p92 = scmp.eq.s32.totalorder %s28, 1
      %p93 = por %p91, %p92
      %p95 = scmp.ne.s32.totalorder %s80, %s94
      %p96 = scmp.eq.s32.totalorder %s28, 0
      %p97 = por %p95, %p96
      %s99 = sadd.s32 %s98, 1
      %p102 = scmp.eq.s32.totalorder %s22, 1
      %p103 = scmp.ne.s32.totalorder %s98, %s100
      %p104 = scmp.eq.s32.totalorder %s22, 0
      %p105 = por %p103, %p104
      %p106 = scmp.ne.s32.totalorder %s98, %s100
      %p107 = scmp.eq.s32.totalorder %s27, 1
      %p108 = por %p106, %p107
      %p109 = scmp.ne.s32.totalorder %s100, %s101
      %p110 = scmp.eq.s32.totalorder %s27, 0
      %p111 = por %p109, %p110
      %p112 = scmp.ne.s32.totalorder %s100, %s101
      %p113 = scmp.eq.s32.totalorder %s28, 1
      %p114 = por %p112, %p113
      %p116 = scmp.ne.s32.totalorder %s101, %s115
      %p117 = scmp.eq.s32.totalorder %s28, 0
      %p118 = por %p116, %p117
      %s120 = sadd.s32 %s119, 1
      %p123 = scmp.eq.s32.totalorder %s22, 1
      %p124 = scmp.ne.s32.totalorder %s119, %s121
      %p125 = scmp.eq.s32.totalorder %s22, 0
      %p126 = por %p124, %p125
      %p127 = scmp.ne.s32.totalorder %s119, %s121
      %p128 = scmp.eq.s32.totalorder %s27, 1
      %p129 = por %p127, %p128
      %p130 = scmp.ne.s32.totalorder %s121, %s122
      %p131 = scmp.eq.s32.totalorder %s27, 0
      %p132 = por %p130, %p131
      %p133 = scmp.ne.s32.totalorder %s121, %s122
      %p134 = scmp.eq.s32.totalorder %s28, 1
      %p135 = por %p133, %p134
      %p137 = scmp.ne.s32.totalorder %s122, %s136
      %p138 = scmp.eq.s32.totalorder %s28, 0
      %p139 = por %p137, %p138
      %s141 = sadd.s32 %s140, 1
      %p144 = scmp.eq.s32.totalorder %s22, 1
      %p145 = scmp.ne.s32.totalorder %s140, %s142
      %p146 = scmp.eq.s32.totalorder %s22, 0
      %p147 = por %p145, %p146
      %p148 = scmp.ne.s32.totalorder %s140, %s142
      %p149 = scmp.eq.s32.totalorder %s27, 1
      %p150 = por %p148, %p149
      %p151 = scmp.ne.s32.totalorder %s142, %s143
      %p152 = scmp.eq.s32.totalorder %s27, 0
      %p153 = por %p151, %p152
      %p154 = scmp.ne.s32.totalorder %s142, %s143
      %p155 = scmp.eq.s32.totalorder %s28, 1
      %p156 = por %p154, %p155
      %p158 = scmp.ne.s32.totalorder %s143, %s157
      %p159 = scmp.eq.s32.totalorder %s28, 0
      %p160 = por %p158, %p159
      %s162 = sadd.s32 %s161, 1
      %p165 = scmp.eq.s32.totalorder %s22, 1
      %p166 = scmp.ne.s32.totalorder %s161, %s163
      %p167 = scmp.eq.s32.totalorder %s22, 0
      %p168 = por %p166, %p167
      %p169 = scmp.ne.s32.totalorder %s161, %s163
      %p170 = scmp.eq.s32.totalorder %s27, 1
      %p171 = por %p169, %p170
      %p172 = scmp.ne.s32.totalorder %s163, %s164
      %p173 = scmp.eq.s32.totalorder %s27, 0
      %p174 = por %p172, %p173
      %p175 = scmp.ne.s32.totalorder %s163, %s164
      %p176 = scmp.eq.s32.totalorder %s28, 1
      %p177 = por %p175, %p176
      %p179 = scmp.ne.s32.totalorder %s164, %s178
      %p180 = scmp.eq.s32.totalorder %s28, 0
      %p181 = por %p179, %p180
      %s183 = sadd.s32 %s182, 1
      %p186 = scmp.eq.s32.totalorder %s22, 1
      %p187 = scmp.ne.s32.totalorder %s182, %s184
      %p188 = scmp.eq.s32.totalorder %s22, 0
      %p189 = por %p187, %p188
      %p190 = scmp.ne.s32.totalorder %s182, %s184
      %p191 = scmp.eq.s32.totalorder %s27, 1
      %p192 = por %p190, %p191
      %p193 = scmp.ne.s32.totalorder %s184, %s185
      %p194 = scmp.eq.s32.totalorder %s27, 0
      %p195 = por %p193, %p194
      %p196 = scmp.ne.s32.totalorder %s184, %s185
      %p197 = scmp.eq.s32.totalorder %s28, 1
      %p198 = por %p196, %p197
      %p200 = scmp.ne.s32.totalorder %s185, %s199
      %p201 = scmp.eq.s32.totalorder %s28, 0
      %p202 = por %p200, %p201
      %s204 = sadd.s32 %s203, 1
      %p207 = scmp.eq.s32.totalorder %s22, 1
      %p208 = scmp.ne.s32.totalorder %s203, %s205
      %p209 = scmp.eq.s32.totalorder %s22, 0
      %p210 = por %p208, %p209
      %p211 = scmp.ne.s32.totalorder %s203, %s205
      %p212 = scmp.eq.s32.totalorder %s27, 1
      %p213 = por %p211, %p212
      %p214 = scmp.ne.s32.totalorder %s205, %s206
      %p215 = scmp.eq.s32.totalorder %s27, 0
      %p216 = por %p214, %p215
      %p217 = scmp.ne.s32.totalorder %s205, %s206
      %p218 = scmp.eq.s32.totalorder %s28, 1
      %p219 = por %p217, %p218
      %p221 = scmp.ne.s32.totalorder %s206, %s220
      %p222 = scmp.eq.s32.totalorder %s28, 0
      %p223 = por %p221, %p222
      %s225 = sadd.s32 %s224, 1
      %p228 = scmp.eq.s32.totalorder %s22, 1
      %p229 = scmp.ne.s32.totalorder %s224, %s226
      %p230 = scmp.eq.s32.totalorder %s22, 0
      %p231 = por %p229, %p230
      %p232 = scmp.ne.s32.totalorder %s224, %s226
      %p233 = scmp.eq.s32.totalorder %s27, 1
      %p234 = por %p232, %p233
      %p235 = scmp.ne.s32.totalorder %s226, %s227
      %p236 = scmp.eq.s32.totalorder %s27, 0
      %p237 = por %p235, %p236
      %p238 = scmp.ne.s32.totalorder %s226, %s227
      %p239 = scmp.eq.s32.totalorder %s28, 1
      %p240 = por %p238, %p239
      %p242 = scmp.ne.s32.totalorder %s227, %s241
      %p243 = scmp.eq.s32.totalorder %s28, 0
      %p244 = por %p242, %p243
      %s245 = ssub.s32 %s22, %s29
      %p246 = scmp.eq.s32.totalorder %s245, 0
      %s248 = sadd.s32 %s247, 1
      %s249 = scalar_select %p246, %s247, %s248
      %p252 = pneg %p246
      %p253 = scmp.eq.s32.totalorder %s22, 1
      %p254 = por %p252, %p253
      %p255 = scmp.ne.s32.totalorder %s247, %s250
      %p256 = scmp.eq.s32.totalorder %s22, 0
      %p257 = por %p255, %p256
      %p258 = scmp.ne.s32.totalorder %s247, %s250
      %p259 = scmp.eq.s32.totalorder %s27, 1
      %p260 = por %p258, %p259
      %p261 = scmp.ne.s32.totalorder %s250, %s251
      %p262 = scmp.eq.s32.totalorder %s27, 0
      %p263 = por %p261, %p262
      %p264 = scmp.ne.s32.totalorder %s250, %s251
      %p265 = scmp.eq.s32.totalorder %s28, 1
      %p266 = por %p264, %p265
      %p268 = scmp.ne.s32.totalorder %s251, %s267
      %p269 = scmp.eq.s32.totalorder %s28, 0
      %p270 = por %p268, %p269
      %p271 = scmp.le.s32.totalorder 1, %s22
      %p272 = scmp.lt.s32.totalorder %s22, 3
      %p273 = pnand %p271, %p272
      %p274 = pneg %p273
      // Predicated region
      $region9: #{tpu_custom_call.1} parent=5 // pred_check
        _
      $region10: #{tpu_custom_call.1} parent=5 // pred_check_branch
        %276 = sbr.rel (%p273) target = $region12
      $region11: #{tpu_custom_call.1} parent=5 // pred_region
        %s277 = ssub.s32 %s22, 1
        // Predicated region
        $region13: #{tpu_custom_call.1} parent=11 // pred_check
          %p278 = pneg %p69
        $region14: #{tpu_custom_call.1} parent=11 // pred_check_branch
          %280 = sbr.rel (%p278) target = $region16
        $region15: #{tpu_custom_call.1} parent=11 // pred_region
          _
        $region16: #{tpu_custom_call.1} parent=11 // pred_fallthru
          _
        // Predicated region
        $region17: #{tpu_custom_call.1} parent=11 // pred_check
          %p281 = pneg %p90
        $region18: #{tpu_custom_call.1} parent=11 // pred_check_branch
          %283 = sbr.rel (%p281) target = $region20
        $region19: #{tpu_custom_call.1} parent=11 // pred_region
          _
        $region20: #{tpu_custom_call.1} parent=11 // pred_fallthru
          _
        // Predicated region
        $region21: #{tpu_custom_call.1} parent=11 // pred_check
          %p284 = pneg %p111
        $region22: #{tpu_custom_call.1} parent=11 // pred_check_branch
          %286 = sbr.rel (%p284) target = $region24
        $region23: #{tpu_custom_call.1} parent=11 // pred_region
          _
        $region24: #{tpu_custom_call.1} parent=11 // pred_fallthru
          _
        // Predicated region
        $region25: #{tpu_custom_call.1} parent=11 // pred_check
          %p287 = pneg %p132
        $region26: #{tpu_custom_call.1} parent=11 // pred_check_branch
          %289 = sbr.rel (%p287) target = $region28
        $region27: #{tpu_custom_call.1} parent=11 // pred_region
          _
        $region28: #{tpu_custom_call.1} parent=11 // pred_fallthru
          _
        // Predicated region
        $region29: #{tpu_custom_call.1} parent=11 // pred_check
          %p290 = pneg %p153
        $region30: #{tpu_custom_call.1} parent=11 // pred_check_branch
          %292 = sbr.rel (%p290) target = $region32
        $region31: #{tpu_custom_call.1} parent=11 // pred_region
          _
        $region32: #{tpu_custom_call.1} parent=11 // pred_fallthru
          _
        // Predicated region
        $region33: #{tpu_custom_call.1} parent=11 // pred_check
          %p293 = pneg %p174
        $region34: #{tpu_custom_call.1} parent=11 // pred_check_branch
          %295 = sbr.rel (%p293) target = $region36
        $region35: #{tpu_custom_call.1} parent=11 // pred_region
          _
        $region36: #{tpu_custom_call.1} parent=11 // pred_fallthru
          _
        // Predicated region
        $region37: #{tpu_custom_call.1} parent=11 // pred_check
          %p296 = pneg %p195
        $region38: #{tpu_custom_call.1} parent=11 // pred_check_branch
          %298 = sbr.rel (%p296) target = $region40
        $region39: #{tpu_custom_call.1} parent=11 // pred_region
          _
        $region40: #{tpu_custom_call.1} parent=11 // pred_fallthru
          _
        // Predicated region
        $region41: #{tpu_custom_call.1} parent=11 // pred_check
          %p299 = pneg %p216
        $region42: #{tpu_custom_call.1} parent=11 // pred_check_branch
          %301 = sbr.rel (%p299) target = $region44
        $region43: #{tpu_custom_call.1} parent=11 // pred_region
          _
        $region44: #{tpu_custom_call.1} parent=11 // pred_fallthru
          _
        // Predicated region
        $region45: #{tpu_custom_call.1} parent=11 // pred_check
          %p302 = pneg %p237
        $region46: #{tpu_custom_call.1} parent=11 // pred_check_branch
          %304 = sbr.rel (%p302) target = $region48
        $region47: #{tpu_custom_call.1} parent=11 // pred_region
          _
        $region48: #{tpu_custom_call.1} parent=11 // pred_fallthru
          _
      $region12: #{tpu_custom_call.1} parent=5 // pred_fallthru
        _
      %p305 = scmp.lt.s32.totalorder %s22, 2
      // Predicated region
      $region49: #{tpu_custom_call.1} parent=5 // pred_check
        %p306 = pneg %p305
      $region50: #{tpu_custom_call.1} parent=5 // pred_check_branch
        %308 = sbr.rel (%p306) target = $region52
      $region51: #{tpu_custom_call.1} parent=5 // pred_region
        // Predicated region
        $region53: #{tpu_custom_call.1} parent=51 // pred_check
          %p309 = pneg %p42
        $region54: #{tpu_custom_call.1} parent=51 // pred_check_branch
          %311 = sbr.rel (%p309) target = $region56
        $region55: #{tpu_custom_call.1} parent=51 // pred_region
          %s312 = sand.u32 %s32, 1
          %s313 = scalar_lea.sflag [#allocation3], %s312
          %s314 = sand.u32 %s32, 1
          %s315 = smul.addr %s314, 256
          %s316 = scalar_lea.vmem [#allocation2], %s315
          %s318 = ssub.s32 4096, 4096
          %319 = vsyncadd %s313, %s318
          %s320 = smul.addr %s22, 32
          %s321 = smul.addr %s320, 128
          %s322 = scalar_lea.hbm %s0, %s321
          %s323 = sshll.u32 %s316, 4
          %s324 = int_to_ptr.vmem [resolvable:$true] %s323
          %329 = dma.hbm_to_vmem [thread:$0]  %s322, 4096, %s324, %s313, 128, 128, 8
        $region56: #{tpu_custom_call.1} parent=51 // pred_fallthru
          _
      $region52: #{tpu_custom_call.1} parent=5 // pred_fallthru
        _
      %p330 = scmp.le.s32.totalorder 1, %s22
      %p331 = scmp.lt.s32.totalorder %s22, 3
      %p332 = pnand %p330, %p331
      %p333 = pneg %p332
      // Predicated region
      $region57: #{tpu_custom_call.1} parent=5 // pred_check
        _
      $region58: #{tpu_custom_call.1} parent=5 // pred_check_branch
        %335 = sbr.rel (%p332) target = $region60
      $region59: #{tpu_custom_call.1} parent=5 // pred_region
        %s336 = ssub.s32 %s22, 1
        %s337 = sand.u32 %s35, 1
        %s338 = scalar_lea.sflag [#allocation3], %s337
        %s339 = sand.u32 %s35, 1
        %s340 = smul.addr %s339, 256
        %s341 = scalar_lea.vmem [#allocation2], %s340
        // Predicated region
        $region61: #{tpu_custom_call.1} parent=59 // pred_check
          %p342 = pneg %p48
        $region62: #{tpu_custom_call.1} parent=59 // pred_check_branch
          %344 = sbr.rel (%p342) target = $region64
        $region63: #{tpu_custom_call.1} parent=59 // pred_region
          %345 = dma.done %s338, 4096
        $region64: #{tpu_custom_call.1} parent=59 // pred_fallthru
          _
        %s346 = sand.u32 %s35, 1
        %s347 = scalar_lea.sflag [#allocation3], %s346
        %s348 = sand.u32 %s35, 1
        %s349 = smul.addr %s348, 256
        %s350 = scalar_lea.vmem [#allocation2], %s349
        %p351 = pneg %p48
        %p352 = pneg %p45
        %p353 = pneg %p69
        %p354 = pneg %p66
        %p355 = pneg %p90
        %p356 = pneg %p87
        %p357 = pneg %p111
        %p358 = pneg %p108
        %p359 = pneg %p132
        %p360 = pneg %p129
        %p361 = pneg %p153
        %p362 = pneg %p150
        %p363 = pneg %p174
        %p364 = pneg %p171
        %p365 = pneg %p195
        %p366 = pneg %p192
        %p367 = pneg %p216
        %p368 = pneg %p213
        %p369 = pneg %p237
        %p370 = pneg %p234
        %p371 = pneg %p263
        %p372 = pneg %p260
        %s373 = sand.u32 %s250, 1
        %s374 = scalar_lea.sflag [#allocation4], %s373
        %s375 = sand.u32 %s250, 1
        %s376 = smul.addr %s375, 256
        %s377 = scalar_lea.vmem [#allocation5], %s376
        %v379 = vld [vmem:[%s341] sm:$0xff]
        %v380 = vld [vmem:[%s341 + $0x8] sm:$0xff]
        %v381 = vld [vmem:[%s341 + $0x10] sm:$0xff]
        %v382 = vld [vmem:[%s341 + $0x18] sm:$0xff]
        %v383 = vld [vmem:[%s341 + $0x20] sm:$0xff]
        %v384 = vld [vmem:[%s341 + $0x28] sm:$0xff]
        %v385 = vld [vmem:[%s341 + $0x30] sm:$0xff]
        %v386 = vld [vmem:[%s341 + $0x38] sm:$0xff]
        %v387 = vld [vmem:[%s341 + $0x40] sm:$0xff]
        %v388 = vld [vmem:[%s341 + $0x48] sm:$0xff]
        %v389 = vld [vmem:[%s341 + $0x50] sm:$0xff]
        %v390 = vld [vmem:[%s341 + $0x58] sm:$0xff]
        %v391 = vld [vmem:[%s341 + $0x60] sm:$0xff]
        %v392 = vld [vmem:[%s341 + $0x68] sm:$0xff]
        %v393 = vld [vmem:[%s341 + $0x70] sm:$0xff]
        %v394 = vld [vmem:[%s341 + $0x78] sm:$0xff]
        %v395 = vld [vmem:[%s341 + $0x80] sm:$0xff]
        %v396 = vld [vmem:[%s341 + $0x88] sm:$0xff]
        %v397 = vld [vmem:[%s341 + $0x90] sm:$0xff]
        %v398 = vld [vmem:[%s341 + $0x98] sm:$0xff]
        %v399 = vld [vmem:[%s341 + $0xa0] sm:$0xff]
        %v400 = vld [vmem:[%s341 + $0xa8] sm:$0xff]
        %v401 = vld [vmem:[%s341 + $0xb0] sm:$0xff]
        %v402 = vld [vmem:[%s341 + $0xb8] sm:$0xff]
        %v403 = vld [vmem:[%s341 + $0xc0] sm:$0xff]
        %v404 = vld [vmem:[%s341 + $0xc8] sm:$0xff]
        %v405 = vld [vmem:[%s341 + $0xd0] sm:$0xff]
        %v406 = vld [vmem:[%s341 + $0xd8] sm:$0xff]
        %v407 = vld [vmem:[%s341 + $0xe0] sm:$0xff]
        %v408 = vld [vmem:[%s341 + $0xe8] sm:$0xff]
        %v409 = vld [vmem:[%s341 + $0xf0] sm:$0xff]
        %v410 = vld [vmem:[%s341 + $0xf8] sm:$0xff]
        %v411 = vpack.c.bf16 %v380, %v379
        %v412 = vpack.c.bf16 %v382, %v381
        %v413 = vpack.c.bf16 %v384, %v383
        %v414 = vpack.c.bf16 %v386, %v385
        %v415 = vpack.c.bf16 %v388, %v387
        %v416 = vpack.c.bf16 %v390, %v389
        %v417 = vpack.c.bf16 %v392, %v391
        %v418 = vpack.c.bf16 %v394, %v393
        %v419 = vpack.c.bf16 %v396, %v395
        %v420 = vpack.c.bf16 %v398, %v397
        %v421 = vpack.c.bf16 %v400, %v399
        %v422 = vpack.c.bf16 %v402, %v401
        %v423 = vpack.c.bf16 %v404, %v403
        %v424 = vpack.c.bf16 %v406, %v405
        %v425 = vpack.c.bf16 %v408, %v407
        %v426 = vpack.c.bf16 %v410, %v409
        %v427 = vld [vmem:[%s1] sm:$0xf]
        %v428 = vld [vmem:[%s1 + $0x4] sm:$0xf]
        %v429 = vld [vmem:[%s1 + $0x8] sm:$0xf]
        %v430 = vld [vmem:[%s1 + $0xc] sm:$0xf]
        %v431 = vld [vmem:[%s1 + $0x10] sm:$0xf]
        %v432 = vld [vmem:[%s1 + $0x14] sm:$0xf]
        %v433 = vld [vmem:[%s1 + $0x18] sm:$0xf]
        %v434 = vld [vmem:[%s1 + $0x1c] sm:$0xf]
        %v435 = vld [vmem:[%s1 + $0x20] sm:$0xf]
        %v436 = vld [vmem:[%s1 + $0x24] sm:$0xf]
        %v437 = vld [vmem:[%s1 + $0x28] sm:$0xf]
        %v438 = vld [vmem:[%s1 + $0x2c] sm:$0xf]
        %v439 = vld [vmem:[%s1 + $0x30] sm:$0xf]
        %v440 = vld [vmem:[%s1 + $0x34] sm:$0xf]
        %v441 = vld [vmem:[%s1 + $0x38] sm:$0xf]
        %v442 = vld [vmem:[%s1 + $0x3c] sm:$0xf]
        %v459 = vunpack.c.l.b16 %v427
        %v460 = vunpack.c.l.b16 %v428
        %v461 = vunpack.c.l.b16 %v429
        %v462 = vunpack.c.l.b16 %v430
        %v463 = vunpack.c.l.b16 %v431
        %v464 = vunpack.c.l.b16 %v432
        %v465 = vunpack.c.l.b16 %v433
        %v466 = vunpack.c.l.b16 %v434
        %v467 = vunpack.c.l.b16 %v435
        %v468 = vunpack.c.l.b16 %v436
        %v469 = vunpack.c.l.b16 %v437
        %v470 = vunpack.c.l.b16 %v438
        %v471 = vunpack.c.l.b16 %v439
        %v472 = vunpack.c.l.b16 %v440
        %v473 = vunpack.c.l.b16 %v441
        %v474 = vunpack.c.l.b16 %v442
        %v475 = vpack.c.b16 %v460, %v459
        %v476 = vpack.c.b16 %v462, %v461
        %v477 = vpack.c.b16 %v464, %v463
        %v478 = vpack.c.b16 %v466, %v465
        %v479 = vpack.c.b16 %v468, %v467
        %v480 = vpack.c.b16 %v470, %v469
        %v481 = vpack.c.b16 %v472, %v471
        %v482 = vpack.c.b16 %v474, %v473
        %491 = vmatprep.subr.bf16.mxu0 0
        %492 = vmatpush1.bf16.msra.mxu0 %v475
        %493 = vmatprep.subr.bf16.mxu0 0
        %494 = vmatpush1.bf16.msra.mxu0 %v476
        %495 = vmatprep.subr.bf16.mxu0 0
        %496 = vmatpush1.bf16.msra.mxu0 %v477
        %497 = vmatprep.subr.bf16.mxu0 0
        %498 = vmatpush1.bf16.msra.mxu0 %v478
        %499 = vmatprep.subr.bf16.mxu0 0
        %500 = vmatpush1.bf16.msra.mxu0 %v479
        %501 = vmatprep.subr.bf16.mxu0 0
        %502 = vmatpush1.bf16.msra.mxu0 %v480
        %503 = vmatprep.subr.bf16.mxu0 0
        %504 = vmatpush1.bf16.msra.mxu0 %v481
        %505 = vmatprep.subr.bf16.mxu0 0
        %506 = vmatpush1.bf16.msra.mxu0 %v482
        %507 = vmatprep.subr.bf16.mxu0 0
        %508 = vmatpush1.bf16.msra.mxu0 0
        %509 = vmatprep.subr.bf16.mxu0 0
        %510 = vmatpush1.bf16.msra.mxu0 0
        %511 = vmatprep.subr.bf16.mxu0 0
        %512 = vmatpush1.bf16.msra.mxu0 0
        %513 = vmatprep.subr.bf16.mxu0 0
        %514 = vmatpush1.bf16.msra.mxu0 0
        %515 = vmatprep.subr.bf16.mxu0 0
        %516 = vmatpush1.bf16.msra.mxu0 0
        %517 = vmatprep.subr.bf16.mxu0 0
        %518 = vmatpush1.bf16.msra.mxu0 0
        %519 = vmatprep.subr.bf16.mxu0 0
        %520 = vmatpush1.bf16.msra.mxu0 0
        %521 = vmatprep.subr.bf16.mxu0 0
        %522 = vmatpush1.bf16.msra.mxu0 0
        %523 = vmatprep.mubr.bf16.mxu0 0
        %524 = vmatmul.mubr.bf16.gmra.mrb[0].mxu0 %v411
        %v525 = vpop.f32.mrb[0].mxu0
        %v526 = vadd.f32 0.0, %v525
        %v527 = vpop.f32.mrb[0].mxu0
        %v528 = vpop.f32.mrb[0].mxu0
        %v529 = vadd.f32 0.0, %v528
        %v530 = vpop.f32.mrb[0].mxu0
        %531 = vmatprep.mubr.bf16.mxu0 0
        %532 = vmatmul.mubr.bf16.gmra.mrb[0].mxu0 %v412
        %v533 = vpop.f32.mrb[0].mxu0
        %v534 = vadd.f32 0.0, %v533
        %v535 = vpop.f32.mrb[0].mxu0
        %v536 = vpop.f32.mrb[0].mxu0
        %v537 = vadd.f32 0.0, %v536
        %v538 = vpop.f32.mrb[0].mxu0
        %539 = vmatprep.mubr.bf16.mxu0 0
        %540 = vmatmul.mubr.bf16.gmra.mrb[0].mxu0 %v413
        %v541 = vpop.f32.mrb[0].mxu0
        %v542 = vadd.f32 0.0, %v541
        %v543 = vpop.f32.mrb[0].mxu0
        %v544 = vpop.f32.mrb[0].mxu0
        %v545 = vadd.f32 0.0, %v544
        %v546 = vpop.f32.mrb[0].mxu0
        %547 = vmatprep.mubr.bf16.mxu0 0
        %548 = vmatmul.mubr.bf16.gmra.mrb[0].mxu0 %v414
        %v549 = vpop.f32.mrb[0].mxu0
        %v550 = vadd.f32 0.0, %v549
        %v551 = vpop.f32.mrb[0].mxu0
        %v552 = vpop.f32.mrb[0].mxu0
        %v553 = vadd.f32 0.0, %v552
        %v554 = vpop.f32.mrb[0].mxu0
        %555 = vmatprep.mubr.bf16.mxu0 0
        %556 = vmatmul.mubr.bf16.gmra.mrb[0].mxu0 %v415
        %v557 = vpop.f32.mrb[0].mxu0
        %v558 = vadd.f32 0.0, %v557
        %v559 = vpop.f32.mrb[0].mxu0
        %v560 = vpop.f32.mrb[0].mxu0
        %v561 = vadd.f32 0.0, %v560
        %v562 = vpop.f32.mrb[0].mxu0
        %563 = vmatprep.mubr.bf16.mxu0 0
        %564 = vmatmul.mubr.bf16.gmra.mrb[0].mxu0 %v416
        %v565 = vpop.f32.mrb[0].mxu0
        %v566 = vadd.f32 0.0, %v565
        %v567 = vpop.f32.mrb[0].mxu0
        %v568 = vpop.f32.mrb[0].mxu0
        %v569 = vadd.f32 0.0, %v568
        %v570 = vpop.f32.mrb[0].mxu0
        %571 = vmatprep.mubr.bf16.mxu0 0
        %572 = vmatmul.mubr.bf16.gmra.mrb[0].mxu0 %v417
        %v573 = vpop.f32.mrb[0].mxu0
        %v574 = vadd.f32 0.0, %v573
        %v575 = vpop.f32.mrb[0].mxu0
        %v576 = vpop.f32.mrb[0].mxu0
        %v577 = vadd.f32 0.0, %v576
        %v578 = vpop.f32.mrb[0].mxu0
        %579 = vmatprep.mubr.bf16.mxu0 0
        %580 = vmatmul.mubr.bf16.gmra.mrb[0].mxu0 %v418
        %v581 = vpop.f32.mrb[0].mxu0
        %v582 = vadd.f32 0.0, %v581
        %v583 = vpop.f32.mrb[0].mxu0
        %v584 = vpop.f32.mrb[0].mxu0
        %v585 = vadd.f32 0.0, %v584
        %v586 = vpop.f32.mrb[0].mxu0
        %587 = vmatprep.mubr.bf16.mxu0 0
        %588 = vmatmul.mubr.bf16.gmra.mrb[0].mxu0 %v419
        %v589 = vpop.f32.mrb[0].mxu0
        %v590 = vadd.f32 0.0, %v589
        %v591 = vpop.f32.mrb[0].mxu0
        %v592 = vpop.f32.mrb[0].mxu0
        %v593 = vadd.f32 0.0, %v592
        %v594 = vpop.f32.mrb[0].mxu0
        %595 = vmatprep.mubr.bf16.mxu0 0
        %596 = vmatmul.mubr.bf16.gmra.mrb[0].mxu0 %v420
        %v597 = vpop.f32.mrb[0].mxu0
        %v598 = vadd.f32 0.0, %v597
        %v599 = vpop.f32.mrb[0].mxu0
        %v600 = vpop.f32.mrb[0].mxu0
        %v601 = vadd.f32 0.0, %v600
        %v602 = vpop.f32.mrb[0].mxu0
        %603 = vmatprep.mubr.bf16.mxu0 0
        %604 = vmatmul.mubr.bf16.gmra.mrb[0].mxu0 %v421
        %v605 = vpop.f32.mrb[0].mxu0
        %v606 = vadd.f32 0.0, %v605
        %v607 = vpop.f32.mrb[0].mxu0
        %v608 = vpop.f32.mrb[0].mxu0
        %v609 = vadd.f32 0.0, %v608
        %v610 = vpop.f32.mrb[0].mxu0
        %611 = vmatprep.mubr.bf16.mxu0 0
        %612 = vmatmul.mubr.bf16.gmra.mrb[0].mxu0 %v422
        %v613 = vpop.f32.mrb[0].mxu0
        %v614 = vadd.f32 0.0, %v613
        %v615 = vpop.f32.mrb[0].mxu0
        %v616 = vpop.f32.mrb[0].mxu0
        %v617 = vadd.f32 0.0, %v616
        %v618 = vpop.f32.mrb[0].mxu0
        %619 = vmatprep.mubr.bf16.mxu0 0
        %620 = vmatmul.mubr.bf16.gmra.mrb[0].mxu0 %v423
        %v621 = vpop.f32.mrb[0].mxu0
        %v622 = vadd.f32 0.0, %v621
        %v623 = vpop.f32.mrb[0].mxu0
        %v624 = vpop.f32.mrb[0].mxu0
        %v625 = vadd.f32 0.0, %v624
        %v626 = vpop.f32.mrb[0].mxu0
        %627 = vmatprep.mubr.bf16.mxu0 0
        %628 = vmatmul.mubr.bf16.gmra.mrb[0].mxu0 %v424
        %v629 = vpop.f32.mrb[0].mxu0
        %v630 = vadd.f32 0.0, %v629
        %v631 = vpop.f32.mrb[0].mxu0
        %v632 = vpop.f32.mrb[0].mxu0
        %v633 = vadd.f32 0.0, %v632
        %v634 = vpop.f32.mrb[0].mxu0
        %635 = vmatprep.mubr.bf16.mxu0 0
        %636 = vmatmul.mubr.bf16.gmra.mrb[0].mxu0 %v425
        %v637 = vpop.f32.mrb[0].mxu0
        %v638 = vadd.f32 0.0, %v637
        %v639 = vpop.f32.mrb[0].mxu0
        %v640 = vpop.f32.mrb[0].mxu0
        %v641 = vadd.f32 0.0, %v640
        %v642 = vpop.f32.mrb[0].mxu0
        %643 = vmatprep.mubr.bf16.mxu0 0
        %644 = vmatmul.mubr.bf16.gmra.mrb[0].mxu0 %v426
        %v645 = vpop.f32.mrb[0].mxu0
        %v646 = vadd.f32 0.0, %v645
        %v647 = vpop.f32.mrb[0].mxu0
        %v648 = vpop.f32.mrb[0].mxu0
        %v649 = vadd.f32 0.0, %v648
        %v650 = vpop.f32.mrb[0].mxu0
        %651 = vdwg.mxu0
        %v652 = vld [vmem:[%s2] sm:$0x1]
        %v654 = vlaneseq
        %v655 = vshrl.u32 %v654, 7
        %v656 = vsub.s32 0, %v655
        %v657 = vrot.slane %v652, %v656
        %v659 = vmul.f32 %v526, %v657
        %v660 = vmul.f32 %v529, %v657
        %v661 = vmul.f32 %v534, %v657
        %v662 = vmul.f32 %v537, %v657
        %v663 = vmul.f32 %v542, %v657
        %v664 = vmul.f32 %v545, %v657
        %v665 = vmul.f32 %v550, %v657
        %v666 = vmul.f32 %v553, %v657
        %v667 = vmul.f32 %v558, %v657
        %v668 = vmul.f32 %v561, %v657
        %v669 = vmul.f32 %v566, %v657
        %v670 = vmul.f32 %v569, %v657
        %v671 = vmul.f32 %v574, %v657
        %v672 = vmul.f32 %v577, %v657
        %v673 = vmul.f32 %v582, %v657
        %v674 = vmul.f32 %v585, %v657
        %v675 = vmul.f32 %v590, %v657
        %v676 = vmul.f32 %v593, %v657
        %v677 = vmul.f32 %v598, %v657
        %v678 = vmul.f32 %v601, %v657
        %v679 = vmul.f32 %v606, %v657
        %v680 = vmul.f32 %v609, %v657
        %v681 = vmul.f32 %v614, %v657
        %v682 = vmul.f32 %v617, %v657
        %v683 = vmul.f32 %v622, %v657
        %v684 = vmul.f32 %v625, %v657
        %v685 = vmul.f32 %v630, %v657
        %v686 = vmul.f32 %v633, %v657
        %v687 = vmul.f32 %v638, %v657
        %v688 = vmul.f32 %v641, %v657
        %v689 = vmul.f32 %v646, %v657
        %v690 = vmul.f32 %v649, %v657
        %v691 = vld [vmem:[%s3] sm:$0x1]
        %v693 = vlaneseq
        %v694 = vshrl.u32 %v693, 7
        %v695 = vsub.s32 0, %v694
        %v696 = vrot.slane %v691, %v695
        %v698 = vadd.f32 %v659, %v696
        %v699 = vadd.f32 %v660, %v696
        %v700 = vadd.f32 %v661, %v696
        %v701 = vadd.f32 %v662, %v696
        %v702 = vadd.f32 %v663, %v696
        %v703 = vadd.f32 %v664, %v696
        %v704 = vadd.f32 %v665, %v696
        %v705 = vadd.f32 %v666, %v696
        %v706 = vadd.f32 %v667, %v696
        %v707 = vadd.f32 %v668, %v696
        %v708 = vadd.f32 %v669, %v696
        %v709 = vadd.f32 %v670, %v696
        %v710 = vadd.f32 %v671, %v696
        %v711 = vadd.f32 %v672, %v696
        %v712 = vadd.f32 %v673, %v696
        %v713 = vadd.f32 %v674, %v696
        %v714 = vadd.f32 %v675, %v696
        %v715 = vadd.f32 %v676, %v696
        %v716 = vadd.f32 %v677, %v696
        %v717 = vadd.f32 %v678, %v696
        %v718 = vadd.f32 %v679, %v696
        %v719 = vadd.f32 %v680, %v696
        %v720 = vadd.f32 %v681, %v696
        %v721 = vadd.f32 %v682, %v696
        %v722 = vadd.f32 %v683, %v696
        %v723 = vadd.f32 %v684, %v696
        %v724 = vadd.f32 %v685, %v696
        %v725 = vadd.f32 %v686, %v696
        %v726 = vadd.f32 %v687, %v696
        %v727 = vadd.f32 %v688, %v696
        %v728 = vadd.f32 %v689, %v696
        %v729 = vadd.f32 %v690, %v696
        %v730 = vmax.f32 %v698, 0.0
        %v731 = vmax.f32 %v699, 0.0
        %v732 = vmax.f32 %v700, 0.0
        %v733 = vmax.f32 %v701, 0.0
        %v734 = vmax.f32 %v702, 0.0
        %v735 = vmax.f32 %v703, 0.0
        %v736 = vmax.f32 %v704, 0.0
        %v737 = vmax.f32 %v705, 0.0
        %v738 = vmax.f32 %v706, 0.0
        %v739 = vmax.f32 %v707, 0.0
        %v740 = vmax.f32 %v708, 0.0
        %v741 = vmax.f32 %v709, 0.0
        %v742 = vmax.f32 %v710, 0.0
        %v743 = vmax.f32 %v711, 0.0
        %v744 = vmax.f32 %v712, 0.0
        %v745 = vmax.f32 %v713, 0.0
        %v746 = vmax.f32 %v714, 0.0
        %v747 = vmax.f32 %v715, 0.0
        %v748 = vmax.f32 %v716, 0.0
        %v749 = vmax.f32 %v717, 0.0
        %v750 = vmax.f32 %v718, 0.0
        %v751 = vmax.f32 %v719, 0.0
        %v752 = vmax.f32 %v720, 0.0
        %v753 = vmax.f32 %v721, 0.0
        %v754 = vmax.f32 %v722, 0.0
        %v755 = vmax.f32 %v723, 0.0
        %v756 = vmax.f32 %v724, 0.0
        %v757 = vmax.f32 %v725, 0.0
        %v758 = vmax.f32 %v726, 0.0
        %v759 = vmax.f32 %v727, 0.0
        %v760 = vmax.f32 %v728, 0.0
        %v761 = vmax.f32 %v729, 0.0
        %v762 = vpack.c.bf16 %v731, %v730
        %v763 = vpack.c.bf16 %v733, %v732
        %v764 = vpack.c.bf16 %v735, %v734
        %v765 = vpack.c.bf16 %v737, %v736
        %v766 = vpack.c.bf16 %v739, %v738
        %v767 = vpack.c.bf16 %v741, %v740
        %v768 = vpack.c.bf16 %v743, %v742
        %v769 = vpack.c.bf16 %v745, %v744
        %v770 = vpack.c.bf16 %v747, %v746
        %v771 = vpack.c.bf16 %v749, %v748
        %v772 = vpack.c.bf16 %v751, %v750
        %v773 = vpack.c.bf16 %v753, %v752
        %v774 = vpack.c.bf16 %v755, %v754
        %v775 = vpack.c.bf16 %v757, %v756
        %v776 = vpack.c.bf16 %v759, %v758
        %v777 = vpack.c.bf16 %v761, %v760
        %v794 = vunpack.c.l.b16 %v762
        %v795 = vunpack.c.h.b16 %v762
        %v796 = vunpack.c.l.b16 %v763
        %v797 = vunpack.c.h.b16 %v763
        %v798 = vunpack.c.l.b16 %v764
        %v799 = vunpack.c.h.b16 %v764
        %v800 = vunpack.c.l.b16 %v765
        %v801 = vunpack.c.h.b16 %v765
        %v802 = vunpack.c.l.b16 %v766
        %v803 = vunpack.c.h.b16 %v766
        %v804 = vunpack.c.l.b16 %v767
        %v805 = vunpack.c.h.b16 %v767
        %v806 = vunpack.c.l.b16 %v768
        %v807 = vunpack.c.h.b16 %v768
        %v808 = vunpack.c.l.b16 %v769
        %v809 = vunpack.c.h.b16 %v769
        %v810 = vunpack.c.l.b16 %v770
        %v811 = vunpack.c.h.b16 %v770
        %v812 = vunpack.c.l.b16 %v771
        %v813 = vunpack.c.h.b16 %v771
        %v814 = vunpack.c.l.b16 %v772
        %v815 = vunpack.c.h.b16 %v772
        %v816 = vunpack.c.l.b16 %v773
        %v817 = vunpack.c.h.b16 %v773
        %v818 = vunpack.c.l.b16 %v774
        %v819 = vunpack.c.h.b16 %v774
        %v820 = vunpack.c.l.b16 %v775
        %v821 = vunpack.c.h.b16 %v775
        %v822 = vunpack.c.l.b16 %v776
        %v823 = vunpack.c.h.b16 %v776
        %v824 = vunpack.c.l.b16 %v777
        %v825 = vunpack.c.h.b16 %v777
        %v826 = vpack.c.b16 %v794, %v794
        %v827 = vpack.c.b16 %v795, %v795
        %v828 = vpack.c.b16 %v796, %v796
        %v829 = vpack.c.b16 %v797, %v797
        %v830 = vpack.c.b16 %v798, %v798
        %v831 = vpack.c.b16 %v799, %v799
        %v832 = vpack.c.b16 %v800, %v800
        %v833 = vpack.c.b16 %v801, %v801
        %v834 = vpack.c.b16 %v802, %v802
        %v835 = vpack.c.b16 %v803, %v803
        %v836 = vpack.c.b16 %v804, %v804
        %v837 = vpack.c.b16 %v805, %v805
        %v838 = vpack.c.b16 %v806, %v806
        %v839 = vpack.c.b16 %v807, %v807
        %v840 = vpack.c.b16 %v808, %v808
        %v841 = vpack.c.b16 %v809, %v809
        %v842 = vpack.c.b16 %v810, %v810
        %v843 = vpack.c.b16 %v811, %v811
        %v844 = vpack.c.b16 %v812, %v812
        %v845 = vpack.c.b16 %v813, %v813
        %v846 = vpack.c.b16 %v814, %v814
        %v847 = vpack.c.b16 %v815, %v815
        %v848 = vpack.c.b16 %v816, %v816
        %v849 = vpack.c.b16 %v817, %v817
        %v850 = vpack.c.b16 %v818, %v818
        %v851 = vpack.c.b16 %v819, %v819
        %v852 = vpack.c.b16 %v820, %v820
        %v853 = vpack.c.b16 %v821, %v821
        %v854 = vpack.c.b16 %v822, %v822
        %v855 = vpack.c.b16 %v823, %v823
        %v856 = vpack.c.b16 %v824, %v824
        %v857 = vpack.c.b16 %v825, %v825
        %v859 = vshrl.u32 %v826, 16
        %v861 = vrot.slane %v859, 7
        %v862 = vshll.u32 %v826, 16
        %v864 = vor.u32 %v861, %v862
        %v866 = vshrl.u32 %v827, 16
        %v868 = vrot.slane %v866, 7
        %v869 = vshll.u32 %v827, 16
        %v871 = vor.u32 %v868, %v869
        %v873 = vshrl.u32 %v828, 16
        %v875 = vrot.slane %v873, 7
        %v876 = vshll.u32 %v828, 16
        %v878 = vor.u32 %v875, %v876
        %v880 = vshrl.u32 %v829, 16
        %v882 = vrot.slane %v880, 7
        %v883 = vshll.u32 %v829, 16
        %v885 = vor.u32 %v882, %v883
        %v887 = vshrl.u32 %v830, 16
        %v889 = vrot.slane %v887, 7
        %v890 = vshll.u32 %v830, 16
        %v892 = vor.u32 %v889, %v890
        %v894 = vshrl.u32 %v831, 16
        %v896 = vrot.slane %v894, 7
        %v897 = vshll.u32 %v831, 16
        %v899 = vor.u32 %v896, %v897
        %v901 = vshrl.u32 %v832, 16
        %v903 = vrot.slane %v901, 7
        %v904 = vshll.u32 %v832, 16
        %v906 = vor.u32 %v903, %v904
        %v908 = vshrl.u32 %v833, 16
        %v910 = vrot.slane %v908, 7
        %v911 = vshll.u32 %v833, 16
        %v913 = vor.u32 %v910, %v911
        %v915 = vshrl.u32 %v834, 16
        %v917 = vrot.slane %v915, 7
        %v918 = vshll.u32 %v834, 16
        %v920 = vor.u32 %v917, %v918
        %v922 = vshrl.u32 %v835, 16
        %v924 = vrot.slane %v922, 7
        %v925 = vshll.u32 %v835, 16
        %v927 = vor.u32 %v924, %v925
        %v929 = vshrl.u32 %v836, 16
        %v931 = vrot.slane %v929, 7
        %v932 = vshll.u32 %v836, 16
        %v934 = vor.u32 %v931, %v932
        %v936 = vshrl.u32 %v837, 16
        %v938 = vrot.slane %v936, 7
        %v939 = vshll.u32 %v837, 16
        %v941 = vor.u32 %v938, %v939
        %v943 = vshrl.u32 %v838, 16
        %v945 = vrot.slane %v943, 7
        %v946 = vshll.u32 %v838, 16
        %v948 = vor.u32 %v945, %v946
        %v950 = vshrl.u32 %v839, 16
        %v952 = vrot.slane %v950, 7
        %v953 = vshll.u32 %v839, 16
        %v955 = vor.u32 %v952, %v953
        %v957 = vshrl.u32 %v840, 16
        %v959 = vrot.slane %v957, 7
        %v960 = vshll.u32 %v840, 16
        %v962 = vor.u32 %v959, %v960
        %v964 = vshrl.u32 %v841, 16
        %v966 = vrot.slane %v964, 7
        %v967 = vshll.u32 %v841, 16
        %v969 = vor.u32 %v966, %v967
        %v971 = vshrl.u32 %v842, 16
        %v973 = vrot.slane %v971, 7
        %v974 = vshll.u32 %v842, 16
        %v976 = vor.u32 %v973, %v974
        %v978 = vshrl.u32 %v843, 16
        %v980 = vrot.slane %v978, 7
        %v981 = vshll.u32 %v843, 16
        %v983 = vor.u32 %v980, %v981
        %v985 = vshrl.u32 %v844, 16
        %v987 = vrot.slane %v985, 7
        %v988 = vshll.u32 %v844, 16
        %v990 = vor.u32 %v987, %v988
        %v992 = vshrl.u32 %v845, 16
        %v994 = vrot.slane %v992, 7
        %v995 = vshll.u32 %v845, 16
        %v997 = vor.u32 %v994, %v995
        %v999 = vshrl.u32 %v846, 16
        %v1001 = vrot.slane %v999, 7
        %v1002 = vshll.u32 %v846, 16
        %v1004 = vor.u32 %v1001, %v1002
        %v1006 = vshrl.u32 %v847, 16
        %v1008 = vrot.slane %v1006, 7
        %v1009 = vshll.u32 %v847, 16
        %v1011 = vor.u32 %v1008, %v1009
        %v1013 = vshrl.u32 %v848, 16
        %v1015 = vrot.slane %v1013, 7
        %v1016 = vshll.u32 %v848, 16
        %v1018 = vor.u32 %v1015, %v1016
        %v1020 = vshrl.u32 %v849, 16
        %v1022 = vrot.slane %v1020, 7
        %v1023 = vshll.u32 %v849, 16
        %v1025 = vor.u32 %v1022, %v1023
        %v1027 = vshrl.u32 %v850, 16
        %v1029 = vrot.slane %v1027, 7
        %v1030 = vshll.u32 %v850, 16
        %v1032 = vor.u32 %v1029, %v1030
        %v1034 = vshrl.u32 %v851, 16
        %v1036 = vrot.slane %v1034, 7
        %v1037 = vshll.u32 %v851, 16
        %v1039 = vor.u32 %v1036, %v1037
        %v1041 = vshrl.u32 %v852, 16
        %v1043 = vrot.slane %v1041, 7
        %v1044 = vshll.u32 %v852, 16
        %v1046 = vor.u32 %v1043, %v1044
        %v1048 = vshrl.u32 %v853, 16
        %v1050 = vrot.slane %v1048, 7
        %v1051 = vshll.u32 %v853, 16
        %v1053 = vor.u32 %v1050, %v1051
        %v1055 = vshrl.u32 %v854, 16
        %v1057 = vrot.slane %v1055, 7
        %v1058 = vshll.u32 %v854, 16
        %v1060 = vor.u32 %v1057, %v1058
        %v1062 = vshrl.u32 %v855, 16
        %v1064 = vrot.slane %v1062, 7
        %v1065 = vshll.u32 %v855, 16
        %v1067 = vor.u32 %v1064, %v1065
        %v1069 = vshrl.u32 %v856, 16
        %v1071 = vrot.slane %v1069, 7
        %v1072 = vshll.u32 %v856, 16
        %v1074 = vor.u32 %v1071, %v1072
        %v1076 = vshrl.u32 %v857, 16
        %v1078 = vrot.slane %v1076, 7
        %v1079 = vshll.u32 %v857, 16
        %v1081 = vor.u32 %v1078, %v1079
        %vm1114 = vcmask 1040384
        %vm1115 = vsmask.f32 256
        %vm1116 = vmand %vm1114, %vm1115
        %v1117 = vsel %vm1116, 0, %v864
        %v1118 = vsel %vm1116, 0, %v871
        %v1119 = vsel %vm1116, 0, %v878
        %v1120 = vsel %vm1116, 0, %v885
        %v1121 = vsel %vm1116, 0, %v892
        %v1122 = vsel %vm1116, 0, %v899
        %v1123 = vsel %vm1116, 0, %v906
        %v1124 = vsel %vm1116, 0, %v913
        %v1125 = vsel %vm1116, 0, %v920
        %v1126 = vsel %vm1116, 0, %v927
        %v1127 = vsel %vm1116, 0, %v934
        %v1128 = vsel %vm1116, 0, %v941
        %v1129 = vsel %vm1116, 0, %v948
        %v1130 = vsel %vm1116, 0, %v955
        %v1131 = vsel %vm1116, 0, %v962
        %v1132 = vsel %vm1116, 0, %v969
        %v1133 = vsel %vm1116, 0, %v976
        %v1134 = vsel %vm1116, 0, %v983
        %v1135 = vsel %vm1116, 0, %v990
        %v1136 = vsel %vm1116, 0, %v997
        %v1137 = vsel %vm1116, 0, %v1004
        %v1138 = vsel %vm1116, 0, %v1011
        %v1139 = vsel %vm1116, 0, %v1018
        %v1140 = vsel %vm1116, 0, %v1025
        %v1141 = vsel %vm1116, 0, %v1032
        %v1142 = vsel %vm1116, 0, %v1039
        %v1143 = vsel %vm1116, 0, %v1046
        %v1144 = vsel %vm1116, 0, %v1053
        %v1145 = vsel %vm1116, 0, %v1060
        %v1146 = vsel %vm1116, 0, %v1067
        %v1147 = vsel %vm1116, 0, %v1074
        %v1148 = vsel %vm1116, 0, %v1081
        %vm1149 = vcmask 1044480
        %vm1150 = vsmask.f32 4352
        %vm1151 = vmand %vm1149, %vm1150
        %v1152 = vsel %vm1151, %v1117, 0
        %v1153 = vsel %vm1151, %v1118, 0
        %v1154 = vsel %vm1151, %v1119, 0
        %v1155 = vsel %vm1151, %v1120, 0
        %v1156 = vsel %vm1151, %v1121, 0
        %v1157 = vsel %vm1151, %v1122, 0
        %v1158 = vsel %vm1151, %v1123, 0
        %v1159 = vsel %vm1151, %v1124, 0
        %v1160 = vsel %vm1151, %v1125, 0
        %v1161 = vsel %vm1151, %v1126, 0
        %v1162 = vsel %vm1151, %v1127, 0
        %v1163 = vsel %vm1151, %v1128, 0
        %v1164 = vsel %vm1151, %v1129, 0
        %v1165 = vsel %vm1151, %v1130, 0
        %v1166 = vsel %vm1151, %v1131, 0
        %v1167 = vsel %vm1151, %v1132, 0
        %v1168 = vsel %vm1151, %v1133, 0
        %v1169 = vsel %vm1151, %v1134, 0
        %v1170 = vsel %vm1151, %v1135, 0
        %v1171 = vsel %vm1151, %v1136, 0
        %v1172 = vsel %vm1151, %v1137, 0
        %v1173 = vsel %vm1151, %v1138, 0
        %v1174 = vsel %vm1151, %v1139, 0
        %v1175 = vsel %vm1151, %v1140, 0
        %v1176 = vsel %vm1151, %v1141, 0
        %v1177 = vsel %vm1151, %v1142, 0
        %v1178 = vsel %vm1151, %v1143, 0
        %v1179 = vsel %vm1151, %v1144, 0
        %v1180 = vsel %vm1151, %v1145, 0
        %v1181 = vsel %vm1151, %v1146, 0
        %v1182 = vsel %vm1151, %v1147, 0
        %v1183 = vsel %vm1151, %v1148, 0
        %v1185 = vshrl.u32 0, 16
        %v1187 = vshll.u32 0, 16
        %v1189 = vrot.slane %v1187, 1
        %v1190 = vor.u32 %v1185, %v1189
        %v1192 = vshrl.u32 %v1152, 16
        %v1194 = vshll.u32 %v1152, 16
        %v1196 = vrot.slane %v1194, 1
        %v1197 = vor.u32 %v1192, %v1196
        %v1199 = vshrl.u32 %v1153, 16
        %v1201 = vshll.u32 %v1153, 16
        %v1203 = vrot.slane %v1201, 1
        %v1204 = vor.u32 %v1199, %v1203
        %v1206 = vshrl.u32 %v1154, 16
        %v1208 = vshll.u32 %v1154, 16
        %v1210 = vrot.slane %v1208, 1
        %v1211 = vor.u32 %v1206, %v1210
        %v1213 = vshrl.u32 %v1155, 16
        %v1215 = vshll.u32 %v1155, 16
        %v1217 = vrot.slane %v1215, 1
        %v1218 = vor.u32 %v1213, %v1217
        %v1220 = vshrl.u32 %v1156, 16
        %v1222 = vshll.u32 %v1156, 16
        %v1224 = vrot.slane %v1222, 1
        %v1225 = vor.u32 %v1220, %v1224
        %v1227 = vshrl.u32 %v1157, 16
        %v1229 = vshll.u32 %v1157, 16
        %v1231 = vrot.slane %v1229, 1
        %v1232 = vor.u32 %v1227, %v1231
        %v1234 = vshrl.u32 %v1158, 16
        %v1236 = vshll.u32 %v1158, 16
        %v1238 = vrot.slane %v1236, 1
        %v1239 = vor.u32 %v1234, %v1238
        %v1241 = vshrl.u32 %v1160, 16
        %v1243 = vshll.u32 %v1160, 16
        %v1245 = vrot.slane %v1243, 1
        %v1246 = vor.u32 %v1241, %v1245
        %v1248 = vshrl.u32 %v1161, 16
        %v1250 = vshll.u32 %v1161, 16
        %v1252 = vrot.slane %v1250, 1
        %v1253 = vor.u32 %v1248, %v1252
        %v1255 = vshrl.u32 %v1162, 16
        %v1257 = vshll.u32 %v1162, 16
        %v1259 = vrot.slane %v1257, 1
        %v1260 = vor.u32 %v1255, %v1259
        %v1262 = vshrl.u32 %v1163, 16
        %v1264 = vshll.u32 %v1163, 16
        %v1266 = vrot.slane %v1264, 1
        %v1267 = vor.u32 %v1262, %v1266
        %v1269 = vshrl.u32 %v1164, 16
        %v1271 = vshll.u32 %v1164, 16
        %v1273 = vrot.slane %v1271, 1
        %v1274 = vor.u32 %v1269, %v1273
        %v1276 = vshrl.u32 %v1165, 16
        %v1278 = vshll.u32 %v1165, 16
        %v1280 = vrot.slane %v1278, 1
        %v1281 = vor.u32 %v1276, %v1280
        %v1283 = vshrl.u32 %v1166, 16
        %v1285 = vshll.u32 %v1166, 16
        %v1287 = vrot.slane %v1285, 1
        %v1288 = vor.u32 %v1283, %v1287
        %v1290 = vshrl.u32 %v1168, 16
        %v1292 = vshll.u32 %v1168, 16
        %v1294 = vrot.slane %v1292, 1
        %v1295 = vor.u32 %v1290, %v1294
        %v1297 = vshrl.u32 %v1169, 16
        %v1299 = vshll.u32 %v1169, 16
        %v1301 = vrot.slane %v1299, 1
        %v1302 = vor.u32 %v1297, %v1301
        %v1304 = vshrl.u32 %v1170, 16
        %v1306 = vshll.u32 %v1170, 16
        %v1308 = vrot.slane %v1306, 1
        %v1309 = vor.u32 %v1304, %v1308
        %v1311 = vshrl.u32 %v1171, 16
        %v1313 = vshll.u32 %v1171, 16
        %v1315 = vrot.slane %v1313, 1
        %v1316 = vor.u32 %v1311, %v1315
        %v1318 = vshrl.u32 %v1172, 16
        %v1320 = vshll.u32 %v1172, 16
        %v1322 = vrot.slane %v1320, 1
        %v1323 = vor.u32 %v1318, %v1322
        %v1325 = vshrl.u32 %v1173, 16
        %v1327 = vshll.u32 %v1173, 16
        %v1329 = vrot.slane %v1327, 1
        %v1330 = vor.u32 %v1325, %v1329
        %v1332 = vshrl.u32 %v1174, 16
        %v1334 = vshll.u32 %v1174, 16
        %v1336 = vrot.slane %v1334, 1
        %v1337 = vor.u32 %v1332, %v1336
        %1338 = vrot.lane.b32.xlu0 %v1190, 8
        %v1339 = vpop.permute.xlu0 %1338
        %1340 = vrot.lane.b32.xlu0 %v1197, 8
        %v1341 = vpop.permute.xlu0 %1340
        %1342 = vrot.lane.b32.xlu0 %v1204, 8
        %v1343 = vpop.permute.xlu0 %1342
        %1344 = vrot.lane.b32.xlu0 %v1211, 8
        %v1345 = vpop.permute.xlu0 %1344
        %1346 = vrot.lane.b32.xlu0 %v1218, 8
        %v1347 = vpop.permute.xlu0 %1346
        %1348 = vrot.lane.b32.xlu0 %v1225, 8
        %v1349 = vpop.permute.xlu0 %1348
        %1350 = vrot.lane.b32.xlu0 %v1232, 8
        %v1351 = vpop.permute.xlu0 %1350
        %1352 = vrot.lane.b32.xlu0 %v1239, 8
        %v1353 = vpop.permute.xlu0 %1352
        %1354 = vrot.lane.b32.xlu0 %v1246, 8
        %v1355 = vpop.permute.xlu0 %1354
        %1356 = vrot.lane.b32.xlu0 %v1253, 8
        %v1357 = vpop.permute.xlu0 %1356
        %1358 = vrot.lane.b32.xlu0 %v1260, 8
        %v1359 = vpop.permute.xlu0 %1358
        %1360 = vrot.lane.b32.xlu0 %v1267, 8
        %v1361 = vpop.permute.xlu0 %1360
        %1362 = vrot.lane.b32.xlu0 %v1274, 8
        %v1363 = vpop.permute.xlu0 %1362
        %1364 = vrot.lane.b32.xlu0 %v1281, 8
        %v1365 = vpop.permute.xlu0 %1364
        %1366 = vrot.lane.b32.xlu0 %v1288, 8
        %v1367 = vpop.permute.xlu0 %1366
        %1368 = vrot.lane.b32.xlu0 %v1295, 8
        %v1369 = vpop.permute.xlu0 %1368
        %1370 = vrot.lane.b32.xlu0 %v1302, 8
        %v1371 = vpop.permute.xlu0 %1370
        %1372 = vrot.lane.b32.xlu0 %v1309, 8
        %v1373 = vpop.permute.xlu0 %1372
        %1374 = vrot.lane.b32.xlu0 %v1316, 8
        %v1375 = vpop.permute.xlu0 %1374
        %1376 = vrot.lane.b32.xlu0 %v1323, 8
        %v1377 = vpop.permute.xlu0 %1376
        %1378 = vrot.lane.b32.xlu0 %v1330, 8
        %v1379 = vpop.permute.xlu0 %1378
        %1380 = vrot.lane.b32.xlu0 %v1337, 8
        %v1381 = vpop.permute.xlu0 %1380
        %v1404 = vrot.slane 0, 1
        %v1405 = vrot.slane %v1152, 1
        %v1406 = vrot.slane %v1153, 1
        %v1407 = vrot.slane %v1154, 1
        %v1408 = vrot.slane %v1155, 1
        %v1409 = vrot.slane %v1156, 1
        %v1410 = vrot.slane %v1157, 1
        %v1411 = vrot.slane %v1158, 1
        %v1412 = vrot.slane %v1160, 1
        %v1413 = vrot.slane %v1161, 1
        %v1414 = vrot.slane %v1162, 1
        %v1415 = vrot.slane %v1163, 1
        %v1416 = vrot.slane %v1164, 1
        %v1417 = vrot.slane %v1165, 1
        %v1418 = vrot.slane %v1166, 1
        %v1419 = vrot.slane %v1168, 1
        %v1420 = vrot.slane %v1169, 1
        %v1421 = vrot.slane %v1170, 1
        %v1422 = vrot.slane %v1171, 1
        %v1423 = vrot.slane %v1172, 1
        %v1424 = vrot.slane %v1173, 1
        %v1425 = vrot.slane %v1174, 1
        %1426 = vrot.lane.b32.xlu0 %v1404, 16
        %v1427 = vpop.permute.xlu0 %1426
        %1428 = vrot.lane.b32.xlu0 %v1405, 16
        %v1429 = vpop.permute.xlu0 %1428
        %1430 = vrot.lane.b32.xlu0 %v1406, 16
        %v1431 = vpop.permute.xlu0 %1430
        %1432 = vrot.lane.b32.xlu0 %v1407, 16
        %v1433 = vpop.permute.xlu0 %1432
        %1434 = vrot.lane.b32.xlu0 %v1408, 16
        %v1435 = vpop.permute.xlu0 %1434
        %1436 = vrot.lane.b32.xlu0 %v1409, 16
        %v1437 = vpop.permute.xlu0 %1436
        %1438 = vrot.lane.b32.xlu0 %v1410, 16
        %v1439 = vpop.permute.xlu0 %1438
        %1440 = vrot.lane.b32.xlu0 %v1411, 16
        %v1441 = vpop.permute.xlu0 %1440
        %1442 = vrot.lane.b32.xlu0 %v1412, 16
        %v1443 = vpop.permute.xlu0 %1442
        %1444 = vrot.lane.b32.xlu0 %v1413, 16
        %v1445 = vpop.permute.xlu0 %1444
        %1446 = vrot.lane.b32.xlu0 %v1414, 16
        %v1447 = vpop.permute.xlu0 %1446
        %1448 = vrot.lane.b32.xlu0 %v1415, 16
        %v1449 = vpop.permute.xlu0 %1448
        %1450 = vrot.lane.b32.xlu0 %v1416, 16
        %v1451 = vpop.permute.xlu0 %1450
        %1452 = vrot.lane.b32.xlu0 %v1417, 16
        %v1453 = vpop.permute.xlu0 %1452
        %1454 = vrot.lane.b32.xlu0 %v1418, 16
        %v1455 = vpop.permute.xlu0 %1454
        %1456 = vrot.lane.b32.xlu0 %v1419, 16
        %v1457 = vpop.permute.xlu0 %1456
        %1458 = vrot.lane.b32.xlu0 %v1420, 16
        %v1459 = vpop.permute.xlu0 %1458
        %1460 = vrot.lane.b32.xlu0 %v1421, 16
        %v1461 = vpop.permute.xlu0 %1460
        %1462 = vrot.lane.b32.xlu0 %v1422, 16
        %v1463 = vpop.permute.xlu0 %1462
        %1464 = vrot.lane.b32.xlu0 %v1423, 16
        %v1465 = vpop.permute.xlu0 %1464
        %1466 = vrot.lane.b32.xlu0 %v1424, 16
        %v1467 = vpop.permute.xlu0 %1466
        %1468 = vrot.lane.b32.xlu0 %v1425, 16
        %v1469 = vpop.permute.xlu0 %1468
        %1473 = vrot.lane.b32.xlu0 0, 24
        %v1474 = vpop.permute.xlu0 %1473
        %1475 = vrot.lane.b32.xlu0 %v1152, 24
        %v1476 = vpop.permute.xlu0 %1475
        %1477 = vrot.lane.b32.xlu0 %v1153, 24
        %v1478 = vpop.permute.xlu0 %1477
        %1479 = vrot.lane.b32.xlu0 %v1154, 24
        %v1480 = vpop.permute.xlu0 %1479
        %1481 = vrot.lane.b32.xlu0 %v1155, 24
        %v1482 = vpop.permute.xlu0 %1481
        %1483 = vrot.lane.b32.xlu0 %v1156, 24
        %v1484 = vpop.permute.xlu0 %1483
        %1485 = vrot.lane.b32.xlu0 %v1157, 24
        %v1486 = vpop.permute.xlu0 %1485
        %1487 = vrot.lane.b32.xlu0 %v1158, 24
        %v1488 = vpop.permute.xlu0 %1487
        %1489 = vrot.lane.b32.xlu0 %v1159, 24
        %v1490 = vpop.permute.xlu0 %1489
        %1491 = vrot.lane.b32.xlu0 %v1160, 24
        %v1492 = vpop.permute.xlu0 %1491
        %1493 = vrot.lane.b32.xlu0 %v1161, 24
        %v1494 = vpop.permute.xlu0 %1493
        %1495 = vrot.lane.b32.xlu0 %v1162, 24
        %v1496 = vpop.permute.xlu0 %1495
        %1497 = vrot.lane.b32.xlu0 %v1163, 24
        %v1498 = vpop.permute.xlu0 %1497
        %1499 = vrot.lane.b32.xlu0 %v1164, 24
        %v1500 = vpop.permute.xlu0 %1499
        %1501 = vrot.lane.b32.xlu0 %v1165, 24
        %v1502 = vpop.permute.xlu0 %1501
        %1503 = vrot.lane.b32.xlu0 %v1166, 24
        %v1504 = vpop.permute.xlu0 %1503
        %1505 = vrot.lane.b32.xlu0 %v1167, 24
        %v1506 = vpop.permute.xlu0 %1505
        %1507 = vrot.lane.b32.xlu0 %v1168, 24
        %v1508 = vpop.permute.xlu0 %1507
        %1509 = vrot.lane.b32.xlu0 %v1169, 24
        %v1510 = vpop.permute.xlu0 %1509
        %1511 = vrot.lane.b32.xlu0 %v1170, 24
        %v1512 = vpop.permute.xlu0 %1511
        %1513 = vrot.lane.b32.xlu0 %v1171, 24
        %v1514 = vpop.permute.xlu0 %1513
        %1515 = vrot.lane.b32.xlu0 %v1172, 24
        %v1516 = vpop.permute.xlu0 %1515
        %1517 = vrot.lane.b32.xlu0 %v1173, 24
        %v1518 = vpop.permute.xlu0 %1517
        %1519 = vrot.lane.b32.xlu0 %v1174, 24
        %v1520 = vpop.permute.xlu0 %1519
        %1521 = vrot.lane.b32.xlu0 %v1175, 24
        %v1522 = vpop.permute.xlu0 %1521
        %v1524 = vshrl.u32 %v1159, 16
        %v1526 = vshll.u32 %v1159, 16
        %v1528 = vrot.slane %v1526, 1
        %v1529 = vor.u32 %v1524, %v1528
        %v1531 = vshrl.u32 %v1167, 16
        %v1533 = vshll.u32 %v1167, 16
        %v1535 = vrot.slane %v1533, 1
        %v1536 = vor.u32 %v1531, %v1535
        %v1538 = vshrl.u32 %v1175, 16
        %v1540 = vshll.u32 %v1175, 16
        %v1542 = vrot.slane %v1540, 1
        %v1543 = vor.u32 %v1538, %v1542
        %1544 = vrot.lane.b32.xlu0 %v1190, 32
        %v1545 = vpop.permute.xlu0 %1544
        %1546 = vrot.lane.b32.xlu0 %v1197, 32
        %v1547 = vpop.permute.xlu0 %1546
        %1548 = vrot.lane.b32.xlu0 %v1204, 32
        %v1549 = vpop.permute.xlu0 %1548
        %1550 = vrot.lane.b32.xlu0 %v1211, 32
        %v1551 = vpop.permute.xlu0 %1550
        %1552 = vrot.lane.b32.xlu0 %v1218, 32
        %v1553 = vpop.permute.xlu0 %1552
        %1554 = vrot.lane.b32.xlu0 %v1225, 32
        %v1555 = vpop.permute.xlu0 %1554
        %1556 = vrot.lane.b32.xlu0 %v1232, 32
        %v1557 = vpop.permute.xlu0 %1556
        %1558 = vrot.lane.b32.xlu0 %v1239, 32
        %v1559 = vpop.permute.xlu0 %1558
        %1560 = vrot.lane.b32.xlu0 %v1529, 32
        %v1561 = vpop.permute.xlu0 %1560
        %1562 = vrot.lane.b32.xlu0 %v1246, 32
        %v1563 = vpop.permute.xlu0 %1562
        %1564 = vrot.lane.b32.xlu0 %v1253, 32
        %v1565 = vpop.permute.xlu0 %1564
        %1566 = vrot.lane.b32.xlu0 %v1260, 32
        %v1567 = vpop.permute.xlu0 %1566
        %1568 = vrot.lane.b32.xlu0 %v1267, 32
        %v1569 = vpop.permute.xlu0 %1568
        %1570 = vrot.lane.b32.xlu0 %v1274, 32
        %v1571 = vpop.permute.xlu0 %1570
        %1572 = vrot.lane.b32.xlu0 %v1281, 32
        %v1573 = vpop.permute.xlu0 %1572
        %1574 = vrot.lane.b32.xlu0 %v1288, 32
        %v1575 = vpop.permute.xlu0 %1574
        %1576 = vrot.lane.b32.xlu0 %v1536, 32
        %v1577 = vpop.permute.xlu0 %1576
        %1578 = vrot.lane.b32.xlu0 %v1295, 32
        %v1579 = vpop.permute.xlu0 %1578
        %1580 = vrot.lane.b32.xlu0 %v1302, 32
        %v1581 = vpop.permute.xlu0 %1580
        %1582 = vrot.lane.b32.xlu0 %v1309, 32
        %v1583 = vpop.permute.xlu0 %1582
        %1584 = vrot.lane.b32.xlu0 %v1316, 32
        %v1585 = vpop.permute.xlu0 %1584
        %1586 = vrot.lane.b32.xlu0 %v1323, 32
        %v1587 = vpop.permute.xlu0 %1586
        %1588 = vrot.lane.b32.xlu0 %v1330, 32
        %v1589 = vpop.permute.xlu0 %1588
        %1590 = vrot.lane.b32.xlu0 %v1337, 32
        %v1591 = vpop.permute.xlu0 %1590
        %1592 = vrot.lane.b32.xlu0 %v1543, 32
        %v1593 = vpop.permute.xlu0 %1592
        %v1594 = vrot.slane %v1159, 1
        %v1595 = vrot.slane %v1167, 1
        %v1596 = vrot.slane %v1175, 1
        %1597 = vrot.lane.b32.xlu0 %v1404, 40
        %v1598 = vpop.permute.xlu0 %1597
        %1599 = vrot.lane.b32.xlu0 %v1405, 40
        %v1600 = vpop.permute.xlu0 %1599
        %1601 = vrot.lane.b32.xlu0 %v1406, 40
        %v1602 = vpop.permute.xlu0 %1601
        %1603 = vrot.lane.b32.xlu0 %v1407, 40
        %v1604 = vpop.permute.xlu0 %1603
        %1605 = vrot.lane.b32.xlu0 %v1408, 40
        %v1606 = vpop.permute.xlu0 %1605
        %1607 = vrot.lane.b32.xlu0 %v1409, 40
        %v1608 = vpop.permute.xlu0 %1607
        %1609 = vrot.lane.b32.xlu0 %v1410, 40
        %v1610 = vpop.permute.xlu0 %1609
        %1611 = vrot.lane.b32.xlu0 %v1411, 40
        %v1612 = vpop.permute.xlu0 %1611
        %1613 = vrot.lane.b32.xlu0 %v1594, 40
        %v1614 = vpop.permute.xlu0 %1613
        %1615 = vrot.lane.b32.xlu0 %v1412, 40
        %v1616 = vpop.permute.xlu0 %1615
        %1617 = vrot.lane.b32.xlu0 %v1413, 40
        %v1618 = vpop.permute.xlu0 %1617
        %1619 = vrot.lane.b32.xlu0 %v1414, 40
        %v1620 = vpop.permute.xlu0 %1619
        %1621 = vrot.lane.b32.xlu0 %v1415, 40
        %v1622 = vpop.permute.xlu0 %1621
        %1623 = vrot.lane.b32.xlu0 %v1416, 40
        %v1624 = vpop.permute.xlu0 %1623
        %1625 = vrot.lane.b32.xlu0 %v1417, 40
        %v1626 = vpop.permute.xlu0 %1625
        %1627 = vrot.lane.b32.xlu0 %v1418, 40
        %v1628 = vpop.permute.xlu0 %1627
        %1629 = vrot.lane.b32.xlu0 %v1595, 40
        %v1630 = vpop.permute.xlu0 %1629
        %1631 = vrot.lane.b32.xlu0 %v1419, 40
        %v1632 = vpop.permute.xlu0 %1631
        %1633 = vrot.lane.b32.xlu0 %v1420, 40
        %v1634 = vpop.permute.xlu0 %1633
        %1635 = vrot.lane.b32.xlu0 %v1421, 40
        %v1636 = vpop.permute.xlu0 %1635
        %1637 = vrot.lane.b32.xlu0 %v1422, 40
        %v1638 = vpop.permute.xlu0 %1637
        %1639 = vrot.lane.b32.xlu0 %v1423, 40
        %v1640 = vpop.permute.xlu0 %1639
        %1641 = vrot.lane.b32.xlu0 %v1424, 40
        %v1642 = vpop.permute.xlu0 %1641
        %1643 = vrot.lane.b32.xlu0 %v1425, 40
        %v1644 = vpop.permute.xlu0 %1643
        %1645 = vrot.lane.b32.xlu0 %v1596, 40
        %v1646 = vpop.permute.xlu0 %1645
        %1647 = vrot.lane.b32.xlu0 0, 48
        %v1648 = vpop.permute.xlu0 %1647
        %1649 = vrot.lane.b32.xlu0 %v1153, 48
        %v1650 = vpop.permute.xlu0 %1649
        %1651 = vrot.lane.b32.xlu0 %v1154, 48
        %v1652 = vpop.permute.xlu0 %1651
        %1653 = vrot.lane.b32.xlu0 %v1155, 48
        %v1654 = vpop.permute.xlu0 %1653
        %1655 = vrot.lane.b32.xlu0 %v1156, 48
        %v1656 = vpop.permute.xlu0 %1655
        %1657 = vrot.lane.b32.xlu0 %v1157, 48
        %v1658 = vpop.permute.xlu0 %1657
        %1659 = vrot.lane.b32.xlu0 %v1158, 48
        %v1660 = vpop.permute.xlu0 %1659
        %1661 = vrot.lane.b32.xlu0 %v1159, 48
        %v1662 = vpop.permute.xlu0 %1661
        %1663 = vrot.lane.b32.xlu0 %v1161, 48
        %v1664 = vpop.permute.xlu0 %1663
        %1665 = vrot.lane.b32.xlu0 %v1162, 48
        %v1666 = vpop.permute.xlu0 %1665
        %1667 = vrot.lane.b32.xlu0 %v1163, 48
        %v1668 = vpop.permute.xlu0 %1667
        %1669 = vrot.lane.b32.xlu0 %v1164, 48
        %v1670 = vpop.permute.xlu0 %1669
        %1671 = vrot.lane.b32.xlu0 %v1165, 48
        %v1672 = vpop.permute.xlu0 %1671
        %1673 = vrot.lane.b32.xlu0 %v1166, 48
        %v1674 = vpop.permute.xlu0 %1673
        %1675 = vrot.lane.b32.xlu0 %v1167, 48
        %v1676 = vpop.permute.xlu0 %1675
        %1677 = vrot.lane.b32.xlu0 %v1169, 48
        %v1678 = vpop.permute.xlu0 %1677
        %1679 = vrot.lane.b32.xlu0 %v1170, 48
        %v1680 = vpop.permute.xlu0 %1679
        %1681 = vrot.lane.b32.xlu0 %v1171, 48
        %v1682 = vpop.permute.xlu0 %1681
        %1683 = vrot.lane.b32.xlu0 %v1172, 48
        %v1684 = vpop.permute.xlu0 %1683
        %1685 = vrot.lane.b32.xlu0 %v1173, 48
        %v1686 = vpop.permute.xlu0 %1685
        %1687 = vrot.lane.b32.xlu0 %v1174, 48
        %v1688 = vpop.permute.xlu0 %1687
        %1689 = vrot.lane.b32.xlu0 %v1175, 48
        %v1690 = vpop.permute.xlu0 %1689
        %1691 = vrot.lane.b32.xlu0 %v1190, 56
        %v1692 = vpop.permute.xlu0 %1691
        %1693 = vrot.lane.b32.xlu0 %v1204, 56
        %v1694 = vpop.permute.xlu0 %1693
        %1695 = vrot.lane.b32.xlu0 %v1211, 56
        %v1696 = vpop.permute.xlu0 %1695
        %1697 = vrot.lane.b32.xlu0 %v1218, 56
        %v1698 = vpop.permute.xlu0 %1697
        %1699 = vrot.lane.b32.xlu0 %v1225, 56
        %v1700 = vpop.permute.xlu0 %1699
        %1701 = vrot.lane.b32.xlu0 %v1232, 56
        %v1702 = vpop.permute.xlu0 %1701
        %1703 = vrot.lane.b32.xlu0 %v1239, 56
        %v1704 = vpop.permute.xlu0 %1703
        %1705 = vrot.lane.b32.xlu0 %v1529, 56
        %v1706 = vpop.permute.xlu0 %1705
        %1707 = vrot.lane.b32.xlu0 %v1253, 56
        %v1708 = vpop.permute.xlu0 %1707
        %1709 = vrot.lane.b32.xlu0 %v1260, 56
        %v1710 = vpop.permute.xlu0 %1709
        %1711 = vrot.lane.b32.xlu0 %v1267, 56
        %v1712 = vpop.permute.xlu0 %1711
        %1713 = vrot.lane.b32.xlu0 %v1274, 56
        %v1714 = vpop.permute.xlu0 %1713
        %1715 = vrot.lane.b32.xlu0 %v1281, 56
        %v1716 = vpop.permute.xlu0 %1715
        %1717 = vrot.lane.b32.xlu0 %v1288, 56
        %v1718 = vpop.permute.xlu0 %1717
        %1719 = vrot.lane.b32.xlu0 %v1536, 56
        %v1720 = vpop.permute.xlu0 %1719
        %1721 = vrot.lane.b32.xlu0 %v1302, 56
        %v1722 = vpop.permute.xlu0 %1721
        %1723 = vrot.lane.b32.xlu0 %v1309, 56
        %v1724 = vpop.permute.xlu0 %1723
        %1725 = vrot.lane.b32.xlu0 %v1316, 56
        %v1726 = vpop.permute.xlu0 %1725
        %1727 = vrot.lane.b32.xlu0 %v1323, 56
        %v1728 = vpop.permute.xlu0 %1727
        %1729 = vrot.lane.b32.xlu0 %v1330, 56
        %v1730 = vpop.permute.xlu0 %1729
        %1731 = vrot.lane.b32.xlu0 %v1337, 56
        %v1732 = vpop.permute.xlu0 %1731
        %1733 = vrot.lane.b32.xlu0 %v1543, 56
        %v1734 = vpop.permute.xlu0 %1733
        %1735 = vrot.lane.b32.xlu0 %v1404, 64
        %v1736 = vpop.permute.xlu0 %1735
        %1737 = vrot.lane.b32.xlu0 %v1406, 64
        %v1738 = vpop.permute.xlu0 %1737
        %1739 = vrot.lane.b32.xlu0 %v1407, 64
        %v1740 = vpop.permute.xlu0 %1739
        %1741 = vrot.lane.b32.xlu0 %v1408, 64
        %v1742 = vpop.permute.xlu0 %1741
        %1743 = vrot.lane.b32.xlu0 %v1409, 64
        %v1744 = vpop.permute.xlu0 %1743
        %1745 = vrot.lane.b32.xlu0 %v1410, 64
        %v1746 = vpop.permute.xlu0 %1745
        %1747 = vrot.lane.b32.xlu0 %v1411, 64
        %v1748 = vpop.permute.xlu0 %1747
        %1749 = vrot.lane.b32.xlu0 %v1594, 64
        %v1750 = vpop.permute.xlu0 %1749
        %1751 = vrot.lane.b32.xlu0 %v1413, 64
        %v1752 = vpop.permute.xlu0 %1751
        %1753 = vrot.lane.b32.xlu0 %v1414, 64
        %v1754 = vpop.permute.xlu0 %1753
        %1755 = vrot.lane.b32.xlu0 %v1415, 64
        %v1756 = vpop.permute.xlu0 %1755
        %1757 = vrot.lane.b32.xlu0 %v1416, 64
        %v1758 = vpop.permute.xlu0 %1757
        %1759 = vrot.lane.b32.xlu0 %v1417, 64
        %v1760 = vpop.permute.xlu0 %1759
        %1761 = vrot.lane.b32.xlu0 %v1418, 64
        %v1762 = vpop.permute.xlu0 %1761
        %1763 = vrot.lane.b32.xlu0 %v1595, 64
        %v1764 = vpop.permute.xlu0 %1763
        %1765 = vrot.lane.b32.xlu0 %v1420, 64
        %v1766 = vpop.permute.xlu0 %1765
        %1767 = vrot.lane.b32.xlu0 %v1421, 64
        %v1768 = vpop.permute.xlu0 %1767
        %1769 = vrot.lane.b32.xlu0 %v1422, 64
        %v1770 = vpop.permute.xlu0 %1769
        %1771 = vrot.lane.b32.xlu0 %v1423, 64
        %v1772 = vpop.permute.xlu0 %1771
        %1773 = vrot.lane.b32.xlu0 %v1424, 64
        %v1774 = vpop.permute.xlu0 %1773
        %1775 = vrot.lane.b32.xlu0 %v1425, 64
        %v1776 = vpop.permute.xlu0 %1775
        %1777 = vrot.lane.b32.xlu0 %v1596, 64
        %v1778 = vpop.permute.xlu0 %1777
        %1786 = vrot.lane.b32.xlu0 0, 72
        %v1787 = vpop.permute.xlu0 %1786
        %1788 = vrot.lane.b32.xlu0 %v1152, 72
        %v1789 = vpop.permute.xlu0 %1788
        %1790 = vrot.lane.b32.xlu0 %v1153, 72
        %v1791 = vpop.permute.xlu0 %1790
        %1792 = vrot.lane.b32.xlu0 %v1154, 72
        %v1793 = vpop.permute.xlu0 %1792
        %1794 = vrot.lane.b32.xlu0 %v1155, 72
        %v1795 = vpop.permute.xlu0 %1794
        %1796 = vrot.lane.b32.xlu0 %v1156, 72
        %v1797 = vpop.permute.xlu0 %1796
        %1798 = vrot.lane.b32.xlu0 %v1157, 72
        %v1799 = vpop.permute.xlu0 %1798
        %1800 = vrot.lane.b32.xlu0 %v1158, 72
        %v1801 = vpop.permute.xlu0 %1800
        %1802 = vrot.lane.b32.xlu0 %v1160, 72
        %v1803 = vpop.permute.xlu0 %1802
        %1804 = vrot.lane.b32.xlu0 %v1161, 72
        %v1805 = vpop.permute.xlu0 %1804
        %1806 = vrot.lane.b32.xlu0 %v1162, 72
        %v1807 = vpop.permute.xlu0 %1806
        %1808 = vrot.lane.b32.xlu0 %v1163, 72
        %v1809 = vpop.permute.xlu0 %1808
        %1810 = vrot.lane.b32.xlu0 %v1164, 72
        %v1811 = vpop.permute.xlu0 %1810
        %1812 = vrot.lane.b32.xlu0 %v1165, 72
        %v1813 = vpop.permute.xlu0 %1812
        %1814 = vrot.lane.b32.xlu0 %v1166, 72
        %v1815 = vpop.permute.xlu0 %1814
        %1816 = vrot.lane.b32.xlu0 %v1168, 72
        %v1817 = vpop.permute.xlu0 %1816
        %1818 = vrot.lane.b32.xlu0 %v1169, 72
        %v1819 = vpop.permute.xlu0 %1818
        %1820 = vrot.lane.b32.xlu0 %v1170, 72
        %v1821 = vpop.permute.xlu0 %1820
        %1822 = vrot.lane.b32.xlu0 %v1171, 72
        %v1823 = vpop.permute.xlu0 %1822
        %1824 = vrot.lane.b32.xlu0 %v1172, 72
        %v1825 = vpop.permute.xlu0 %1824
        %1826 = vrot.lane.b32.xlu0 %v1173, 72
        %v1827 = vpop.permute.xlu0 %1826
        %1828 = vrot.lane.b32.xlu0 %v1174, 72
        %v1829 = vpop.permute.xlu0 %1828
        %1830 = vrot.lane.b32.xlu0 %v1176, 72
        %v1831 = vpop.permute.xlu0 %1830
        %1832 = vrot.lane.b32.xlu0 %v1177, 72
        %v1833 = vpop.permute.xlu0 %1832
        %1834 = vrot.lane.b32.xlu0 %v1178, 72
        %v1835 = vpop.permute.xlu0 %1834
        %1836 = vrot.lane.b32.xlu0 %v1179, 72
        %v1837 = vpop.permute.xlu0 %1836
        %1838 = vrot.lane.b32.xlu0 %v1180, 72
        %v1839 = vpop.permute.xlu0 %1838
        %1840 = vrot.lane.b32.xlu0 %v1181, 72
        %v1841 = vpop.permute.xlu0 %1840
        %1842 = vrot.lane.b32.xlu0 %v1182, 72
        %v1843 = vpop.permute.xlu0 %1842
        %v1845 = vshrl.u32 %v1176, 16
        %v1847 = vshll.u32 %v1176, 16
        %v1849 = vrot.slane %v1847, 1
        %v1850 = vor.u32 %v1845, %v1849
        %v1852 = vshrl.u32 %v1177, 16
        %v1854 = vshll.u32 %v1177, 16
        %v1856 = vrot.slane %v1854, 1
        %v1857 = vor.u32 %v1852, %v1856
        %v1859 = vshrl.u32 %v1178, 16
        %v1861 = vshll.u32 %v1178, 16
        %v1863 = vrot.slane %v1861, 1
        %v1864 = vor.u32 %v1859, %v1863
        %v1866 = vshrl.u32 %v1179, 16
        %v1868 = vshll.u32 %v1179, 16
        %v1870 = vrot.slane %v1868, 1
        %v1871 = vor.u32 %v1866, %v1870
        %v1873 = vshrl.u32 %v1180, 16
        %v1875 = vshll.u32 %v1180, 16
        %v1877 = vrot.slane %v1875, 1
        %v1878 = vor.u32 %v1873, %v1877
        %v1880 = vshrl.u32 %v1181, 16
        %v1882 = vshll.u32 %v1181, 16
        %v1884 = vrot.slane %v1882, 1
        %v1885 = vor.u32 %v1880, %v1884
        %v1887 = vshrl.u32 %v1182, 16
        %v1889 = vshll.u32 %v1182, 16
        %v1891 = vrot.slane %v1889, 1
        %v1892 = vor.u32 %v1887, %v1891
        %1893 = vrot.lane.b32.xlu0 %v1190, 80
        %v1894 = vpop.permute.xlu0 %1893
        %1895 = vrot.lane.b32.xlu0 %v1197, 80
        %v1896 = vpop.permute.xlu0 %1895
        %1897 = vrot.lane.b32.xlu0 %v1204, 80
        %v1898 = vpop.permute.xlu0 %1897
        %1899 = vrot.lane.b32.xlu0 %v1211, 80
        %v1900 = vpop.permute.xlu0 %1899
        %1901 = vrot.lane.b32.xlu0 %v1218, 80
        %v1902 = vpop.permute.xlu0 %1901
        %1903 = vrot.lane.b32.xlu0 %v1225, 80
        %v1904 = vpop.permute.xlu0 %1903
        %1905 = vrot.lane.b32.xlu0 %v1232, 80
        %v1906 = vpop.permute.xlu0 %1905
        %1907 = vrot.lane.b32.xlu0 %v1239, 80
        %v1908 = vpop.permute.xlu0 %1907
        %1909 = vrot.lane.b32.xlu0 %v1246, 80
        %v1910 = vpop.permute.xlu0 %1909
        %1911 = vrot.lane.b32.xlu0 %v1253, 80
        %v1912 = vpop.permute.xlu0 %1911
        %1913 = vrot.lane.b32.xlu0 %v1260, 80
        %v1914 = vpop.permute.xlu0 %1913
        %1915 = vrot.lane.b32.xlu0 %v1267, 80
        %v1916 = vpop.permute.xlu0 %1915
        %1917 = vrot.lane.b32.xlu0 %v1274, 80
        %v1918 = vpop.permute.xlu0 %1917
        %1919 = vrot.lane.b32.xlu0 %v1281, 80
        %v1920 = vpop.permute.xlu0 %1919
        %1921 = vrot.lane.b32.xlu0 %v1288, 80
        %v1922 = vpop.permute.xlu0 %1921
        %1923 = vrot.lane.b32.xlu0 %v1295, 80
        %v1924 = vpop.permute.xlu0 %1923
        %1925 = vrot.lane.b32.xlu0 %v1302, 80
        %v1926 = vpop.permute.xlu0 %1925
        %1927 = vrot.lane.b32.xlu0 %v1309, 80
        %v1928 = vpop.permute.xlu0 %1927
        %1929 = vrot.lane.b32.xlu0 %v1316, 80
        %v1930 = vpop.permute.xlu0 %1929
        %1931 = vrot.lane.b32.xlu0 %v1323, 80
        %v1932 = vpop.permute.xlu0 %1931
        %1933 = vrot.lane.b32.xlu0 %v1330, 80
        %v1934 = vpop.permute.xlu0 %1933
        %1935 = vrot.lane.b32.xlu0 %v1337, 80
        %v1936 = vpop.permute.xlu0 %1935
        %1937 = vrot.lane.b32.xlu0 %v1850, 80
        %v1938 = vpop.permute.xlu0 %1937
        %1939 = vrot.lane.b32.xlu0 %v1857, 80
        %v1940 = vpop.permute.xlu0 %1939
        %1941 = vrot.lane.b32.xlu0 %v1864, 80
        %v1942 = vpop.permute.xlu0 %1941
        %1943 = vrot.lane.b32.xlu0 %v1871, 80
        %v1944 = vpop.permute.xlu0 %1943
        %1945 = vrot.lane.b32.xlu0 %v1878, 80
        %v1946 = vpop.permute.xlu0 %1945
        %1947 = vrot.lane.b32.xlu0 %v1885, 80
        %v1948 = vpop.permute.xlu0 %1947
        %1949 = vrot.lane.b32.xlu0 %v1892, 80
        %v1950 = vpop.permute.xlu0 %1949
        %v1951 = vrot.slane %v1176, 1
        %v1952 = vrot.slane %v1177, 1
        %v1953 = vrot.slane %v1178, 1
        %v1954 = vrot.slane %v1179, 1
        %v1955 = vrot.slane %v1180, 1
        %v1956 = vrot.slane %v1181, 1
        %v1957 = vrot.slane %v1182, 1
        %1958 = vrot.lane.b32.xlu0 %v1404, 88
        %v1959 = vpop.permute.xlu0 %1958
        %1960 = vrot.lane.b32.xlu0 %v1405, 88
        %v1961 = vpop.permute.xlu0 %1960
        %1962 = vrot.lane.b32.xlu0 %v1406, 88
        %v1963 = vpop.permute.xlu0 %1962
        %1964 = vrot.lane.b32.xlu0 %v1407, 88
        %v1965 = vpop.permute.xlu0 %1964
        %1966 = vrot.lane.b32.xlu0 %v1408, 88
        %v1967 = vpop.permute.xlu0 %1966
        %1968 = vrot.lane.b32.xlu0 %v1409, 88
        %v1969 = vpop.permute.xlu0 %1968
        %1970 = vrot.lane.b32.xlu0 %v1410, 88
        %v1971 = vpop.permute.xlu0 %1970
        %1972 = vrot.lane.b32.xlu0 %v1411, 88
        %v1973 = vpop.permute.xlu0 %1972
        %1974 = vrot.lane.b32.xlu0 %v1412, 88
        %v1975 = vpop.permute.xlu0 %1974
        %1976 = vrot.lane.b32.xlu0 %v1413, 88
        %v1977 = vpop.permute.xlu0 %1976
        %1978 = vrot.lane.b32.xlu0 %v1414, 88
        %v1979 = vpop.permute.xlu0 %1978
        %1980 = vrot.lane.b32.xlu0 %v1415, 88
        %v1981 = vpop.permute.xlu0 %1980
        %1982 = vrot.lane.b32.xlu0 %v1416, 88
        %v1983 = vpop.permute.xlu0 %1982
        %1984 = vrot.lane.b32.xlu0 %v1417, 88
        %v1985 = vpop.permute.xlu0 %1984
        %1986 = vrot.lane.b32.xlu0 %v1418, 88
        %v1987 = vpop.permute.xlu0 %1986
        %1988 = vrot.lane.b32.xlu0 %v1419, 88
        %v1989 = vpop.permute.xlu0 %1988
        %1990 = vrot.lane.b32.xlu0 %v1420, 88
        %v1991 = vpop.permute.xlu0 %1990
        %1992 = vrot.lane.b32.xlu0 %v1421, 88
        %v1993 = vpop.permute.xlu0 %1992
        %1994 = vrot.lane.b32.xlu0 %v1422, 88
        %v1995 = vpop.permute.xlu0 %1994
        %1996 = vrot.lane.b32.xlu0 %v1423, 88
        %v1997 = vpop.permute.xlu0 %1996
        %1998 = vrot.lane.b32.xlu0 %v1424, 88
        %v1999 = vpop.permute.xlu0 %1998
        %2000 = vrot.lane.b32.xlu0 %v1425, 88
        %v2001 = vpop.permute.xlu0 %2000
        %2002 = vrot.lane.b32.xlu0 %v1951, 88
        %v2003 = vpop.permute.xlu0 %2002
        %2004 = vrot.lane.b32.xlu0 %v1952, 88
        %v2005 = vpop.permute.xlu0 %2004
        %2006 = vrot.lane.b32.xlu0 %v1953, 88
        %v2007 = vpop.permute.xlu0 %2006
        %2008 = vrot.lane.b32.xlu0 %v1954, 88
        %v2009 = vpop.permute.xlu0 %2008
        %2010 = vrot.lane.b32.xlu0 %v1955, 88
        %v2011 = vpop.permute.xlu0 %2010
        %2012 = vrot.lane.b32.xlu0 %v1956, 88
        %v2013 = vpop.permute.xlu0 %2012
        %2014 = vrot.lane.b32.xlu0 %v1957, 88
        %v2015 = vpop.permute.xlu0 %2014
        %2017 = vrot.lane.b32.xlu0 %v1152, 96
        %v2018 = vpop.permute.xlu0 %2017
        %2019 = vrot.lane.b32.xlu0 %v1153, 96
        %v2020 = vpop.permute.xlu0 %2019
        %2021 = vrot.lane.b32.xlu0 %v1154, 96
        %v2022 = vpop.permute.xlu0 %2021
        %2023 = vrot.lane.b32.xlu0 %v1155, 96
        %v2024 = vpop.permute.xlu0 %2023
        %2025 = vrot.lane.b32.xlu0 %v1156, 96
        %v2026 = vpop.permute.xlu0 %2025
        %2027 = vrot.lane.b32.xlu0 %v1157, 96
        %v2028 = vpop.permute.xlu0 %2027
        %2029 = vrot.lane.b32.xlu0 %v1158, 96
        %v2030 = vpop.permute.xlu0 %2029
        %2031 = vrot.lane.b32.xlu0 %v1159, 96
        %v2032 = vpop.permute.xlu0 %2031
        %2033 = vrot.lane.b32.xlu0 %v1160, 96
        %v2034 = vpop.permute.xlu0 %2033
        %2035 = vrot.lane.b32.xlu0 %v1161, 96
        %v2036 = vpop.permute.xlu0 %2035
        %2037 = vrot.lane.b32.xlu0 %v1162, 96
        %v2038 = vpop.permute.xlu0 %2037
        %2039 = vrot.lane.b32.xlu0 %v1163, 96
        %v2040 = vpop.permute.xlu0 %2039
        %2041 = vrot.lane.b32.xlu0 %v1164, 96
        %v2042 = vpop.permute.xlu0 %2041
        %2043 = vrot.lane.b32.xlu0 %v1165, 96
        %v2044 = vpop.permute.xlu0 %2043
        %2045 = vrot.lane.b32.xlu0 %v1166, 96
        %v2046 = vpop.permute.xlu0 %2045
        %2047 = vrot.lane.b32.xlu0 %v1167, 96
        %v2048 = vpop.permute.xlu0 %2047
        %2049 = vrot.lane.b32.xlu0 %v1168, 96
        %v2050 = vpop.permute.xlu0 %2049
        %2051 = vrot.lane.b32.xlu0 %v1169, 96
        %v2052 = vpop.permute.xlu0 %2051
        %2053 = vrot.lane.b32.xlu0 %v1170, 96
        %v2054 = vpop.permute.xlu0 %2053
        %2055 = vrot.lane.b32.xlu0 %v1171, 96
        %v2056 = vpop.permute.xlu0 %2055
        %2057 = vrot.lane.b32.xlu0 %v1172, 96
        %v2058 = vpop.permute.xlu0 %2057
        %2059 = vrot.lane.b32.xlu0 %v1173, 96
        %v2060 = vpop.permute.xlu0 %2059
        %2061 = vrot.lane.b32.xlu0 %v1174, 96
        %v2062 = vpop.permute.xlu0 %2061
        %2063 = vrot.lane.b32.xlu0 %v1175, 96
        %v2064 = vpop.permute.xlu0 %2063
        %2065 = vrot.lane.b32.xlu0 %v1176, 96
        %v2066 = vpop.permute.xlu0 %2065
        %2067 = vrot.lane.b32.xlu0 %v1177, 96
        %v2068 = vpop.permute.xlu0 %2067
        %2069 = vrot.lane.b32.xlu0 %v1178, 96
        %v2070 = vpop.permute.xlu0 %2069
        %2071 = vrot.lane.b32.xlu0 %v1179, 96
        %v2072 = vpop.permute.xlu0 %2071
        %2073 = vrot.lane.b32.xlu0 %v1180, 96
        %v2074 = vpop.permute.xlu0 %2073
        %2075 = vrot.lane.b32.xlu0 %v1181, 96
        %v2076 = vpop.permute.xlu0 %2075
        %2077 = vrot.lane.b32.xlu0 %v1182, 96
        %v2078 = vpop.permute.xlu0 %2077
        %2079 = vrot.lane.b32.xlu0 %v1183, 96
        %v2080 = vpop.permute.xlu0 %2079
        %v2082 = vshrl.u32 %v1183, 16
        %v2084 = vshll.u32 %v1183, 16
        %v2086 = vrot.slane %v2084, 1
        %v2087 = vor.u32 %v2082, %v2086
        %2088 = vrot.lane.b32.xlu0 %v1197, 104
        %v2089 = vpop.permute.xlu0 %2088
        %2090 = vrot.lane.b32.xlu0 %v1204, 104
        %v2091 = vpop.permute.xlu0 %2090
        %2092 = vrot.lane.b32.xlu0 %v1211, 104
        %v2093 = vpop.permute.xlu0 %2092
        %2094 = vrot.lane.b32.xlu0 %v1218, 104
        %v2095 = vpop.permute.xlu0 %2094
        %2096 = vrot.lane.b32.xlu0 %v1225, 104
        %v2097 = vpop.permute.xlu0 %2096
        %2098 = vrot.lane.b32.xlu0 %v1232, 104
        %v2099 = vpop.permute.xlu0 %2098
        %2100 = vrot.lane.b32.xlu0 %v1239, 104
        %v2101 = vpop.permute.xlu0 %2100
        %2102 = vrot.lane.b32.xlu0 %v1529, 104
        %v2103 = vpop.permute.xlu0 %2102
        %2104 = vrot.lane.b32.xlu0 %v1246, 104
        %v2105 = vpop.permute.xlu0 %2104
        %2106 = vrot.lane.b32.xlu0 %v1253, 104
        %v2107 = vpop.permute.xlu0 %2106
        %2108 = vrot.lane.b32.xlu0 %v1260, 104
        %v2109 = vpop.permute.xlu0 %2108
        %2110 = vrot.lane.b32.xlu0 %v1267, 104
        %v2111 = vpop.permute.xlu0 %2110
        %2112 = vrot.lane.b32.xlu0 %v1274, 104
        %v2113 = vpop.permute.xlu0 %2112
        %2114 = vrot.lane.b32.xlu0 %v1281, 104
        %v2115 = vpop.permute.xlu0 %2114
        %2116 = vrot.lane.b32.xlu0 %v1288, 104
        %v2117 = vpop.permute.xlu0 %2116
        %2118 = vrot.lane.b32.xlu0 %v1536, 104
        %v2119 = vpop.permute.xlu0 %2118
        %2120 = vrot.lane.b32.xlu0 %v1295, 104
        %v2121 = vpop.permute.xlu0 %2120
        %2122 = vrot.lane.b32.xlu0 %v1302, 104
        %v2123 = vpop.permute.xlu0 %2122
        %2124 = vrot.lane.b32.xlu0 %v1309, 104
        %v2125 = vpop.permute.xlu0 %2124
        %2126 = vrot.lane.b32.xlu0 %v1316, 104
        %v2127 = vpop.permute.xlu0 %2126
        %2128 = vrot.lane.b32.xlu0 %v1323, 104
        %v2129 = vpop.permute.xlu0 %2128
        %2130 = vrot.lane.b32.xlu0 %v1330, 104
        %v2131 = vpop.permute.xlu0 %2130
        %2132 = vrot.lane.b32.xlu0 %v1337, 104
        %v2133 = vpop.permute.xlu0 %2132
        %2134 = vrot.lane.b32.xlu0 %v1543, 104
        %v2135 = vpop.permute.xlu0 %2134
        %2136 = vrot.lane.b32.xlu0 %v1850, 104
        %v2137 = vpop.permute.xlu0 %2136
        %2138 = vrot.lane.b32.xlu0 %v1857, 104
        %v2139 = vpop.permute.xlu0 %2138
        %2140 = vrot.lane.b32.xlu0 %v1864, 104
        %v2141 = vpop.permute.xlu0 %2140
        %2142 = vrot.lane.b32.xlu0 %v1871, 104
        %v2143 = vpop.permute.xlu0 %2142
        %2144 = vrot.lane.b32.xlu0 %v1878, 104
        %v2145 = vpop.permute.xlu0 %2144
        %2146 = vrot.lane.b32.xlu0 %v1885, 104
        %v2147 = vpop.permute.xlu0 %2146
        %2148 = vrot.lane.b32.xlu0 %v1892, 104
        %v2149 = vpop.permute.xlu0 %2148
        %2150 = vrot.lane.b32.xlu0 %v2087, 104
        %v2151 = vpop.permute.xlu0 %2150
        %v2152 = vrot.slane %v1183, 1
        %2153 = vrot.lane.b32.xlu0 %v1405, 112
        %v2154 = vpop.permute.xlu0 %2153
        %2155 = vrot.lane.b32.xlu0 %v1406, 112
        %v2156 = vpop.permute.xlu0 %2155
        %2157 = vrot.lane.b32.xlu0 %v1407, 112
        %v2158 = vpop.permute.xlu0 %2157
        %2159 = vrot.lane.b32.xlu0 %v1408, 112
        %v2160 = vpop.permute.xlu0 %2159
        %2161 = vrot.lane.b32.xlu0 %v1409, 112
        %v2162 = vpop.permute.xlu0 %2161
        %2163 = vrot.lane.b32.xlu0 %v1410, 112
        %v2164 = vpop.permute.xlu0 %2163
        %2165 = vrot.lane.b32.xlu0 %v1411, 112
        %v2166 = vpop.permute.xlu0 %2165
        %2167 = vrot.lane.b32.xlu0 %v1594, 112
        %v2168 = vpop.permute.xlu0 %2167
        %2169 = vrot.lane.b32.xlu0 %v1412, 112
        %v2170 = vpop.permute.xlu0 %2169
        %2171 = vrot.lane.b32.xlu0 %v1413, 112
        %v2172 = vpop.permute.xlu0 %2171
        %2173 = vrot.lane.b32.xlu0 %v1414, 112
        %v2174 = vpop.permute.xlu0 %2173
        %2175 = vrot.lane.b32.xlu0 %v1415, 112
        %v2176 = vpop.permute.xlu0 %2175
        %2177 = vrot.lane.b32.xlu0 %v1416, 112
        %v2178 = vpop.permute.xlu0 %2177
        %2179 = vrot.lane.b32.xlu0 %v1417, 112
        %v2180 = vpop.permute.xlu0 %2179
        %2181 = vrot.lane.b32.xlu0 %v1418, 112
        %v2182 = vpop.permute.xlu0 %2181
        %2183 = vrot.lane.b32.xlu0 %v1595, 112
        %v2184 = vpop.permute.xlu0 %2183
        %2185 = vrot.lane.b32.xlu0 %v1419, 112
        %v2186 = vpop.permute.xlu0 %2185
        %2187 = vrot.lane.b32.xlu0 %v1420, 112
        %v2188 = vpop.permute.xlu0 %2187
        %2189 = vrot.lane.b32.xlu0 %v1421, 112
        %v2190 = vpop.permute.xlu0 %2189
        %2191 = vrot.lane.b32.xlu0 %v1422, 112
        %v2192 = vpop.permute.xlu0 %2191
        %2193 = vrot.lane.b32.xlu0 %v1423, 112
        %v2194 = vpop.permute.xlu0 %2193
        %2195 = vrot.lane.b32.xlu0 %v1424, 112
        %v2196 = vpop.permute.xlu0 %2195
        %2197 = vrot.lane.b32.xlu0 %v1425, 112
        %v2198 = vpop.permute.xlu0 %2197
        %2199 = vrot.lane.b32.xlu0 %v1596, 112
        %v2200 = vpop.permute.xlu0 %2199
        %2201 = vrot.lane.b32.xlu0 %v1951, 112
        %v2202 = vpop.permute.xlu0 %2201
        %2203 = vrot.lane.b32.xlu0 %v1952, 112
        %v2204 = vpop.permute.xlu0 %2203
        %2205 = vrot.lane.b32.xlu0 %v1953, 112
        %v2206 = vpop.permute.xlu0 %2205
        %2207 = vrot.lane.b32.xlu0 %v1954, 112
        %v2208 = vpop.permute.xlu0 %2207
        %2209 = vrot.lane.b32.xlu0 %v1955, 112
        %v2210 = vpop.permute.xlu0 %2209
        %2211 = vrot.lane.b32.xlu0 %v1956, 112
        %v2212 = vpop.permute.xlu0 %2211
        %2213 = vrot.lane.b32.xlu0 %v1957, 112
        %v2214 = vpop.permute.xlu0 %2213
        %2215 = vrot.lane.b32.xlu0 %v2152, 112
        %v2216 = vpop.permute.xlu0 %2215
        %2217 = vrot.lane.b32.xlu0 %v1153, 120
        %v2218 = vpop.permute.xlu0 %2217
        %2219 = vrot.lane.b32.xlu0 %v1154, 120
        %v2220 = vpop.permute.xlu0 %2219
        %2221 = vrot.lane.b32.xlu0 %v1155, 120
        %v2222 = vpop.permute.xlu0 %2221
        %2223 = vrot.lane.b32.xlu0 %v1156, 120
        %v2224 = vpop.permute.xlu0 %2223
        %2225 = vrot.lane.b32.xlu0 %v1157, 120
        %v2226 = vpop.permute.xlu0 %2225
        %2227 = vrot.lane.b32.xlu0 %v1158, 120
        %v2228 = vpop.permute.xlu0 %2227
        %2229 = vrot.lane.b32.xlu0 %v1159, 120
        %v2230 = vpop.permute.xlu0 %2229
        %2231 = vrot.lane.b32.xlu0 0, 120
        %v2232 = vpop.permute.xlu0 %2231
        %2233 = vrot.lane.b32.xlu0 %v1161, 120
        %v2234 = vpop.permute.xlu0 %2233
        %2235 = vrot.lane.b32.xlu0 %v1162, 120
        %v2236 = vpop.permute.xlu0 %2235
        %2237 = vrot.lane.b32.xlu0 %v1163, 120
        %v2238 = vpop.permute.xlu0 %2237
        %2239 = vrot.lane.b32.xlu0 %v1164, 120
        %v2240 = vpop.permute.xlu0 %2239
        %2241 = vrot.lane.b32.xlu0 %v1165, 120
        %v2242 = vpop.permute.xlu0 %2241
        %2243 = vrot.lane.b32.xlu0 %v1166, 120
        %v2244 = vpop.permute.xlu0 %2243
        %2245 = vrot.lane.b32.xlu0 %v1167, 120
        %v2246 = vpop.permute.xlu0 %2245
        %2247 = vrot.lane.b32.xlu0 %v1169, 120
        %v2248 = vpop.permute.xlu0 %2247
        %2249 = vrot.lane.b32.xlu0 %v1170, 120
        %v2250 = vpop.permute.xlu0 %2249
        %2251 = vrot.lane.b32.xlu0 %v1171, 120
        %v2252 = vpop.permute.xlu0 %2251
        %2253 = vrot.lane.b32.xlu0 %v1172, 120
        %v2254 = vpop.permute.xlu0 %2253
        %2255 = vrot.lane.b32.xlu0 %v1173, 120
        %v2256 = vpop.permute.xlu0 %2255
        %2257 = vrot.lane.b32.xlu0 %v1174, 120
        %v2258 = vpop.permute.xlu0 %2257
        %2259 = vrot.lane.b32.xlu0 %v1175, 120
        %v2260 = vpop.permute.xlu0 %2259
        %2261 = vrot.lane.b32.xlu0 %v1177, 120
        %v2262 = vpop.permute.xlu0 %2261
        %2263 = vrot.lane.b32.xlu0 %v1178, 120
        %v2264 = vpop.permute.xlu0 %2263
        %2265 = vrot.lane.b32.xlu0 %v1179, 120
        %v2266 = vpop.permute.xlu0 %2265
        %2267 = vrot.lane.b32.xlu0 %v1180, 120
        %v2268 = vpop.permute.xlu0 %2267
        %2269 = vrot.lane.b32.xlu0 %v1181, 120
        %v2270 = vpop.permute.xlu0 %2269
        %2271 = vrot.lane.b32.xlu0 %v1182, 120
        %v2272 = vpop.permute.xlu0 %2271
        %2273 = vrot.lane.b32.xlu0 %v1183, 120
        %v2274 = vpop.permute.xlu0 %2273
        %vm2275 = vcmask 64512
        %v2277 = vsel %vm2275, 0, %v1339
        %v2279 = vsel %vm2275, %v1152, %v1341
        %v2281 = vsel %vm2275, %v1153, %v1343
        %v2283 = vsel %vm2275, %v1154, %v1345
        %v2285 = vsel %vm2275, %v1155, %v1347
        %v2287 = vsel %vm2275, %v1156, %v1349
        %v2289 = vsel %vm2275, %v1157, %v1351
        %v2291 = vsel %vm2275, %v1158, %v1353
        %v2293 = vsel %vm2275, %v1160, %v1355
        %v2295 = vsel %vm2275, %v1161, %v1357
        %v2297 = vsel %vm2275, %v1162, %v1359
        %v2299 = vsel %vm2275, %v1163, %v1361
        %v2301 = vsel %vm2275, %v1164, %v1363
        %v2303 = vsel %vm2275, %v1165, %v1365
        %v2305 = vsel %vm2275, %v1166, %v1367
        %v2307 = vsel %vm2275, %v1168, %v1369
        %v2309 = vsel %vm2275, %v1169, %v1371
        %v2311 = vsel %vm2275, %v1170, %v1373
        %v2313 = vsel %vm2275, %v1171, %v1375
        %v2315 = vsel %vm2275, %v1172, %v1377
        %v2317 = vsel %vm2275, %v1173, %v1379
        %v2319 = vsel %vm2275, %v1174, %v1381
        %vm2320 = vcmask 130048
        %v2322 = vsel %vm2320, %v2277, %v1427
        %v2324 = vsel %vm2320, %v2279, %v1429
        %v2326 = vsel %vm2320, %v2281, %v1431
        %v2328 = vsel %vm2320, %v2283, %v1433
        %v2330 = vsel %vm2320, %v2285, %v1435
        %v2332 = vsel %vm2320, %v2287, %v1437
        %v2334 = vsel %vm2320, %v2289, %v1439
        %v2336 = vsel %vm2320, %v2291, %v1441
        %v2338 = vsel %vm2320, %v2293, %v1443
        %v2340 = vsel %vm2320, %v2295, %v1445
        %v2342 = vsel %vm2320, %v2297, %v1447
        %v2344 = vsel %vm2320, %v2299, %v1449
        %v2346 = vsel %vm2320, %v2301, %v1451
        %v2348 = vsel %vm2320, %v2303, %v1453
        %v2350 = vsel %vm2320, %v2305, %v1455
        %v2352 = vsel %vm2320, %v2307, %v1457
        %v2354 = vsel %vm2320, %v2309, %v1459
        %v2356 = vsel %vm2320, %v2311, %v1461
        %v2358 = vsel %vm2320, %v2313, %v1463
        %v2360 = vsel %vm2320, %v2315, %v1465
        %v2362 = vsel %vm2320, %v2317, %v1467
        %v2364 = vsel %vm2320, %v2319, %v1469
        %vm2365 = vcmask 195584
        %v2367 = vsel %vm2365, %v2322, %v1474
        %v2369 = vsel %vm2365, %v2322, %v1476
        %v2371 = vsel %vm2365, %v2324, %v1478
        %v2373 = vsel %vm2365, %v2326, %v1480
        %v2375 = vsel %vm2365, %v2328, %v1482
        %v2377 = vsel %vm2365, %v2330, %v1484
        %v2379 = vsel %vm2365, %v2332, %v1486
        %v2381 = vsel %vm2365, %v2334, %v1488
        %v2383 = vsel %vm2365, %v2336, %v1490
        %v2385 = vsel %vm2365, %v2322, %v1492
        %v2387 = vsel %vm2365, %v2338, %v1494
        %v2389 = vsel %vm2365, %v2340, %v1496
        %v2391 = vsel %vm2365, %v2342, %v1498
        %v2393 = vsel %vm2365, %v2344, %v1500
        %v2395 = vsel %vm2365, %v2346, %v1502
        %v2397 = vsel %vm2365, %v2348, %v1504
        %v2399 = vsel %vm2365, %v2350, %v1506
        %v2401 = vsel %vm2365, %v2322, %v1508
        %v2403 = vsel %vm2365, %v2352, %v1510
        %v2405 = vsel %vm2365, %v2354, %v1512
        %v2407 = vsel %vm2365, %v2356, %v1514
        %v2409 = vsel %vm2365, %v2358, %v1516
        %v2411 = vsel %vm2365, %v2360, %v1518
        %v2413 = vsel %vm2365, %v2362, %v1520
        %v2415 = vsel %vm2365, %v2364, %v1522
        %vm2416 = vcmask 261120
        %v2418 = vsel %vm2416, %v2367, %v1545
        %v2420 = vsel %vm2416, %v2369, %v1547
        %v2422 = vsel %vm2416, %v2371, %v1549
        %v2424 = vsel %vm2416, %v2373, %v1551
        %v2426 = vsel %vm2416, %v2375, %v1553
        %v2428 = vsel %vm2416, %v2377, %v1555
        %v2430 = vsel %vm2416, %v2379, %v1557
        %v2432 = vsel %vm2416, %v2381, %v1559
        %v2434 = vsel %vm2416, %v2383, %v1561
        %v2436 = vsel %vm2416, %v2385, %v1563
        %v2438 = vsel %vm2416, %v2387, %v1565
        %v2440 = vsel %vm2416, %v2389, %v1567
        %v2442 = vsel %vm2416, %v2391, %v1569
        %v2444 = vsel %vm2416, %v2393, %v1571
        %v2446 = vsel %vm2416, %v2395, %v1573
        %v2448 = vsel %vm2416, %v2397, %v1575
        %v2450 = vsel %vm2416, %v2399, %v1577
        %v2452 = vsel %vm2416, %v2401, %v1579
        %v2454 = vsel %vm2416, %v2403, %v1581
        %v2456 = vsel %vm2416, %v2405, %v1583
        %v2458 = vsel %vm2416, %v2407, %v1585
        %v2460 = vsel %vm2416, %v2409, %v1587
        %v2462 = vsel %vm2416, %v2411, %v1589
        %v2464 = vsel %vm2416, %v2413, %v1591
        %v2466 = vsel %vm2416, %v2415, %v1593
        %vm2467 = vcmask 326656
        %v2469 = vsel %vm2467, %v2418, %v1598
        %v2471 = vsel %vm2467, %v2420, %v1600
        %v2473 = vsel %vm2467, %v2422, %v1602
        %v2475 = vsel %vm2467, %v2424, %v1604
        %v2477 = vsel %vm2467, %v2426, %v1606
        %v2479 = vsel %vm2467, %v2428, %v1608
        %v2481 = vsel %vm2467, %v2430, %v1610
        %v2483 = vsel %vm2467, %v2432, %v1612
        %v2485 = vsel %vm2467, %v2434, %v1614
        %v2487 = vsel %vm2467, %v2436, %v1616
        %v2489 = vsel %vm2467, %v2438, %v1618
        %v2491 = vsel %vm2467, %v2440, %v1620
        %v2493 = vsel %vm2467, %v2442, %v1622
        %v2495 = vsel %vm2467, %v2444, %v1624
        %v2497 = vsel %vm2467, %v2446, %v1626
        %v2499 = vsel %vm2467, %v2448, %v1628
        %v2501 = vsel %vm2467, %v2450, %v1630
        %v2503 = vsel %vm2467, %v2452, %v1632
        %v2505 = vsel %vm2467, %v2454, %v1634
        %v2507 = vsel %vm2467, %v2456, %v1636
        %v2509 = vsel %vm2467, %v2458, %v1638
        %v2511 = vsel %vm2467, %v2460, %v1640
        %v2513 = vsel %vm2467, %v2462, %v1642
        %v2515 = vsel %vm2467, %v2464, %v1644
        %v2517 = vsel %vm2467, %v2466, %v1646
        %vm2518 = vcmask 392192
        %v2520 = vsel %vm2518, %v2469, %v1648
        %v2522 = vsel %vm2518, %v2471, %v1650
        %v2524 = vsel %vm2518, %v2473, %v1652
        %v2526 = vsel %vm2518, %v2475, %v1654
        %v2528 = vsel %vm2518, %v2477, %v1656
        %v2530 = vsel %vm2518, %v2479, %v1658
        %v2532 = vsel %vm2518, %v2481, %v1660
        %v2534 = vsel %vm2518, %v2483, %v1662
        %v2535 = vsel %vm2518, %v2485, %v1648
        %v2537 = vsel %vm2518, %v2487, %v1664
        %v2539 = vsel %vm2518, %v2489, %v1666
        %v2541 = vsel %vm2518, %v2491, %v1668
        %v2543 = vsel %vm2518, %v2493, %v1670
        %v2545 = vsel %vm2518, %v2495, %v1672
        %v2547 = vsel %vm2518, %v2497, %v1674
        %v2549 = vsel %vm2518, %v2499, %v1676
        %v2550 = vsel %vm2518, %v2501, %v1648
        %v2552 = vsel %vm2518, %v2503, %v1678
        %v2554 = vsel %vm2518, %v2505, %v1680
        %v2556 = vsel %vm2518, %v2507, %v1682
        %v2558 = vsel %vm2518, %v2509, %v1684
        %v2560 = vsel %vm2518, %v2511, %v1686
        %v2562 = vsel %vm2518, %v2513, %v1688
        %v2564 = vsel %vm2518, %v2515, %v1690
        %v2565 = vsel %vm2518, %v2517, %v1648
        %vm2566 = vcmask 457728
        %v2568 = vsel %vm2566, %v2520, %v1692
        %v2570 = vsel %vm2566, %v2522, %v1694
        %v2572 = vsel %vm2566, %v2524, %v1696
        %v2574 = vsel %vm2566, %v2526, %v1698
        %v2576 = vsel %vm2566, %v2528, %v1700
        %v2578 = vsel %vm2566, %v2530, %v1702
        %v2580 = vsel %vm2566, %v2532, %v1704
        %v2582 = vsel %vm2566, %v2534, %v1706
        %v2583 = vsel %vm2566, %v2535, %v1692
        %v2585 = vsel %vm2566, %v2537, %v1708
        %v2587 = vsel %vm2566, %v2539, %v1710
        %v2589 = vsel %vm2566, %v2541, %v1712
        %v2591 = vsel %vm2566, %v2543, %v1714
        %v2593 = vsel %vm2566, %v2545, %v1716
        %v2595 = vsel %vm2566, %v2547, %v1718
        %v2597 = vsel %vm2566, %v2549, %v1720
        %v2598 = vsel %vm2566, %v2550, %v1692
        %v2600 = vsel %vm2566, %v2552, %v1722
        %v2602 = vsel %vm2566, %v2554, %v1724
        %v2604 = vsel %vm2566, %v2556, %v1726
        %v2606 = vsel %vm2566, %v2558, %v1728
        %v2608 = vsel %vm2566, %v2560, %v1730
        %v2610 = vsel %vm2566, %v2562, %v1732
        %v2612 = vsel %vm2566, %v2564, %v1734
        %v2613 = vsel %vm2566, %v2565, %v1692
        %vm2614 = vcmask 523264
        %v2616 = vsel %vm2614, %v2568, %v1736
        %v2618 = vsel %vm2614, %v2570, %v1738
        %v2620 = vsel %vm2614, %v2572, %v1740
        %v2622 = vsel %vm2614, %v2574, %v1742
        %v2624 = vsel %vm2614, %v2576, %v1744
        %v2626 = vsel %vm2614, %v2578, %v1746
        %v2628 = vsel %vm2614, %v2580, %v1748
        %v2630 = vsel %vm2614, %v2582, %v1750
        %v2631 = vsel %vm2614, %v2583, %v1736
        %v2633 = vsel %vm2614, %v2585, %v1752
        %v2635 = vsel %vm2614, %v2587, %v1754
        %v2637 = vsel %vm2614, %v2589, %v1756
        %v2639 = vsel %vm2614, %v2591, %v1758
        %v2641 = vsel %vm2614, %v2593, %v1760
        %v2643 = vsel %vm2614, %v2595, %v1762
        %v2645 = vsel %vm2614, %v2597, %v1764
        %v2646 = vsel %vm2614, %v2598, %v1736
        %v2648 = vsel %vm2614, %v2600, %v1766
        %v2650 = vsel %vm2614, %v2602, %v1768
        %v2652 = vsel %vm2614, %v2604, %v1770
        %v2654 = vsel %vm2614, %v2606, %v1772
        %v2656 = vsel %vm2614, %v2608, %v1774
        %v2658 = vsel %vm2614, %v2610, %v1776
        %v2660 = vsel %vm2614, %v2612, %v1778
        %v2661 = vsel %vm2614, %v2613, %v1736
        %vm2662 = vcmask 588800
        %v2664 = vsel %vm2662, %v2616, %v1787
        %v2666 = vsel %vm2662, %v2616, %v1789
        %v2668 = vsel %vm2662, %v2616, %v1791
        %v2670 = vsel %vm2662, %v2616, %v1793
        %v2672 = vsel %vm2662, %v2616, %v1795
        %v2674 = vsel %vm2662, %v2616, %v1797
        %v2676 = vsel %vm2662, %v2616, %v1799
        %v2678 = vsel %vm2662, %v2616, %v1801
        %v2679 = vsel %vm2662, %v2618, %v1787
        %v2681 = vsel %vm2662, %v2620, %v1803
        %v2683 = vsel %vm2662, %v2622, %v1805
        %v2685 = vsel %vm2662, %v2624, %v1807
        %v2687 = vsel %vm2662, %v2626, %v1809
        %v2689 = vsel %vm2662, %v2628, %v1811
        %v2691 = vsel %vm2662, %v2630, %v1813
        %v2693 = vsel %vm2662, %v2631, %v1815
        %v2694 = vsel %vm2662, %v2633, %v1787
        %v2696 = vsel %vm2662, %v2635, %v1817
        %v2698 = vsel %vm2662, %v2637, %v1819
        %v2700 = vsel %vm2662, %v2639, %v1821
        %v2702 = vsel %vm2662, %v2641, %v1823
        %v2704 = vsel %vm2662, %v2643, %v1825
        %v2706 = vsel %vm2662, %v2645, %v1827
        %v2708 = vsel %vm2662, %v2646, %v1829
        %v2709 = vsel %vm2662, %v2648, %v1787
        %v2711 = vsel %vm2662, %v2650, %v1831
        %v2713 = vsel %vm2662, %v2652, %v1833
        %v2715 = vsel %vm2662, %v2654, %v1835
        %v2717 = vsel %vm2662, %v2656, %v1837
        %v2719 = vsel %vm2662, %v2658, %v1839
        %v2721 = vsel %vm2662, %v2660, %v1841
        %v2723 = vsel %vm2662, %v2661, %v1843
        %vm2724 = vcmask 654336
        %v2726 = vsel %vm2724, %v2664, %v1894
        %v2728 = vsel %vm2724, %v2666, %v1896
        %v2730 = vsel %vm2724, %v2668, %v1898
        %v2732 = vsel %vm2724, %v2670, %v1900
        %v2734 = vsel %vm2724, %v2672, %v1902
        %v2736 = vsel %vm2724, %v2674, %v1904
        %v2738 = vsel %vm2724, %v2676, %v1906
        %v2740 = vsel %vm2724, %v2678, %v1908
        %v2741 = vsel %vm2724, %v2679, %v1894
        %v2743 = vsel %vm2724, %v2681, %v1910
        %v2745 = vsel %vm2724, %v2683, %v1912
        %v2747 = vsel %vm2724, %v2685, %v1914
        %v2749 = vsel %vm2724, %v2687, %v1916
        %v2751 = vsel %vm2724, %v2689, %v1918
        %v2753 = vsel %vm2724, %v2691, %v1920
        %v2755 = vsel %vm2724, %v2693, %v1922
        %v2756 = vsel %vm2724, %v2694, %v1894
        %v2758 = vsel %vm2724, %v2696, %v1924
        %v2760 = vsel %vm2724, %v2698, %v1926
        %v2762 = vsel %vm2724, %v2700, %v1928
        %v2764 = vsel %vm2724, %v2702, %v1930
        %v2766 = vsel %vm2724, %v2704, %v1932
        %v2768 = vsel %vm2724, %v2706, %v1934
        %v2770 = vsel %vm2724, %v2708, %v1936
        %v2771 = vsel %vm2724, %v2709, %v1894
        %v2773 = vsel %vm2724, %v2711, %v1938
        %v2775 = vsel %vm2724, %v2713, %v1940
        %v2777 = vsel %vm2724, %v2715, %v1942
        %v2779 = vsel %vm2724, %v2717, %v1944
        %v2781 = vsel %vm2724, %v2719, %v1946
        %v2783 = vsel %vm2724, %v2721, %v1948
        %v2785 = vsel %vm2724, %v2723, %v1950
        %vm2786 = vcmask 719872
        %v2788 = vsel %vm2786, %v2726, %v1959
        %v2790 = vsel %vm2786, %v2728, %v1961
        %v2792 = vsel %vm2786, %v2730, %v1963
        %v2794 = vsel %vm2786, %v2732, %v1965
        %v2796 = vsel %vm2786, %v2734, %v1967
        %v2798 = vsel %vm2786, %v2736, %v1969
        %v2800 = vsel %vm2786, %v2738, %v1971
        %v2802 = vsel %vm2786, %v2740, %v1973
        %v2803 = vsel %vm2786, %v2741, %v1959
        %v2805 = vsel %vm2786, %v2743, %v1975
        %v2807 = vsel %vm2786, %v2745, %v1977
        %v2809 = vsel %vm2786, %v2747, %v1979
        %v2811 = vsel %vm2786, %v2749, %v1981
        %v2813 = vsel %vm2786, %v2751, %v1983
        %v2815 = vsel %vm2786, %v2753, %v1985
        %v2817 = vsel %vm2786, %v2755, %v1987
        %v2818 = vsel %vm2786, %v2756, %v1959
        %v2820 = vsel %vm2786, %v2758, %v1989
        %v2822 = vsel %vm2786, %v2760, %v1991
        %v2824 = vsel %vm2786, %v2762, %v1993
        %v2826 = vsel %vm2786, %v2764, %v1995
        %v2828 = vsel %vm2786, %v2766, %v1997
        %v2830 = vsel %vm2786, %v2768, %v1999
        %v2832 = vsel %vm2786, %v2770, %v2001
        %v2833 = vsel %vm2786, %v2771, %v1959
        %v2835 = vsel %vm2786, %v2773, %v2003
        %v2837 = vsel %vm2786, %v2775, %v2005
        %v2839 = vsel %vm2786, %v2777, %v2007
        %v2841 = vsel %vm2786, %v2779, %v2009
        %v2843 = vsel %vm2786, %v2781, %v2011
        %v2845 = vsel %vm2786, %v2783, %v2013
        %v2847 = vsel %vm2786, %v2785, %v2015
        %vm2848 = vcmask 785408
        %v2850 = vsel %vm2848, %v2788, %v2018
        %v2852 = vsel %vm2848, %v2790, %v2020
        %v2854 = vsel %vm2848, %v2792, %v2022
        %v2856 = vsel %vm2848, %v2794, %v2024
        %v2858 = vsel %vm2848, %v2796, %v2026
        %v2860 = vsel %vm2848, %v2798, %v2028
        %v2862 = vsel %vm2848, %v2800, %v2030
        %v2864 = vsel %vm2848, %v2802, %v2032
        %v2866 = vsel %vm2848, %v2803, %v2034
        %v2868 = vsel %vm2848, %v2805, %v2036
        %v2870 = vsel %vm2848, %v2807, %v2038
        %v2872 = vsel %vm2848, %v2809, %v2040
        %v2874 = vsel %vm2848, %v2811, %v2042
        %v2876 = vsel %vm2848, %v2813, %v2044
        %v2878 = vsel %vm2848, %v2815, %v2046
        %v2880 = vsel %vm2848, %v2817, %v2048
        %v2882 = vsel %vm2848, %v2818, %v2050
        %v2884 = vsel %vm2848, %v2820, %v2052
        %v2886 = vsel %vm2848, %v2822, %v2054
        %v2888 = vsel %vm2848, %v2824, %v2056
        %v2890 = vsel %vm2848, %v2826, %v2058
        %v2892 = vsel %vm2848, %v2828, %v2060
        %v2894 = vsel %vm2848, %v2830, %v2062
        %v2896 = vsel %vm2848, %v2832, %v2064
        %v2898 = vsel %vm2848, %v2833, %v2066
        %v2900 = vsel %vm2848, %v2835, %v2068
        %v2902 = vsel %vm2848, %v2837, %v2070
        %v2904 = vsel %vm2848, %v2839, %v2072
        %v2906 = vsel %vm2848, %v2841, %v2074
        %v2908 = vsel %vm2848, %v2843, %v2076
        %v2910 = vsel %vm2848, %v2845, %v2078
        %v2912 = vsel %vm2848, %v2847, %v2080
        %vm2913 = vcmask 850944
        %v2915 = vsel %vm2913, %v2850, %v2089
        %v2917 = vsel %vm2913, %v2852, %v2091
        %v2919 = vsel %vm2913, %v2854, %v2093
        %v2921 = vsel %vm2913, %v2856, %v2095
        %v2923 = vsel %vm2913, %v2858, %v2097
        %v2925 = vsel %vm2913, %v2860, %v2099
        %v2927 = vsel %vm2913, %v2862, %v2101
        %v2929 = vsel %vm2913, %v2864, %v2103
        %v2931 = vsel %vm2913, %v2866, %v2105
        %v2933 = vsel %vm2913, %v2868, %v2107
        %v2935 = vsel %vm2913, %v2870, %v2109
        %v2937 = vsel %vm2913, %v2872, %v2111
        %v2939 = vsel %vm2913, %v2874, %v2113
        %v2941 = vsel %vm2913, %v2876, %v2115
        %v2943 = vsel %vm2913, %v2878, %v2117
        %v2945 = vsel %vm2913, %v2880, %v2119
        %v2947 = vsel %vm2913, %v2882, %v2121
        %v2949 = vsel %vm2913, %v2884, %v2123
        %v2951 = vsel %vm2913, %v2886, %v2125
        %v2953 = vsel %vm2913, %v2888, %v2127
        %v2955 = vsel %vm2913, %v2890, %v2129
        %v2957 = vsel %vm2913, %v2892, %v2131
        %v2959 = vsel %vm2913, %v2894, %v2133
        %v2961 = vsel %vm2913, %v2896, %v2135
        %v2963 = vsel %vm2913, %v2898, %v2137
        %v2965 = vsel %vm2913, %v2900, %v2139
        %v2967 = vsel %vm2913, %v2902, %v2141
        %v2969 = vsel %vm2913, %v2904, %v2143
        %v2971 = vsel %vm2913, %v2906, %v2145
        %v2973 = vsel %vm2913, %v2908, %v2147
        %v2975 = vsel %vm2913, %v2910, %v2149
        %v2977 = vsel %vm2913, %v2912, %v2151
        %vm2978 = vcmask 916480
        %v2980 = vsel %vm2978, %v2915, %v2154
        %v2982 = vsel %vm2978, %v2917, %v2156
        %v2984 = vsel %vm2978, %v2919, %v2158
        %v2986 = vsel %vm2978, %v2921, %v2160
        %v2988 = vsel %vm2978, %v2923, %v2162
        %v2990 = vsel %vm2978, %v2925, %v2164
        %v2992 = vsel %vm2978, %v2927, %v2166
        %v2994 = vsel %vm2978, %v2929, %v2168
        %v2996 = vsel %vm2978, %v2931, %v2170
        %v2998 = vsel %vm2978, %v2933, %v2172
        %v3000 = vsel %vm2978, %v2935, %v2174
        %v3002 = vsel %vm2978, %v2937, %v2176
        %v3004 = vsel %vm2978, %v2939, %v2178
        %v3006 = vsel %vm2978, %v2941, %v2180
        %v3008 = vsel %vm2978, %v2943, %v2182
        %v3010 = vsel %vm2978, %v2945, %v2184
        %v3012 = vsel %vm2978, %v2947, %v2186
        %v3014 = vsel %vm2978, %v2949, %v2188
        %v3016 = vsel %vm2978, %v2951, %v2190
        %v3018 = vsel %vm2978, %v2953, %v2192
        %v3020 = vsel %vm2978, %v2955, %v2194
        %v3022 = vsel %vm2978, %v2957, %v2196
        %v3024 = vsel %vm2978, %v2959, %v2198
        %v3026 = vsel %vm2978, %v2961, %v2200
        %v3028 = vsel %vm2978, %v2963, %v2202
        %v3030 = vsel %vm2978, %v2965, %v2204
        %v3032 = vsel %vm2978, %v2967, %v2206
        %v3034 = vsel %vm2978, %v2969, %v2208
        %v3036 = vsel %vm2978, %v2971, %v2210
        %v3038 = vsel %vm2978, %v2973, %v2212
        %v3040 = vsel %vm2978, %v2975, %v2214
        %v3042 = vsel %vm2978, %v2977, %v2216
        %vm3043 = vcmask 982016
        %v3045 = vsel %vm3043, %v2980, %v2218
        %v3047 = vsel %vm3043, %v2982, %v2220
        %v3049 = vsel %vm3043, %v2984, %v2222
        %v3051 = vsel %vm3043, %v2986, %v2224
        %v3053 = vsel %vm3043, %v2988, %v2226
        %v3055 = vsel %vm3043, %v2990, %v2228
        %v3057 = vsel %vm3043, %v2992, %v2230
        %v3059 = vsel %vm3043, %v2994, %v2232
        %v3061 = vsel %vm3043, %v2996, %v2234
        %v3063 = vsel %vm3043, %v2998, %v2236
        %v3065 = vsel %vm3043, %v3000, %v2238
        %v3067 = vsel %vm3043, %v3002, %v2240
        %v3069 = vsel %vm3043, %v3004, %v2242
        %v3071 = vsel %vm3043, %v3006, %v2244
        %v3073 = vsel %vm3043, %v3008, %v2246
        %v3074 = vsel %vm3043, %v3010, %v2232
        %v3076 = vsel %vm3043, %v3012, %v2248
        %v3078 = vsel %vm3043, %v3014, %v2250
        %v3080 = vsel %vm3043, %v3016, %v2252
        %v3082 = vsel %vm3043, %v3018, %v2254
        %v3084 = vsel %vm3043, %v3020, %v2256
        %v3086 = vsel %vm3043, %v3022, %v2258
        %v3088 = vsel %vm3043, %v3024, %v2260
        %v3089 = vsel %vm3043, %v3026, %v2232
        %v3091 = vsel %vm3043, %v3028, %v2262
        %v3093 = vsel %vm3043, %v3030, %v2264
        %v3095 = vsel %vm3043, %v3032, %v2266
        %v3097 = vsel %vm3043, %v3034, %v2268
        %v3099 = vsel %vm3043, %v3036, %v2270
        %v3101 = vsel %vm3043, %v3038, %v2272
        %v3103 = vsel %vm3043, %v3040, %v2274
        %v3104 = vsel %vm3043, %v3042, %v2232
        %3105 = vrot.lane.b32.xlu0 %v1529, 8
        %v3106 = vpop.permute.xlu0 %3105
        %3107 = vrot.lane.b32.xlu0 %v1536, 8
        %v3108 = vpop.permute.xlu0 %3107
        %3109 = vrot.lane.b32.xlu0 %v1543, 8
        %v3110 = vpop.permute.xlu0 %3109
        %3111 = vrot.lane.b32.xlu0 %v1857, 8
        %v3112 = vpop.permute.xlu0 %3111
        %3113 = vrot.lane.b32.xlu0 %v1864, 8
        %v3114 = vpop.permute.xlu0 %3113
        %3115 = vrot.lane.b32.xlu0 %v1871, 8
        %v3116 = vpop.permute.xlu0 %3115
        %3117 = vrot.lane.b32.xlu0 %v1878, 8
        %v3118 = vpop.permute.xlu0 %3117
        %3119 = vrot.lane.b32.xlu0 %v1885, 8
        %v3120 = vpop.permute.xlu0 %3119
        %3121 = vrot.lane.b32.xlu0 %v1892, 8
        %v3122 = vpop.permute.xlu0 %3121
        %3123 = vrot.lane.b32.xlu0 %v2087, 8
        %v3124 = vpop.permute.xlu0 %3123
        %v3125 = vrot.slane %v1185, 7
        %v3126 = vor.u32 %v3125, %v1187
        %v3127 = vrot.slane %v1241, 7
        %v3128 = vor.u32 %v3127, %v1243
        %v3129 = vrot.slane %v1248, 7
        %v3130 = vor.u32 %v3129, %v1250
        %v3131 = vrot.slane %v1255, 7
        %v3132 = vor.u32 %v3131, %v1257
        %v3133 = vrot.slane %v1262, 7
        %v3134 = vor.u32 %v3133, %v1264
        %v3135 = vrot.slane %v1269, 7
        %v3136 = vor.u32 %v3135, %v1271
        %v3137 = vrot.slane %v1276, 7
        %v3138 = vor.u32 %v3137, %v1278
        %v3139 = vrot.slane %v1283, 7
        %v3140 = vor.u32 %v3139, %v1285
        %v3141 = vrot.slane %v1290, 7
        %v3142 = vor.u32 %v3141, %v1292
        %v3143 = vrot.slane %v1297, 7
        %v3144 = vor.u32 %v3143, %v1299
        %v3145 = vrot.slane %v1304, 7
        %v3146 = vor.u32 %v3145, %v1306
        %v3147 = vrot.slane %v1311, 7
        %v3148 = vor.u32 %v3147, %v1313
        %v3149 = vrot.slane %v1318, 7
        %v3150 = vor.u32 %v3149, %v1320
        %v3151 = vrot.slane %v1325, 7
        %v3152 = vor.u32 %v3151, %v1327
        %v3153 = vrot.slane %v1332, 7
        %v3154 = vor.u32 %v3153, %v1334
        %v3155 = vrot.slane %v1845, 7
        %v3156 = vor.u32 %v3155, %v1847
        %v3157 = vrot.slane %v1852, 7
        %v3158 = vor.u32 %v3157, %v1854
        %v3159 = vrot.slane %v1859, 7
        %v3160 = vor.u32 %v3159, %v1861
        %v3161 = vrot.slane %v1866, 7
        %v3162 = vor.u32 %v3161, %v1868
        %v3163 = vrot.slane %v1873, 7
        %v3164 = vor.u32 %v3163, %v1875
        %v3165 = vrot.slane %v1880, 7
        %v3166 = vor.u32 %v3165, %v1882
        %v3167 = vrot.slane %v1887, 7
        %v3168 = vor.u32 %v3167, %v1889
        %3169 = vrot.lane.b32.xlu0 %v3126, 16
        %v3170 = vpop.permute.xlu0 %3169
        %3171 = vrot.lane.b32.xlu0 %v3128, 16
        %v3172 = vpop.permute.xlu0 %3171
        %3173 = vrot.lane.b32.xlu0 %v3130, 16
        %v3174 = vpop.permute.xlu0 %3173
        %3175 = vrot.lane.b32.xlu0 %v3132, 16
        %v3176 = vpop.permute.xlu0 %3175
        %3177 = vrot.lane.b32.xlu0 %v3134, 16
        %v3178 = vpop.permute.xlu0 %3177
        %3179 = vrot.lane.b32.xlu0 %v3136, 16
        %v3180 = vpop.permute.xlu0 %3179
        %3181 = vrot.lane.b32.xlu0 %v3138, 16
        %v3182 = vpop.permute.xlu0 %3181
        %3183 = vrot.lane.b32.xlu0 %v3140, 16
        %v3184 = vpop.permute.xlu0 %3183
        %3185 = vrot.lane.b32.xlu0 %v3142, 16
        %v3186 = vpop.permute.xlu0 %3185
        %3187 = vrot.lane.b32.xlu0 %v3144, 16
        %v3188 = vpop.permute.xlu0 %3187
        %3189 = vrot.lane.b32.xlu0 %v3146, 16
        %v3190 = vpop.permute.xlu0 %3189
        %3191 = vrot.lane.b32.xlu0 %v3148, 16
        %v3192 = vpop.permute.xlu0 %3191
        %3193 = vrot.lane.b32.xlu0 %v3150, 16
        %v3194 = vpop.permute.xlu0 %3193
        %3195 = vrot.lane.b32.xlu0 %v3152, 16
        %v3196 = vpop.permute.xlu0 %3195
        %3197 = vrot.lane.b32.xlu0 %v3154, 16
        %v3198 = vpop.permute.xlu0 %3197
        %3199 = vrot.lane.b32.xlu0 %v3156, 16
        %v3200 = vpop.permute.xlu0 %3199
        %3201 = vrot.lane.b32.xlu0 %v3158, 16
        %v3202 = vpop.permute.xlu0 %3201
        %3203 = vrot.lane.b32.xlu0 %v3160, 16
        %v3204 = vpop.permute.xlu0 %3203
        %3205 = vrot.lane.b32.xlu0 %v3162, 16
        %v3206 = vpop.permute.xlu0 %3205
        %3207 = vrot.lane.b32.xlu0 %v3164, 16
        %v3208 = vpop.permute.xlu0 %3207
        %3209 = vrot.lane.b32.xlu0 %v3166, 16
        %v3210 = vpop.permute.xlu0 %3209
        %3211 = vrot.lane.b32.xlu0 %v3168, 16
        %v3212 = vpop.permute.xlu0 %3211
        %3213 = vrot.lane.b32.xlu0 %v1176, 24
        %v3214 = vpop.permute.xlu0 %3213
        %3215 = vrot.lane.b32.xlu0 %v1177, 24
        %v3216 = vpop.permute.xlu0 %3215
        %3217 = vrot.lane.b32.xlu0 %v1178, 24
        %v3218 = vpop.permute.xlu0 %3217
        %3219 = vrot.lane.b32.xlu0 %v1179, 24
        %v3220 = vpop.permute.xlu0 %3219
        %3221 = vrot.lane.b32.xlu0 %v1180, 24
        %v3222 = vpop.permute.xlu0 %3221
        %3223 = vrot.lane.b32.xlu0 %v1181, 24
        %v3224 = vpop.permute.xlu0 %3223
        %3225 = vrot.lane.b32.xlu0 %v1182, 24
        %v3226 = vpop.permute.xlu0 %3225
        %3227 = vrot.lane.b32.xlu0 %v1850, 32
        %v3228 = vpop.permute.xlu0 %3227
        %3229 = vrot.lane.b32.xlu0 %v1857, 32
        %v3230 = vpop.permute.xlu0 %3229
        %3231 = vrot.lane.b32.xlu0 %v1864, 32
        %v3232 = vpop.permute.xlu0 %3231
        %3233 = vrot.lane.b32.xlu0 %v1871, 32
        %v3234 = vpop.permute.xlu0 %3233
        %3235 = vrot.lane.b32.xlu0 %v1878, 32
        %v3236 = vpop.permute.xlu0 %3235
        %3237 = vrot.lane.b32.xlu0 %v1885, 32
        %v3238 = vpop.permute.xlu0 %3237
        %3239 = vrot.lane.b32.xlu0 %v1892, 32
        %v3240 = vpop.permute.xlu0 %3239
        %v3241 = vrot.slane %v1531, 7
        %v3242 = vor.u32 %v3241, %v1533
        %v3243 = vrot.slane %v1538, 7
        %v3244 = vor.u32 %v3243, %v1540
        %v3245 = vrot.slane %v2082, 7
        %v3246 = vor.u32 %v3245, %v2084
        %3247 = vrot.lane.b32.xlu0 %v3128, 40
        %v3248 = vpop.permute.xlu0 %3247
        %3249 = vrot.lane.b32.xlu0 %v3130, 40
        %v3250 = vpop.permute.xlu0 %3249
        %3251 = vrot.lane.b32.xlu0 %v3132, 40
        %v3252 = vpop.permute.xlu0 %3251
        %3253 = vrot.lane.b32.xlu0 %v3134, 40
        %v3254 = vpop.permute.xlu0 %3253
        %3255 = vrot.lane.b32.xlu0 %v3136, 40
        %v3256 = vpop.permute.xlu0 %3255
        %3257 = vrot.lane.b32.xlu0 %v3138, 40
        %v3258 = vpop.permute.xlu0 %3257
        %3259 = vrot.lane.b32.xlu0 %v3140, 40
        %v3260 = vpop.permute.xlu0 %3259
        %3261 = vrot.lane.b32.xlu0 %v3242, 40
        %v3262 = vpop.permute.xlu0 %3261
        %3263 = vrot.lane.b32.xlu0 %v3142, 40
        %v3264 = vpop.permute.xlu0 %3263
        %3265 = vrot.lane.b32.xlu0 %v3144, 40
        %v3266 = vpop.permute.xlu0 %3265
        %3267 = vrot.lane.b32.xlu0 %v3146, 40
        %v3268 = vpop.permute.xlu0 %3267
        %3269 = vrot.lane.b32.xlu0 %v3148, 40
        %v3270 = vpop.permute.xlu0 %3269
        %3271 = vrot.lane.b32.xlu0 %v3150, 40
        %v3272 = vpop.permute.xlu0 %3271
        %3273 = vrot.lane.b32.xlu0 %v3152, 40
        %v3274 = vpop.permute.xlu0 %3273
        %3275 = vrot.lane.b32.xlu0 %v3154, 40
        %v3276 = vpop.permute.xlu0 %3275
        %3277 = vrot.lane.b32.xlu0 %v3244, 40
        %v3278 = vpop.permute.xlu0 %3277
        %3279 = vrot.lane.b32.xlu0 %v3156, 40
        %v3280 = vpop.permute.xlu0 %3279
        %3281 = vrot.lane.b32.xlu0 %v3158, 40
        %v3282 = vpop.permute.xlu0 %3281
        %3283 = vrot.lane.b32.xlu0 %v3160, 40
        %v3284 = vpop.permute.xlu0 %3283
        %3285 = vrot.lane.b32.xlu0 %v3162, 40
        %v3286 = vpop.permute.xlu0 %3285
        %3287 = vrot.lane.b32.xlu0 %v3164, 40
        %v3288 = vpop.permute.xlu0 %3287
        %3289 = vrot.lane.b32.xlu0 %v3166, 40
        %v3290 = vpop.permute.xlu0 %3289
        %3291 = vrot.lane.b32.xlu0 %v3168, 40
        %v3292 = vpop.permute.xlu0 %3291
        %3293 = vrot.lane.b32.xlu0 %v3246, 40
        %v3294 = vpop.permute.xlu0 %3293
        %3295 = vrot.lane.b32.xlu0 %v3126, 40
        %v3296 = vpop.permute.xlu0 %3295
        %3297 = vrot.lane.b32.xlu0 %v1160, 48
        %v3298 = vpop.permute.xlu0 %3297
        %3299 = vrot.lane.b32.xlu0 %v1168, 48
        %v3300 = vpop.permute.xlu0 %3299
        %3301 = vrot.lane.b32.xlu0 %v1176, 48
        %v3302 = vpop.permute.xlu0 %3301
        %3303 = vrot.lane.b32.xlu0 %v1177, 48
        %v3304 = vpop.permute.xlu0 %3303
        %3305 = vrot.lane.b32.xlu0 %v1178, 48
        %v3306 = vpop.permute.xlu0 %3305
        %3307 = vrot.lane.b32.xlu0 %v1179, 48
        %v3308 = vpop.permute.xlu0 %3307
        %3309 = vrot.lane.b32.xlu0 %v1180, 48
        %v3310 = vpop.permute.xlu0 %3309
        %3311 = vrot.lane.b32.xlu0 %v1181, 48
        %v3312 = vpop.permute.xlu0 %3311
        %3313 = vrot.lane.b32.xlu0 %v1182, 48
        %v3314 = vpop.permute.xlu0 %3313
        %3315 = vrot.lane.b32.xlu0 %v1183, 48
        %v3316 = vpop.permute.xlu0 %3315
        %3317 = vrot.lane.b32.xlu0 %v1246, 56
        %v3318 = vpop.permute.xlu0 %3317
        %3319 = vrot.lane.b32.xlu0 %v1295, 56
        %v3320 = vpop.permute.xlu0 %3319
        %3321 = vrot.lane.b32.xlu0 %v1850, 56
        %v3322 = vpop.permute.xlu0 %3321
        %3323 = vrot.lane.b32.xlu0 %v1857, 56
        %v3324 = vpop.permute.xlu0 %3323
        %3325 = vrot.lane.b32.xlu0 %v1864, 56
        %v3326 = vpop.permute.xlu0 %3325
        %3327 = vrot.lane.b32.xlu0 %v1871, 56
        %v3328 = vpop.permute.xlu0 %3327
        %3329 = vrot.lane.b32.xlu0 %v1878, 56
        %v3330 = vpop.permute.xlu0 %3329
        %3331 = vrot.lane.b32.xlu0 %v1885, 56
        %v3332 = vpop.permute.xlu0 %3331
        %3333 = vrot.lane.b32.xlu0 %v1892, 56
        %v3334 = vpop.permute.xlu0 %3333
        %3335 = vrot.lane.b32.xlu0 %v2087, 56
        %v3336 = vpop.permute.xlu0 %3335
        %3337 = vrot.lane.b32.xlu0 %v3130, 64
        %v3338 = vpop.permute.xlu0 %3337
        %3339 = vrot.lane.b32.xlu0 %v3132, 64
        %v3340 = vpop.permute.xlu0 %3339
        %3341 = vrot.lane.b32.xlu0 %v3134, 64
        %v3342 = vpop.permute.xlu0 %3341
        %3343 = vrot.lane.b32.xlu0 %v3136, 64
        %v3344 = vpop.permute.xlu0 %3343
        %3345 = vrot.lane.b32.xlu0 %v3138, 64
        %v3346 = vpop.permute.xlu0 %3345
        %3347 = vrot.lane.b32.xlu0 %v3140, 64
        %v3348 = vpop.permute.xlu0 %3347
        %3349 = vrot.lane.b32.xlu0 %v3242, 64
        %v3350 = vpop.permute.xlu0 %3349
        %3351 = vrot.lane.b32.xlu0 %v3126, 64
        %v3352 = vpop.permute.xlu0 %3351
        %3353 = vrot.lane.b32.xlu0 %v3144, 64
        %v3354 = vpop.permute.xlu0 %3353
        %3355 = vrot.lane.b32.xlu0 %v3146, 64
        %v3356 = vpop.permute.xlu0 %3355
        %3357 = vrot.lane.b32.xlu0 %v3148, 64
        %v3358 = vpop.permute.xlu0 %3357
        %3359 = vrot.lane.b32.xlu0 %v3150, 64
        %v3360 = vpop.permute.xlu0 %3359
        %3361 = vrot.lane.b32.xlu0 %v3152, 64
        %v3362 = vpop.permute.xlu0 %3361
        %3363 = vrot.lane.b32.xlu0 %v3154, 64
        %v3364 = vpop.permute.xlu0 %3363
        %3365 = vrot.lane.b32.xlu0 %v3244, 64
        %v3366 = vpop.permute.xlu0 %3365
        %3367 = vrot.lane.b32.xlu0 %v3158, 64
        %v3368 = vpop.permute.xlu0 %3367
        %3369 = vrot.lane.b32.xlu0 %v3160, 64
        %v3370 = vpop.permute.xlu0 %3369
        %3371 = vrot.lane.b32.xlu0 %v3162, 64
        %v3372 = vpop.permute.xlu0 %3371
        %3373 = vrot.lane.b32.xlu0 %v3164, 64
        %v3374 = vpop.permute.xlu0 %3373
        %3375 = vrot.lane.b32.xlu0 %v3166, 64
        %v3376 = vpop.permute.xlu0 %3375
        %3377 = vrot.lane.b32.xlu0 %v3168, 64
        %v3378 = vpop.permute.xlu0 %3377
        %3379 = vrot.lane.b32.xlu0 %v3246, 64
        %v3380 = vpop.permute.xlu0 %3379
        %3381 = vrot.lane.b32.xlu0 %v1167, 72
        %v3382 = vpop.permute.xlu0 %3381
        %3383 = vrot.lane.b32.xlu0 %v1175, 72
        %v3384 = vpop.permute.xlu0 %3383
        %3385 = vrot.lane.b32.xlu0 %v1183, 72
        %v3386 = vpop.permute.xlu0 %3385
        %3387 = vrot.lane.b32.xlu0 %v1536, 80
        %v3388 = vpop.permute.xlu0 %3387
        %3389 = vrot.lane.b32.xlu0 %v1543, 80
        %v3390 = vpop.permute.xlu0 %3389
        %3391 = vrot.lane.b32.xlu0 %v2087, 80
        %v3392 = vpop.permute.xlu0 %3391
        %v3394 = vsel %vm2275, %v1159, %v3106
        %v3396 = vsel %vm2275, %v1167, %v3108
        %v3398 = vsel %vm2275, %v1175, %v3110
        %v3400 = vsel %vm2275, %v1177, %v3112
        %v3402 = vsel %vm2275, %v1178, %v3114
        %v3404 = vsel %vm2275, %v1179, %v3116
        %v3406 = vsel %vm2275, %v1180, %v3118
        %v3408 = vsel %vm2275, %v1181, %v3120
        %v3410 = vsel %vm2275, %v1182, %v3122
        %v3412 = vsel %vm2275, %v1183, %v3124
        %v3414 = vsel %vm2320, %v2281, %v3170
        %v3416 = vsel %vm2320, %v2283, %v3172
        %v3418 = vsel %vm2320, %v2285, %v3174
        %v3420 = vsel %vm2320, %v2287, %v3176
        %v3422 = vsel %vm2320, %v2289, %v3178
        %v3424 = vsel %vm2320, %v2291, %v3180
        %v3426 = vsel %vm2320, %v3394, %v3182
        %v3428 = vsel %vm2320, %v2277, %v3184
        %v3429 = vsel %vm2320, %v2295, %v3170
        %v3431 = vsel %vm2320, %v2297, %v3186
        %v3433 = vsel %vm2320, %v2299, %v3188
        %v3435 = vsel %vm2320, %v2301, %v3190
        %v3437 = vsel %vm2320, %v2303, %v3192
        %v3439 = vsel %vm2320, %v2305, %v3194
        %v3441 = vsel %vm2320, %v3396, %v3196
        %v3443 = vsel %vm2320, %v2277, %v3198
        %v3444 = vsel %vm2320, %v2309, %v3170
        %v3446 = vsel %vm2320, %v2311, %v3200
        %v3448 = vsel %vm2320, %v2313, %v3202
        %v3450 = vsel %vm2320, %v2315, %v3204
        %v3452 = vsel %vm2320, %v2317, %v3206
        %v3454 = vsel %vm2320, %v2319, %v3208
        %v3456 = vsel %vm2320, %v3398, %v3210
        %v3458 = vsel %vm2320, %v2277, %v3212
        %v3459 = vsel %vm2320, %v3400, %v3170
        %v3460 = vsel %vm2320, %v3402, %v3170
        %v3461 = vsel %vm2320, %v3404, %v3170
        %v3462 = vsel %vm2320, %v3406, %v3170
        %v3463 = vsel %vm2320, %v3408, %v3170
        %v3464 = vsel %vm2320, %v3410, %v3170
        %v3465 = vsel %vm2320, %v3412, %v3170
        %v3466 = vsel %vm2320, %v2277, %v3170
        %v3467 = vsel %vm2365, %v3414, %v1474
        %v3468 = vsel %vm2365, %v3416, %v1492
        %v3469 = vsel %vm2365, %v3418, %v1494
        %v3470 = vsel %vm2365, %v3420, %v1496
        %v3471 = vsel %vm2365, %v3422, %v1498
        %v3472 = vsel %vm2365, %v3424, %v1500
        %v3473 = vsel %vm2365, %v3426, %v1502
        %v3474 = vsel %vm2365, %v3428, %v1504
        %v3475 = vsel %vm2365, %v3429, %v1474
        %v3476 = vsel %vm2365, %v3431, %v1508
        %v3477 = vsel %vm2365, %v3433, %v1510
        %v3478 = vsel %vm2365, %v3435, %v1512
        %v3479 = vsel %vm2365, %v3437, %v1514
        %v3480 = vsel %vm2365, %v3439, %v1516
        %v3481 = vsel %vm2365, %v3441, %v1518
        %v3482 = vsel %vm2365, %v3443, %v1520
        %v3483 = vsel %vm2365, %v3444, %v1474
        %v3485 = vsel %vm2365, %v3446, %v3214
        %v3487 = vsel %vm2365, %v3448, %v3216
        %v3489 = vsel %vm2365, %v3450, %v3218
        %v3491 = vsel %vm2365, %v3452, %v3220
        %v3493 = vsel %vm2365, %v3454, %v3222
        %v3495 = vsel %vm2365, %v3456, %v3224
        %v3497 = vsel %vm2365, %v3458, %v3226
        %v3498 = vsel %vm2365, %v3459, %v1474
        %v3499 = vsel %vm2365, %v3460, %v1474
        %v3500 = vsel %vm2365, %v3461, %v1474
        %v3501 = vsel %vm2365, %v3462, %v1474
        %v3502 = vsel %vm2365, %v3463, %v1474
        %v3503 = vsel %vm2365, %v3464, %v1474
        %v3504 = vsel %vm2365, %v3465, %v1474
        %v3505 = vsel %vm2365, %v3466, %v1474
        %v3506 = vsel %vm2416, %v3467, %v1545
        %v3507 = vsel %vm2416, %v3468, %v1563
        %v3508 = vsel %vm2416, %v3469, %v1565
        %v3509 = vsel %vm2416, %v3470, %v1567
        %v3510 = vsel %vm2416, %v3471, %v1569
        %v3511 = vsel %vm2416, %v3472, %v1571
        %v3512 = vsel %vm2416, %v3473, %v1573
        %v3513 = vsel %vm2416, %v3474, %v1575
        %v3514 = vsel %vm2416, %v3475, %v1545
        %v3515 = vsel %vm2416, %v3476, %v1579
        %v3516 = vsel %vm2416, %v3477, %v1581
        %v3517 = vsel %vm2416, %v3478, %v1583
        %v3518 = vsel %vm2416, %v3479, %v1585
        %v3519 = vsel %vm2416, %v3480, %v1587
        %v3520 = vsel %vm2416, %v3481, %v1589
        %v3521 = vsel %vm2416, %v3482, %v1591
        %v3522 = vsel %vm2416, %v3483, %v1545
        %v3524 = vsel %vm2416, %v3485, %v3228
        %v3526 = vsel %vm2416, %v3487, %v3230
        %v3528 = vsel %vm2416, %v3489, %v3232
        %v3530 = vsel %vm2416, %v3491, %v3234
        %v3532 = vsel %vm2416, %v3493, %v3236
        %v3534 = vsel %vm2416, %v3495, %v3238
        %v3536 = vsel %vm2416, %v3497, %v3240
        %v3537 = vsel %vm2416, %v3498, %v1545
        %v3538 = vsel %vm2416, %v3499, %v1545
        %v3539 = vsel %vm2416, %v3500, %v1545
        %v3540 = vsel %vm2416, %v3501, %v1545
        %v3541 = vsel %vm2416, %v3502, %v1545
        %v3542 = vsel %vm2416, %v3503, %v1545
        %v3543 = vsel %vm2416, %v3504, %v1545
        %v3544 = vsel %vm2416, %v3505, %v1545
        %v3546 = vsel %vm2467, %v3506, %v3248
        %v3548 = vsel %vm2467, %v3507, %v3250
        %v3550 = vsel %vm2467, %v3508, %v3252
        %v3552 = vsel %vm2467, %v3509, %v3254
        %v3554 = vsel %vm2467, %v3510, %v3256
        %v3556 = vsel %vm2467, %v3511, %v3258
        %v3558 = vsel %vm2467, %v3512, %v3260
        %v3560 = vsel %vm2467, %v3513, %v3262
        %v3562 = vsel %vm2467, %v3514, %v3264
        %v3564 = vsel %vm2467, %v3515, %v3266
        %v3566 = vsel %vm2467, %v3516, %v3268
        %v3568 = vsel %vm2467, %v3517, %v3270
        %v3570 = vsel %vm2467, %v3518, %v3272
        %v3572 = vsel %vm2467, %v3519, %v3274
        %v3574 = vsel %vm2467, %v3520, %v3276
        %v3576 = vsel %vm2467, %v3521, %v3278
        %v3578 = vsel %vm2467, %v3522, %v3280
        %v3580 = vsel %vm2467, %v3524, %v3282
        %v3582 = vsel %vm2467, %v3526, %v3284
        %v3584 = vsel %vm2467, %v3528, %v3286
        %v3586 = vsel %vm2467, %v3530, %v3288
        %v3588 = vsel %vm2467, %v3532, %v3290
        %v3590 = vsel %vm2467, %v3534, %v3292
        %v3592 = vsel %vm2467, %v3536, %v3294
        %v3594 = vsel %vm2467, %v3537, %v3296
        %v3595 = vsel %vm2467, %v3538, %v3296
        %v3596 = vsel %vm2467, %v3539, %v3296
        %v3597 = vsel %vm2467, %v3540, %v3296
        %v3598 = vsel %vm2467, %v3541, %v3296
        %v3599 = vsel %vm2467, %v3542, %v3296
        %v3600 = vsel %vm2467, %v3543, %v3296
        %v3601 = vsel %vm2467, %v3544, %v3296
        %v3603 = vsel %vm2518, %v3546, %v3298
        %v3604 = vsel %vm2518, %v3548, %v1664
        %v3605 = vsel %vm2518, %v3550, %v1666
        %v3606 = vsel %vm2518, %v3552, %v1668
        %v3607 = vsel %vm2518, %v3554, %v1670
        %v3608 = vsel %vm2518, %v3556, %v1672
        %v3609 = vsel %vm2518, %v3558, %v1674
        %v3610 = vsel %vm2518, %v3560, %v1676
        %v3612 = vsel %vm2518, %v3562, %v3300
        %v3613 = vsel %vm2518, %v3564, %v1678
        %v3614 = vsel %vm2518, %v3566, %v1680
        %v3615 = vsel %vm2518, %v3568, %v1682
        %v3616 = vsel %vm2518, %v3570, %v1684
        %v3617 = vsel %vm2518, %v3572, %v1686
        %v3618 = vsel %vm2518, %v3574, %v1688
        %v3619 = vsel %vm2518, %v3576, %v1690
        %v3621 = vsel %vm2518, %v3578, %v3302
        %v3623 = vsel %vm2518, %v3580, %v3304
        %v3625 = vsel %vm2518, %v3582, %v3306
        %v3627 = vsel %vm2518, %v3584, %v3308
        %v3629 = vsel %vm2518, %v3586, %v3310
        %v3631 = vsel %vm2518, %v3588, %v3312
        %v3633 = vsel %vm2518, %v3590, %v3314
        %v3635 = vsel %vm2518, %v3592, %v3316
        %v3636 = vsel %vm2518, %v3594, %v1648
        %v3637 = vsel %vm2518, %v3595, %v1648
        %v3638 = vsel %vm2518, %v3596, %v1648
        %v3639 = vsel %vm2518, %v3597, %v1648
        %v3640 = vsel %vm2518, %v3598, %v1648
        %v3641 = vsel %vm2518, %v3599, %v1648
        %v3642 = vsel %vm2518, %v3600, %v1648
        %v3643 = vsel %vm2518, %v3601, %v1648
        %v3645 = vsel %vm2566, %v3603, %v3318
        %v3646 = vsel %vm2566, %v3604, %v1708
        %v3647 = vsel %vm2566, %v3605, %v1710
        %v3648 = vsel %vm2566, %v3606, %v1712
        %v3649 = vsel %vm2566, %v3607, %v1714
        %v3650 = vsel %vm2566, %v3608, %v1716
        %v3651 = vsel %vm2566, %v3609, %v1718
        %v3652 = vsel %vm2566, %v3610, %v1720
        %v3654 = vsel %vm2566, %v3612, %v3320
        %v3655 = vsel %vm2566, %v3613, %v1722
        %v3656 = vsel %vm2566, %v3614, %v1724
        %v3657 = vsel %vm2566, %v3615, %v1726
        %v3658 = vsel %vm2566, %v3616, %v1728
        %v3659 = vsel %vm2566, %v3617, %v1730
        %v3660 = vsel %vm2566, %v3618, %v1732
        %v3661 = vsel %vm2566, %v3619, %v1734
        %v3663 = vsel %vm2566, %v3621, %v3322
        %v3665 = vsel %vm2566, %v3623, %v3324
        %v3667 = vsel %vm2566, %v3625, %v3326
        %v3669 = vsel %vm2566, %v3627, %v3328
        %v3671 = vsel %vm2566, %v3629, %v3330
        %v3673 = vsel %vm2566, %v3631, %v3332
        %v3675 = vsel %vm2566, %v3633, %v3334
        %v3677 = vsel %vm2566, %v3635, %v3336
        %v3678 = vsel %vm2566, %v3636, %v1692
        %v3679 = vsel %vm2566, %v3637, %v1692
        %v3680 = vsel %vm2566, %v3638, %v1692
        %v3681 = vsel %vm2566, %v3639, %v1692
        %v3682 = vsel %vm2566, %v3640, %v1692
        %v3683 = vsel %vm2566, %v3641, %v1692
        %v3684 = vsel %vm2566, %v3642, %v1692
        %v3685 = vsel %vm2566, %v3643, %v1692
        %v3687 = vsel %vm2614, %v3645, %v3338
        %v3689 = vsel %vm2614, %v3646, %v3340
        %v3691 = vsel %vm2614, %v3647, %v3342
        %v3693 = vsel %vm2614, %v3648, %v3344
        %v3695 = vsel %vm2614, %v3649, %v3346
        %v3697 = vsel %vm2614, %v3650, %v3348
        %v3699 = vsel %vm2614, %v3651, %v3350
        %v3701 = vsel %vm2614, %v3652, %v3352
        %v3703 = vsel %vm2614, %v3654, %v3354
        %v3705 = vsel %vm2614, %v3655, %v3356
        %v3707 = vsel %vm2614, %v3656, %v3358
        %v3709 = vsel %vm2614, %v3657, %v3360
        %v3711 = vsel %vm2614, %v3658, %v3362
        %v3713 = vsel %vm2614, %v3659, %v3364
        %v3715 = vsel %vm2614, %v3660, %v3366
        %v3716 = vsel %vm2614, %v3661, %v3352
        %v3718 = vsel %vm2614, %v3663, %v3368
        %v3720 = vsel %vm2614, %v3665, %v3370
        %v3722 = vsel %vm2614, %v3667, %v3372
        %v3724 = vsel %vm2614, %v3669, %v3374
        %v3726 = vsel %vm2614, %v3671, %v3376
        %v3728 = vsel %vm2614, %v3673, %v3378
        %v3730 = vsel %vm2614, %v3675, %v3380
        %v3731 = vsel %vm2614, %v3677, %v3352
        %v3732 = vsel %vm2614, %v3678, %v3352
        %v3733 = vsel %vm2614, %v3679, %v3352
        %v3734 = vsel %vm2614, %v3680, %v3352
        %v3735 = vsel %vm2614, %v3681, %v3352
        %v3736 = vsel %vm2614, %v3682, %v3352
        %v3737 = vsel %vm2614, %v3683, %v3352
        %v3738 = vsel %vm2614, %v3684, %v3352
        %v3739 = vsel %vm2614, %v3685, %v3352
        %v3740 = vsel %vm2662, %v3687, %v1805
        %v3741 = vsel %vm2662, %v3689, %v1807
        %v3742 = vsel %vm2662, %v3691, %v1809
        %v3743 = vsel %vm2662, %v3693, %v1811
        %v3744 = vsel %vm2662, %v3695, %v1813
        %v3745 = vsel %vm2662, %v3697, %v1815
        %v3747 = vsel %vm2662, %v3699, %v3382
        %v3748 = vsel %vm2662, %v3701, %v1787
        %v3749 = vsel %vm2662, %v3703, %v1819
        %v3750 = vsel %vm2662, %v3705, %v1821
        %v3751 = vsel %vm2662, %v3707, %v1823
        %v3752 = vsel %vm2662, %v3709, %v1825
        %v3753 = vsel %vm2662, %v3711, %v1827
        %v3754 = vsel %vm2662, %v3713, %v1829
        %v3756 = vsel %vm2662, %v3715, %v3384
        %v3757 = vsel %vm2662, %v3716, %v1787
        %v3758 = vsel %vm2662, %v3718, %v1833
        %v3759 = vsel %vm2662, %v3720, %v1835
        %v3760 = vsel %vm2662, %v3722, %v1837
        %v3761 = vsel %vm2662, %v3724, %v1839
        %v3762 = vsel %vm2662, %v3726, %v1841
        %v3763 = vsel %vm2662, %v3728, %v1843
        %v3765 = vsel %vm2662, %v3730, %v3386
        %v3766 = vsel %vm2662, %v3731, %v1787
        %v3767 = vsel %vm2662, %v3732, %v1787
        %v3768 = vsel %vm2662, %v3733, %v1787
        %v3769 = vsel %vm2662, %v3734, %v1787
        %v3770 = vsel %vm2662, %v3735, %v1787
        %v3771 = vsel %vm2662, %v3736, %v1787
        %v3772 = vsel %vm2662, %v3737, %v1787
        %v3773 = vsel %vm2662, %v3738, %v1787
        %v3774 = vsel %vm2662, %v3739, %v1787
        %v3775 = vsel %vm2724, %v3740, %v1912
        %v3776 = vsel %vm2724, %v3741, %v1914
        %v3777 = vsel %vm2724, %v3742, %v1916
        %v3778 = vsel %vm2724, %v3743, %v1918
        %v3779 = vsel %vm2724, %v3744, %v1920
        %v3780 = vsel %vm2724, %v3745, %v1922
        %v3782 = vsel %vm2724, %v3747, %v3388
        %v3783 = vsel %vm2724, %v3748, %v1894
        %v3784 = vsel %vm2724, %v3749, %v1926
        %v3785 = vsel %vm2724, %v3750, %v1928
        %v3786 = vsel %vm2724, %v3751, %v1930
        %v3787 = vsel %vm2724, %v3752, %v1932
        %v3788 = vsel %vm2724, %v3753, %v1934
        %v3789 = vsel %vm2724, %v3754, %v1936
        %v3791 = vsel %vm2724, %v3756, %v3390
        %v3792 = vsel %vm2724, %v3757, %v1894
        %v3793 = vsel %vm2724, %v3758, %v1940
        %v3794 = vsel %vm2724, %v3759, %v1942
        %v3795 = vsel %vm2724, %v3760, %v1944
        %v3796 = vsel %vm2724, %v3761, %v1946
        %v3797 = vsel %vm2724, %v3762, %v1948
        %v3798 = vsel %vm2724, %v3763, %v1950
        %v3800 = vsel %vm2724, %v3765, %v3392
        %v3801 = vsel %vm2724, %v3766, %v1894
        %v3802 = vsel %vm2724, %v3767, %v1894
        %v3803 = vsel %vm2724, %v3768, %v1894
        %v3804 = vsel %vm2724, %v3769, %v1894
        %v3805 = vsel %vm2724, %v3770, %v1894
        %v3806 = vsel %vm2724, %v3771, %v1894
        %v3807 = vsel %vm2724, %v3772, %v1894
        %v3808 = vsel %vm2724, %v3773, %v1894
        %v3809 = vsel %vm2724, %v3774, %v1894
        %v3810 = vshrl.u32 %v3775, 16
        %v3812 = vshll.u32 %v3775, 16
        %v3814 = vrot.slane %v3812, 1
        %v3815 = vor.u32 %v3810, %v3814
        %v3816 = vshrl.u32 %v3776, 16
        %v3818 = vshll.u32 %v3776, 16
        %v3820 = vrot.slane %v3818, 1
        %v3821 = vor.u32 %v3816, %v3820
        %v3822 = vshrl.u32 %v3777, 16
        %v3824 = vshll.u32 %v3777, 16
        %v3826 = vrot.slane %v3824, 1
        %v3827 = vor.u32 %v3822, %v3826
        %v3828 = vshrl.u32 %v3778, 16
        %v3830 = vshll.u32 %v3778, 16
        %v3832 = vrot.slane %v3830, 1
        %v3833 = vor.u32 %v3828, %v3832
        %v3834 = vshrl.u32 %v3779, 16
        %v3836 = vshll.u32 %v3779, 16
        %v3838 = vrot.slane %v3836, 1
        %v3839 = vor.u32 %v3834, %v3838
        %v3840 = vshrl.u32 %v3780, 16
        %v3842 = vshll.u32 %v3780, 16
        %v3844 = vrot.slane %v3842, 1
        %v3845 = vor.u32 %v3840, %v3844
        %v3846 = vshrl.u32 %v3782, 16
        %v3848 = vshll.u32 %v3782, 16
        %v3850 = vrot.slane %v3848, 1
        %v3851 = vor.u32 %v3846, %v3850
        %v3852 = vshrl.u32 %v3783, 16
        %v3854 = vshll.u32 %v3783, 16
        %v3856 = vrot.slane %v3854, 1
        %v3857 = vor.u32 %v3852, %v3856
        %v3858 = vshrl.u32 %v3784, 16
        %v3860 = vshll.u32 %v3784, 16
        %v3862 = vrot.slane %v3860, 1
        %v3863 = vor.u32 %v3858, %v3862
        %v3864 = vshrl.u32 %v3785, 16
        %v3866 = vshll.u32 %v3785, 16
        %v3868 = vrot.slane %v3866, 1
        %v3869 = vor.u32 %v3864, %v3868
        %v3870 = vshrl.u32 %v3786, 16
        %v3872 = vshll.u32 %v3786, 16
        %v3874 = vrot.slane %v3872, 1
        %v3875 = vor.u32 %v3870, %v3874
        %v3876 = vshrl.u32 %v3787, 16
        %v3878 = vshll.u32 %v3787, 16
        %v3880 = vrot.slane %v3878, 1
        %v3881 = vor.u32 %v3876, %v3880
        %v3882 = vshrl.u32 %v3788, 16
        %v3884 = vshll.u32 %v3788, 16
        %v3886 = vrot.slane %v3884, 1
        %v3887 = vor.u32 %v3882, %v3886
        %v3888 = vshrl.u32 %v3789, 16
        %v3890 = vshll.u32 %v3789, 16
        %v3892 = vrot.slane %v3890, 1
        %v3893 = vor.u32 %v3888, %v3892
        %v3894 = vshrl.u32 %v3791, 16
        %v3896 = vshll.u32 %v3791, 16
        %v3898 = vrot.slane %v3896, 1
        %v3899 = vor.u32 %v3894, %v3898
        %v3900 = vshrl.u32 %v3792, 16
        %v3902 = vshll.u32 %v3792, 16
        %v3904 = vrot.slane %v3902, 1
        %v3905 = vor.u32 %v3900, %v3904
        %v3906 = vshrl.u32 %v3793, 16
        %v3908 = vshll.u32 %v3793, 16
        %v3910 = vrot.slane %v3908, 1
        %v3911 = vor.u32 %v3906, %v3910
        %v3912 = vshrl.u32 %v3794, 16
        %v3914 = vshll.u32 %v3794, 16
        %v3916 = vrot.slane %v3914, 1
        %v3917 = vor.u32 %v3912, %v3916
        %v3918 = vshrl.u32 %v3795, 16
        %v3920 = vshll.u32 %v3795, 16
        %v3922 = vrot.slane %v3920, 1
        %v3923 = vor.u32 %v3918, %v3922
        %v3924 = vshrl.u32 %v3796, 16
        %v3926 = vshll.u32 %v3796, 16
        %v3928 = vrot.slane %v3926, 1
        %v3929 = vor.u32 %v3924, %v3928
        %v3930 = vshrl.u32 %v3797, 16
        %v3932 = vshll.u32 %v3797, 16
        %v3934 = vrot.slane %v3932, 1
        %v3935 = vor.u32 %v3930, %v3934
        %v3936 = vshrl.u32 %v3798, 16
        %v3938 = vshll.u32 %v3798, 16
        %v3940 = vrot.slane %v3938, 1
        %v3941 = vor.u32 %v3936, %v3940
        %v3942 = vshrl.u32 %v3800, 16
        %v3944 = vshll.u32 %v3800, 16
        %v3946 = vrot.slane %v3944, 1
        %v3947 = vor.u32 %v3942, %v3946
        %v3948 = vshrl.u32 %v3801, 16
        %v3950 = vshll.u32 %v3801, 16
        %v3952 = vrot.slane %v3950, 1
        %v3953 = vor.u32 %v3948, %v3952
        %v3954 = vshrl.u32 %v3802, 16
        %v3956 = vshll.u32 %v3802, 16
        %v3958 = vrot.slane %v3956, 1
        %v3959 = vor.u32 %v3954, %v3958
        %v3960 = vshrl.u32 %v3803, 16
        %v3962 = vshll.u32 %v3803, 16
        %v3964 = vrot.slane %v3962, 1
        %v3965 = vor.u32 %v3960, %v3964
        %v3966 = vshrl.u32 %v3804, 16
        %v3968 = vshll.u32 %v3804, 16
        %v3970 = vrot.slane %v3968, 1
        %v3971 = vor.u32 %v3966, %v3970
        %v3972 = vshrl.u32 %v3805, 16
        %v3974 = vshll.u32 %v3805, 16
        %v3976 = vrot.slane %v3974, 1
        %v3977 = vor.u32 %v3972, %v3976
        %v3978 = vshrl.u32 %v3806, 16
        %v3980 = vshll.u32 %v3806, 16
        %v3982 = vrot.slane %v3980, 1
        %v3983 = vor.u32 %v3978, %v3982
        %v3984 = vshrl.u32 %v3807, 16
        %v3986 = vshll.u32 %v3807, 16
        %v3988 = vrot.slane %v3986, 1
        %v3989 = vor.u32 %v3984, %v3988
        %v3990 = vshrl.u32 %v3808, 16
        %v3992 = vshll.u32 %v3808, 16
        %v3994 = vrot.slane %v3992, 1
        %v3995 = vor.u32 %v3990, %v3994
        %v3996 = vshrl.u32 %v3809, 16
        %v3998 = vshll.u32 %v3809, 16
        %v4000 = vrot.slane %v3998, 1
        %v4001 = vor.u32 %v3996, %v4000
        %v4034 = vunpack.c.l.b16 %v3045
        %v4035 = vunpack.c.l.b16 %v3815
        %v4036 = vunpack.c.l.b16 %v3047
        %v4037 = vunpack.c.l.b16 %v3821
        %v4038 = vunpack.c.l.b16 %v3049
        %v4039 = vunpack.c.l.b16 %v3827
        %v4040 = vunpack.c.l.b16 %v3051
        %v4041 = vunpack.c.l.b16 %v3833
        %v4042 = vunpack.c.l.b16 %v3053
        %v4043 = vunpack.c.l.b16 %v3839
        %v4044 = vunpack.c.l.b16 %v3055
        %v4045 = vunpack.c.l.b16 %v3845
        %v4046 = vunpack.c.l.b16 %v3057
        %v4047 = vunpack.c.l.b16 %v3851
        %v4048 = vunpack.c.l.b16 %v3059
        %v4049 = vunpack.c.l.b16 %v3857
        %v4050 = vunpack.c.l.b16 %v3061
        %v4051 = vunpack.c.l.b16 %v3863
        %v4052 = vunpack.c.l.b16 %v3063
        %v4053 = vunpack.c.l.b16 %v3869
        %v4054 = vunpack.c.l.b16 %v3065
        %v4055 = vunpack.c.l.b16 %v3875
        %v4056 = vunpack.c.l.b16 %v3067
        %v4057 = vunpack.c.l.b16 %v3881
        %v4058 = vunpack.c.l.b16 %v3069
        %v4059 = vunpack.c.l.b16 %v3887
        %v4060 = vunpack.c.l.b16 %v3071
        %v4061 = vunpack.c.l.b16 %v3893
        %v4062 = vunpack.c.l.b16 %v3073
        %v4063 = vunpack.c.l.b16 %v3899
        %v4064 = vunpack.c.l.b16 %v3074
        %v4065 = vunpack.c.l.b16 %v3905
        %v4066 = vunpack.c.l.b16 %v3076
        %v4067 = vunpack.c.l.b16 %v3911
        %v4068 = vunpack.c.l.b16 %v3078
        %v4069 = vunpack.c.l.b16 %v3917
        %v4070 = vunpack.c.l.b16 %v3080
        %v4071 = vunpack.c.l.b16 %v3923
        %v4072 = vunpack.c.l.b16 %v3082
        %v4073 = vunpack.c.l.b16 %v3929
        %v4074 = vunpack.c.l.b16 %v3084
        %v4075 = vunpack.c.l.b16 %v3935
        %v4076 = vunpack.c.l.b16 %v3086
        %v4077 = vunpack.c.l.b16 %v3941
        %v4078 = vunpack.c.l.b16 %v3088
        %v4079 = vunpack.c.l.b16 %v3947
        %v4080 = vunpack.c.l.b16 %v3089
        %v4081 = vunpack.c.l.b16 %v3953
        %v4082 = vunpack.c.l.b16 %v3091
        %v4083 = vunpack.c.l.b16 %v3959
        %v4084 = vunpack.c.l.b16 %v3093
        %v4085 = vunpack.c.l.b16 %v3965
        %v4086 = vunpack.c.l.b16 %v3095
        %v4087 = vunpack.c.l.b16 %v3971
        %v4088 = vunpack.c.l.b16 %v3097
        %v4089 = vunpack.c.l.b16 %v3977
        %v4090 = vunpack.c.l.b16 %v3099
        %v4091 = vunpack.c.l.b16 %v3983
        %v4092 = vunpack.c.l.b16 %v3101
        %v4093 = vunpack.c.l.b16 %v3989
        %v4094 = vunpack.c.l.b16 %v3103
        %v4095 = vunpack.c.l.b16 %v3995
        %v4096 = vunpack.c.l.b16 %v3104
        %v4097 = vunpack.c.l.b16 %v4001
        %v4098 = vld [vmem:[%s4] sm:$0xf]
        %v4099 = vld [vmem:[%s4 + $0x4] sm:$0xf]
        %v4100 = vld [vmem:[%s4 + $0x8] sm:$0xf]
        %v4101 = vld [vmem:[%s4 + $0xc] sm:$0xf]
        %v4102 = vld [vmem:[%s4 + $0x10] sm:$0xf]
        %v4103 = vld [vmem:[%s4 + $0x14] sm:$0xf]
        %v4104 = vld [vmem:[%s4 + $0x18] sm:$0xf]
        %v4105 = vld [vmem:[%s4 + $0x1c] sm:$0xf]
        %v4106 = vld [vmem:[%s4 + $0x20] sm:$0xf]
        %v4107 = vld [vmem:[%s4 + $0x24] sm:$0xf]
        %v4108 = vld [vmem:[%s4 + $0x28] sm:$0xf]
        %v4109 = vld [vmem:[%s4 + $0x2c] sm:$0xf]
        %v4110 = vld [vmem:[%s4 + $0x30] sm:$0xf]
        %v4111 = vld [vmem:[%s4 + $0x34] sm:$0xf]
        %v4112 = vld [vmem:[%s4 + $0x38] sm:$0xf]
        %v4113 = vld [vmem:[%s4 + $0x3c] sm:$0xf]
        %v4114 = vld [vmem:[%s4 + $0x40] sm:$0xf]
        %v4115 = vld [vmem:[%s4 + $0x44] sm:$0xf]
        %v4116 = vld [vmem:[%s4 + $0x48] sm:$0xf]
        %v4117 = vld [vmem:[%s4 + $0x4c] sm:$0xf]
        %v4118 = vld [vmem:[%s4 + $0x50] sm:$0xf]
        %v4119 = vld [vmem:[%s4 + $0x54] sm:$0xf]
        %v4120 = vld [vmem:[%s4 + $0x58] sm:$0xf]
        %v4121 = vld [vmem:[%s4 + $0x5c] sm:$0xf]
        %v4122 = vld [vmem:[%s4 + $0x60] sm:$0xf]
        %v4123 = vld [vmem:[%s4 + $0x64] sm:$0xf]
        %v4124 = vld [vmem:[%s4 + $0x68] sm:$0xf]
        %v4125 = vpack.c.b16 %v4036, %v4034
        %v4126 = vpack.c.b16 %v4037, %v4035
        %v4127 = vpack.c.b16 %v4040, %v4038
        %v4128 = vpack.c.b16 %v4041, %v4039
        %v4129 = vpack.c.b16 %v4044, %v4042
        %v4130 = vpack.c.b16 %v4045, %v4043
        %v4131 = vpack.c.b16 %v4048, %v4046
        %v4132 = vpack.c.b16 %v4049, %v4047
        %v4133 = vpack.c.b16 %v4052, %v4050
        %v4134 = vpack.c.b16 %v4053, %v4051
        %v4135 = vpack.c.b16 %v4056, %v4054
        %v4136 = vpack.c.b16 %v4057, %v4055
        %v4137 = vpack.c.b16 %v4060, %v4058
        %v4138 = vpack.c.b16 %v4061, %v4059
        %v4139 = vpack.c.b16 %v4064, %v4062
        %v4140 = vpack.c.b16 %v4065, %v4063
        %v4141 = vpack.c.b16 %v4068, %v4066
        %v4142 = vpack.c.b16 %v4069, %v4067
        %v4143 = vpack.c.b16 %v4072, %v4070
        %v4144 = vpack.c.b16 %v4073, %v4071
        %v4145 = vpack.c.b16 %v4076, %v4074
        %v4146 = vpack.c.b16 %v4077, %v4075
        %v4147 = vpack.c.b16 %v4080, %v4078
        %v4148 = vpack.c.b16 %v4081, %v4079
        %v4149 = vpack.c.b16 %v4084, %v4082
        %v4150 = vpack.c.b16 %v4085, %v4083
        %v4151 = vpack.c.b16 %v4088, %v4086
        %v4152 = vpack.c.b16 %v4089, %v4087
        %v4153 = vpack.c.b16 %v4092, %v4090
        %v4154 = vpack.c.b16 %v4093, %v4091
        %v4155 = vpack.c.b16 %v4096, %v4094
        %v4156 = vpack.c.b16 %v4097, %v4095
        %v4200 = vunpack.c.l.b16 %v4098
        %v4201 = vunpack.c.l.b16 %v4099
        %v4202 = vunpack.c.l.b16 %v4100
        %v4203 = vunpack.c.l.b16 %v4101
        %v4204 = vunpack.c.l.b16 %v4102
        %v4205 = vunpack.c.l.b16 %v4103
        %v4206 = vunpack.c.l.b16 %v4104
        %v4207 = vunpack.c.l.b16 %v4105
        %v4208 = vunpack.c.l.b16 %v4106
        %v4209 = vunpack.c.l.b16 %v4107
        %v4210 = vunpack.c.l.b16 %v4108
        %v4211 = vunpack.c.l.b16 %v4109
        %v4212 = vunpack.c.l.b16 %v4110
        %v4213 = vunpack.c.l.b16 %v4111
        %v4214 = vunpack.c.l.b16 %v4112
        %v4215 = vunpack.c.l.b16 %v4113
        %v4216 = vunpack.c.l.b16 %v4114
        %v4217 = vunpack.c.l.b16 %v4115
        %v4218 = vunpack.c.l.b16 %v4116
        %v4219 = vunpack.c.l.b16 %v4117
        %v4220 = vunpack.c.l.b16 %v4118
        %v4221 = vunpack.c.l.b16 %v4119
        %v4222 = vunpack.c.l.b16 %v4120
        %v4223 = vunpack.c.l.b16 %v4121
        %v4224 = vunpack.c.l.b16 %v4122
        %v4225 = vunpack.c.l.b16 %v4123
        %v4226 = vunpack.c.l.b16 %v4124
        %v4227 = vpack.c.b16 %v4201, %v4200
        %v4228 = vpack.c.b16 %v4203, %v4202
        %v4229 = vpack.c.b16 %v4205, %v4204
        %v4230 = vpack.c.b16 %v4207, %v4206
        %v4231 = vpack.c.b16 %v4209, %v4208
        %v4232 = vpack.c.b16 %v4211, %v4210
        %v4233 = vpack.c.b16 %v4213, %v4212
        %v4234 = vpack.c.b16 %v4215, %v4214
        %v4235 = vpack.c.b16 %v4217, %v4216
        %v4236 = vpack.c.b16 %v4219, %v4218
        %v4237 = vpack.c.b16 %v4221, %v4220
        %v4238 = vpack.c.b16 %v4223, %v4222
        %v4239 = vpack.c.b16 %v4225, %v4224
        %v4240 = vpack.c.b16 %v4226, %v4226
        %v4255 = vsel %vm2786, %v4126, 0
        %v4258 = vsel %vm2786, %v4128, 0
        %v4261 = vsel %vm2786, %v4130, 0
        %v4264 = vsel %vm2786, %v4132, 0
        %v4267 = vsel %vm2786, %v4134, 0
        %v4270 = vsel %vm2786, %v4136, 0
        %v4273 = vsel %vm2786, %v4138, 0
        %v4276 = vsel %vm2786, %v4140, 0
        %v4279 = vsel %vm2786, %v4142, 0
        %v4282 = vsel %vm2786, %v4144, 0
        %v4285 = vsel %vm2786, %v4146, 0
        %v4288 = vsel %vm2786, %v4148, 0
        %v4291 = vsel %vm2786, %v4150, 0
        %v4294 = vsel %vm2786, %v4152, 0
        %v4297 = vsel %vm2786, %v4154, 0
        %v4300 = vsel %vm2786, %v4156, 0
        %vm4302 = vcmask 1043456
        %v4304 = vsel %vm4302, %v4240, 0
        %4306 = vmatprep.subr.bf16.mxu0 0
        %4307 = vmatpush1.bf16.msra.mxu0 %v4227
        %4308 = vmatprep.subr.bf16.mxu0 0
        %4309 = vmatpush1.bf16.msra.mxu0 %v4228
        %4310 = vmatprep.subr.bf16.mxu0 0
        %4311 = vmatpush1.bf16.msra.mxu0 %v4229
        %4312 = vmatprep.subr.bf16.mxu0 0
        %4313 = vmatpush1.bf16.msra.mxu0 %v4230
        %4314 = vmatprep.subr.bf16.mxu0 0
        %4315 = vmatpush1.bf16.msra.mxu0 %v4231
        %4316 = vmatprep.subr.bf16.mxu0 0
        %4317 = vmatpush1.bf16.msra.mxu0 %v4232
        %4318 = vmatprep.subr.bf16.mxu0 0
        %4319 = vmatpush1.bf16.msra.mxu0 %v4233
        %4320 = vmatprep.subr.bf16.mxu0 0
        %4321 = vmatpush1.bf16.msra.mxu0 %v4234
        %4322 = vmatprep.subr.bf16.mxu0 0
        %4323 = vmatpush1.bf16.msra.mxu0 %v4235
        %4324 = vmatprep.subr.bf16.mxu0 0
        %4325 = vmatpush1.bf16.msra.mxu0 %v4236
        %4326 = vmatprep.subr.bf16.mxu0 0
        %4327 = vmatpush1.bf16.msra.mxu0 %v4237
        %4328 = vmatprep.subr.bf16.mxu0 0
        %4329 = vmatpush1.bf16.msra.mxu0 %v4238
        %4330 = vmatprep.subr.bf16.mxu0 0
        %4331 = vmatpush1.bf16.msra.mxu0 %v4239
        %4332 = vmatprep.subr.bf16.mxu0 0
        %4333 = vmatpush1.bf16.msra.mxu0 %v4304
        %4334 = vmatprep.subr.bf16.mxu0 0
        %4335 = vmatpush1.bf16.msra.mxu0 0
        %4336 = vmatprep.subr.bf16.mxu0 0
        %4337 = vmatpush1.bf16.msra.mxu0 0
        %4338 = vmatprep.mubr.bf16.mxu0 %v4255
        %4339 = vmatmul.mubr.bf16.gmra.mrb[0].mxu0 %v4125
        %v4340 = vpop.f32.mrb[0].mxu0
        %v4341 = vadd.f32 0.0, %v4340
        %v4342 = vpop.f32.mrb[0].mxu0
        %v4343 = vpop.f32.mrb[0].mxu0
        %v4344 = vadd.f32 0.0, %v4343
        %v4345 = vpop.f32.mrb[0].mxu0
        %4346 = vmatprep.mubr.bf16.mxu0 %v4258
        %4347 = vmatmul.mubr.bf16.gmra.mrb[0].mxu0 %v4127
        %v4348 = vpop.f32.mrb[0].mxu0
        %v4349 = vadd.f32 0.0, %v4348
        %v4350 = vpop.f32.mrb[0].mxu0
        %v4351 = vpop.f32.mrb[0].mxu0
        %v4352 = vadd.f32 0.0, %v4351
        %v4353 = vpop.f32.mrb[0].mxu0
        %4354 = vmatprep.mubr.bf16.mxu0 %v4261
        %4355 = vmatmul.mubr.bf16.gmra.mrb[0].mxu0 %v4129
        %v4356 = vpop.f32.mrb[0].mxu0
        %v4357 = vadd.f32 0.0, %v4356
        %v4358 = vpop.f32.mrb[0].mxu0
        %v4359 = vpop.f32.mrb[0].mxu0
        %v4360 = vadd.f32 0.0, %v4359
        %v4361 = vpop.f32.mrb[0].mxu0
        %4362 = vmatprep.mubr.bf16.mxu0 %v4264
        %4363 = vmatmul.mubr.bf16.gmra.mrb[0].mxu0 %v4131
        %v4364 = vpop.f32.mrb[0].mxu0
        %v4365 = vadd.f32 0.0, %v4364
        %v4366 = vpop.f32.mrb[0].mxu0
        %v4367 = vpop.f32.mrb[0].mxu0
        %v4368 = vadd.f32 0.0, %v4367
        %v4369 = vpop.f32.mrb[0].mxu0
        %4370 = vmatprep.mubr.bf16.mxu0 %v4267
        %4371 = vmatmul.mubr.bf16.gmra.mrb[0].mxu0 %v4133
        %v4372 = vpop.f32.mrb[0].mxu0
        %v4373 = vadd.f32 0.0, %v4372
        %v4374 = vpop.f32.mrb[0].mxu0
        %v4375 = vpop.f32.mrb[0].mxu0
        %v4376 = vadd.f32 0.0, %v4375
        %v4377 = vpop.f32.mrb[0].mxu0
        %4378 = vmatprep.mubr.bf16.mxu0 %v4270
        %4379 = vmatmul.mubr.bf16.gmra.mrb[0].mxu0 %v4135
        %v4380 = vpop.f32.mrb[0].mxu0
        %v4381 = vadd.f32 0.0, %v4380
        %v4382 = vpop.f32.mrb[0].mxu0
        %v4383 = vpop.f32.mrb[0].mxu0
        %v4384 = vadd.f32 0.0, %v4383
        %v4385 = vpop.f32.mrb[0].mxu0
        %4386 = vmatprep.mubr.bf16.mxu0 %v4273
        %4387 = vmatmul.mubr.bf16.gmra.mrb[0].mxu0 %v4137
        %v4388 = vpop.f32.mrb[0].mxu0
        %v4389 = vadd.f32 0.0, %v4388
        %v4390 = vpop.f32.mrb[0].mxu0
        %v4391 = vpop.f32.mrb[0].mxu0
        %v4392 = vadd.f32 0.0, %v4391
        %v4393 = vpop.f32.mrb[0].mxu0
        %4394 = vmatprep.mubr.bf16.mxu0 %v4276
        %4395 = vmatmul.mubr.bf16.gmra.mrb[0].mxu0 %v4139
        %v4396 = vpop.f32.mrb[0].mxu0
        %v4397 = vadd.f32 0.0, %v4396
        %v4398 = vpop.f32.mrb[0].mxu0
        %v4399 = vpop.f32.mrb[0].mxu0
        %v4400 = vadd.f32 0.0, %v4399
        %v4401 = vpop.f32.mrb[0].mxu0
        %4402 = vmatprep.mubr.bf16.mxu0 %v4279
        %4403 = vmatmul.mubr.bf16.gmra.mrb[0].mxu0 %v4141
        %v4404 = vpop.f32.mrb[0].mxu0
        %v4405 = vadd.f32 0.0, %v4404
        %v4406 = vpop.f32.mrb[0].mxu0
        %v4407 = vpop.f32.mrb[0].mxu0
        %v4408 = vadd.f32 0.0, %v4407
        %v4409 = vpop.f32.mrb[0].mxu0
        %4410 = vmatprep.mubr.bf16.mxu0 %v4282
        %4411 = vmatmul.mubr.bf16.gmra.mrb[0].mxu0 %v4143
        %v4412 = vpop.f32.mrb[0].mxu0
        %v4413 = vadd.f32 0.0, %v4412
        %v4414 = vpop.f32.mrb[0].mxu0
        %v4415 = vpop.f32.mrb[0].mxu0
        %v4416 = vadd.f32 0.0, %v4415
        %v4417 = vpop.f32.mrb[0].mxu0
        %4418 = vmatprep.mubr.bf16.mxu0 %v4285
        %4419 = vmatmul.mubr.bf16.gmra.mrb[0].mxu0 %v4145
        %v4420 = vpop.f32.mrb[0].mxu0
        %v4421 = vadd.f32 0.0, %v4420
        %v4422 = vpop.f32.mrb[0].mxu0
        %v4423 = vpop.f32.mrb[0].mxu0
        %v4424 = vadd.f32 0.0, %v4423
        %v4425 = vpop.f32.mrb[0].mxu0
        %4426 = vmatprep.mubr.bf16.mxu0 %v4288
        %4427 = vmatmul.mubr.bf16.gmra.mrb[0].mxu0 %v4147
        %v4428 = vpop.f32.mrb[0].mxu0
        %v4429 = vadd.f32 0.0, %v4428
        %v4430 = vpop.f32.mrb[0].mxu0
        %v4431 = vpop.f32.mrb[0].mxu0
        %v4432 = vadd.f32 0.0, %v4431
        %v4433 = vpop.f32.mrb[0].mxu0
        %4434 = vmatprep.mubr.bf16.mxu0 %v4291
        %4435 = vmatmul.mubr.bf16.gmra.mrb[0].mxu0 %v4149
        %v4436 = vpop.f32.mrb[0].mxu0
        %v4437 = vadd.f32 0.0, %v4436
        %v4438 = vpop.f32.mrb[0].mxu0
        %v4439 = vpop.f32.mrb[0].mxu0
        %v4440 = vadd.f32 0.0, %v4439
        %v4441 = vpop.f32.mrb[0].mxu0
        %4442 = vmatprep.mubr.bf16.mxu0 %v4294
        %4443 = vmatmul.mubr.bf16.gmra.mrb[0].mxu0 %v4151
        %v4444 = vpop.f32.mrb[0].mxu0
        %v4445 = vadd.f32 0.0, %v4444
        %v4446 = vpop.f32.mrb[0].mxu0
        %v4447 = vpop.f32.mrb[0].mxu0
        %v4448 = vadd.f32 0.0, %v4447
        %v4449 = vpop.f32.mrb[0].mxu0
        %4450 = vmatprep.mubr.bf16.mxu0 %v4297
        %4451 = vmatmul.mubr.bf16.gmra.mrb[0].mxu0 %v4153
        %v4452 = vpop.f32.mrb[0].mxu0
        %v4453 = vadd.f32 0.0, %v4452
        %v4454 = vpop.f32.mrb[0].mxu0
        %v4455 = vpop.f32.mrb[0].mxu0
        %v4456 = vadd.f32 0.0, %v4455
        %v4457 = vpop.f32.mrb[0].mxu0
        %4458 = vmatprep.mubr.bf16.mxu0 %v4300
        %4459 = vmatmul.mubr.bf16.gmra.mrb[0].mxu0 %v4155
        %v4460 = vpop.f32.mrb[0].mxu0
        %v4461 = vadd.f32 0.0, %v4460
        %v4462 = vpop.f32.mrb[0].mxu0
        %v4463 = vpop.f32.mrb[0].mxu0
        %v4464 = vadd.f32 0.0, %v4463
        %v4465 = vpop.f32.mrb[0].mxu0
        %4466 = vdwg.mxu0
        %v4467 = vld [vmem:[%s5] sm:$0x1]
        %v4469 = vlaneseq
        %v4470 = vshrl.u32 %v4469, 7
        %v4471 = vsub.s32 0, %v4470
        %v4472 = vrot.slane %v4467, %v4471
        %v4474 = vmul.f32 %v4341, %v4472
        %v4475 = vmul.f32 %v4344, %v4472
        %v4476 = vmul.f32 %v4349, %v4472
        %v4477 = vmul.f32 %v4352, %v4472
        %v4478 = vmul.f32 %v4357, %v4472
        %v4479 = vmul.f32 %v4360, %v4472
        %v4480 = vmul.f32 %v4365, %v4472
        %v4481 = vmul.f32 %v4368, %v4472
        %v4482 = vmul.f32 %v4373, %v4472
        %v4483 = vmul.f32 %v4376, %v4472
        %v4484 = vmul.f32 %v4381, %v4472
        %v4485 = vmul.f32 %v4384, %v4472
        %v4486 = vmul.f32 %v4389, %v4472
        %v4487 = vmul.f32 %v4392, %v4472
        %v4488 = vmul.f32 %v4397, %v4472
        %v4489 = vmul.f32 %v4400, %v4472
        %v4490 = vmul.f32 %v4405, %v4472
        %v4491 = vmul.f32 %v4408, %v4472
        %v4492 = vmul.f32 %v4413, %v4472
        %v4493 = vmul.f32 %v4416, %v4472
        %v4494 = vmul.f32 %v4421, %v4472
        %v4495 = vmul.f32 %v4424, %v4472
        %v4496 = vmul.f32 %v4429, %v4472
        %v4497 = vmul.f32 %v4432, %v4472
        %v4498 = vmul.f32 %v4437, %v4472
        %v4499 = vmul.f32 %v4440, %v4472
        %v4500 = vmul.f32 %v4445, %v4472
        %v4501 = vmul.f32 %v4448, %v4472
        %v4502 = vmul.f32 %v4453, %v4472
        %v4503 = vmul.f32 %v4456, %v4472
        %v4504 = vmul.f32 %v4461, %v4472
        %v4505 = vmul.f32 %v4464, %v4472
        %v4506 = vld [vmem:[%s6] sm:$0x1]
        %v4508 = vlaneseq
        %v4509 = vshrl.u32 %v4508, 7
        %v4510 = vsub.s32 0, %v4509
        %v4511 = vrot.slane %v4506, %v4510
        %v4513 = vadd.f32 %v4474, %v4511
        %v4514 = vadd.f32 %v4475, %v4511
        %v4515 = vadd.f32 %v4476, %v4511
        %v4516 = vadd.f32 %v4477, %v4511
        %v4517 = vadd.f32 %v4478, %v4511
        %v4518 = vadd.f32 %v4479, %v4511
        %v4519 = vadd.f32 %v4480, %v4511
        %v4520 = vadd.f32 %v4481, %v4511
        %v4521 = vadd.f32 %v4482, %v4511
        %v4522 = vadd.f32 %v4483, %v4511
        %v4523 = vadd.f32 %v4484, %v4511
        %v4524 = vadd.f32 %v4485, %v4511
        %v4525 = vadd.f32 %v4486, %v4511
        %v4526 = vadd.f32 %v4487, %v4511
        %v4527 = vadd.f32 %v4488, %v4511
        %v4528 = vadd.f32 %v4489, %v4511
        %v4529 = vadd.f32 %v4490, %v4511
        %v4530 = vadd.f32 %v4491, %v4511
        %v4531 = vadd.f32 %v4492, %v4511
        %v4532 = vadd.f32 %v4493, %v4511
        %v4533 = vadd.f32 %v4494, %v4511
        %v4534 = vadd.f32 %v4495, %v4511
        %v4535 = vadd.f32 %v4496, %v4511
        %v4536 = vadd.f32 %v4497, %v4511
        %v4537 = vadd.f32 %v4498, %v4511
        %v4538 = vadd.f32 %v4499, %v4511
        %v4539 = vadd.f32 %v4500, %v4511
        %v4540 = vadd.f32 %v4501, %v4511
        %v4541 = vadd.f32 %v4502, %v4511
        %v4542 = vadd.f32 %v4503, %v4511
        %v4543 = vadd.f32 %v4504, %v4511
        %v4544 = vadd.f32 %v4505, %v4511
        %v4545 = vmax.f32 %v4513, 0.0
        %v4546 = vmax.f32 %v4514, 0.0
        %v4547 = vmax.f32 %v4515, 0.0
        %v4548 = vmax.f32 %v4516, 0.0
        %v4549 = vmax.f32 %v4517, 0.0
        %v4550 = vmax.f32 %v4518, 0.0
        %v4551 = vmax.f32 %v4519, 0.0
        %v4552 = vmax.f32 %v4520, 0.0
        %v4553 = vmax.f32 %v4521, 0.0
        %v4554 = vmax.f32 %v4522, 0.0
        %v4555 = vmax.f32 %v4523, 0.0
        %v4556 = vmax.f32 %v4524, 0.0
        %v4557 = vmax.f32 %v4525, 0.0
        %v4558 = vmax.f32 %v4526, 0.0
        %v4559 = vmax.f32 %v4527, 0.0
        %v4560 = vmax.f32 %v4528, 0.0
        %v4561 = vmax.f32 %v4529, 0.0
        %v4562 = vmax.f32 %v4530, 0.0
        %v4563 = vmax.f32 %v4531, 0.0
        %v4564 = vmax.f32 %v4532, 0.0
        %v4565 = vmax.f32 %v4533, 0.0
        %v4566 = vmax.f32 %v4534, 0.0
        %v4567 = vmax.f32 %v4535, 0.0
        %v4568 = vmax.f32 %v4536, 0.0
        %v4569 = vmax.f32 %v4537, 0.0
        %v4570 = vmax.f32 %v4538, 0.0
        %v4571 = vmax.f32 %v4539, 0.0
        %v4572 = vmax.f32 %v4540, 0.0
        %v4573 = vmax.f32 %v4541, 0.0
        %v4574 = vmax.f32 %v4542, 0.0
        %v4575 = vmax.f32 %v4543, 0.0
        %v4576 = vmax.f32 %v4544, 0.0
        %v4577 = vpack.c.bf16 %v4546, %v4545
        %v4578 = vpack.c.bf16 %v4548, %v4547
        %v4579 = vpack.c.bf16 %v4550, %v4549
        %v4580 = vpack.c.bf16 %v4552, %v4551
        %v4581 = vpack.c.bf16 %v4554, %v4553
        %v4582 = vpack.c.bf16 %v4556, %v4555
        %v4583 = vpack.c.bf16 %v4558, %v4557
        %v4584 = vpack.c.bf16 %v4560, %v4559
        %v4585 = vpack.c.bf16 %v4562, %v4561
        %v4586 = vpack.c.bf16 %v4564, %v4563
        %v4587 = vpack.c.bf16 %v4566, %v4565
        %v4588 = vpack.c.bf16 %v4568, %v4567
        %v4589 = vpack.c.bf16 %v4570, %v4569
        %v4590 = vpack.c.bf16 %v4572, %v4571
        %v4591 = vpack.c.bf16 %v4574, %v4573
        %v4592 = vpack.c.bf16 %v4576, %v4575
        %v4593 = vld [vmem:[%s7] sm:$0xf]
        %v4595 = vsel %vm2275, %v4577, 0
        %v4598 = vsel %vm2275, %v4578, 0
        %v4601 = vsel %vm2275, %v4579, 0
        %v4604 = vsel %vm2275, %v4580, 0
        %v4607 = vsel %vm2275, %v4581, 0
        %v4610 = vsel %vm2275, %v4582, 0
        %v4613 = vsel %vm2275, %v4583, 0
        %v4616 = vsel %vm2275, %v4584, 0
        %v4619 = vsel %vm2275, %v4585, 0
        %v4622 = vsel %vm2275, %v4586, 0
        %v4625 = vsel %vm2275, %v4587, 0
        %v4628 = vsel %vm2275, %v4588, 0
        %v4631 = vsel %vm2275, %v4589, 0
        %v4634 = vsel %vm2275, %v4590, 0
        %v4637 = vsel %vm2275, %v4591, 0
        %v4640 = vsel %vm2275, %v4592, 0
        %v4643 = vsel %vm4302, %v4593, 0
        %4645 = vmatprep.subr.bf16.mxu0 0
        %4646 = vmatpush1.bf16.msra.mxu0 %v4643
        %4647 = vmatprep.subr.bf16.mxu0 0
        %4648 = vmatpush1.bf16.msra.mxu0 0
        %4649 = vmatprep.subr.bf16.mxu0 0
        %4650 = vmatpush1.bf16.msra.mxu0 0
        %4651 = vmatprep.subr.bf16.mxu0 0
        %4652 = vmatpush1.bf16.msra.mxu0 0
        %4653 = vmatprep.subr.bf16.mxu0 0
        %4654 = vmatpush1.bf16.msra.mxu0 0
        %4655 = vmatprep.subr.bf16.mxu0 0
        %4656 = vmatpush1.bf16.msra.mxu0 0
        %4657 = vmatprep.subr.bf16.mxu0 0
        %4658 = vmatpush1.bf16.msra.mxu0 0
        %4659 = vmatprep.subr.bf16.mxu0 0
        %4660 = vmatpush1.bf16.msra.mxu0 0
        %4661 = vmatprep.subr.bf16.mxu0 0
        %4662 = vmatpush1.bf16.msra.mxu0 0
        %4663 = vmatprep.subr.bf16.mxu0 0
        %4664 = vmatpush1.bf16.msra.mxu0 0
        %4665 = vmatprep.subr.bf16.mxu0 0
        %4666 = vmatpush1.bf16.msra.mxu0 0
        %4667 = vmatprep.subr.bf16.mxu0 0
        %4668 = vmatpush1.bf16.msra.mxu0 0
        %4669 = vmatprep.subr.bf16.mxu0 0
        %4670 = vmatpush1.bf16.msra.mxu0 0
        %4671 = vmatprep.subr.bf16.mxu0 0
        %4672 = vmatpush1.bf16.msra.mxu0 0
        %4673 = vmatprep.subr.bf16.mxu0 0
        %4674 = vmatpush1.bf16.msra.mxu0 0
        %4675 = vmatprep.subr.bf16.mxu0 0
        %4676 = vmatpush1.bf16.msra.mxu0 0
        %4677 = vmatprep.mubr.bf16.mxu0 0
        %4678 = vmatmul.mubr.bf16.gmra.mrb[0].mxu0 %v4595
        %v4679 = vpop.f32.mrb[0].mxu0
        %v4680 = vadd.f32 0.0, %v4679
        %v4681 = vpop.f32.mrb[0].mxu0
        %v4682 = vpop.f32.mrb[0].mxu0
        %v4683 = vadd.f32 0.0, %v4682
        %v4684 = vpop.f32.mrb[0].mxu0
        %4685 = vmatprep.mubr.bf16.mxu0 0
        %4686 = vmatmul.mubr.bf16.gmra.mrb[0].mxu0 %v4598
        %v4687 = vpop.f32.mrb[0].mxu0
        %v4688 = vadd.f32 0.0, %v4687
        %v4689 = vpop.f32.mrb[0].mxu0
        %v4690 = vpop.f32.mrb[0].mxu0
        %v4691 = vadd.f32 0.0, %v4690
        %v4692 = vpop.f32.mrb[0].mxu0
        %4693 = vmatprep.mubr.bf16.mxu0 0
        %4694 = vmatmul.mubr.bf16.gmra.mrb[0].mxu0 %v4601
        %v4695 = vpop.f32.mrb[0].mxu0
        %v4696 = vadd.f32 0.0, %v4695
        %v4697 = vpop.f32.mrb[0].mxu0
        %v4698 = vpop.f32.mrb[0].mxu0
        %v4699 = vadd.f32 0.0, %v4698
        %v4700 = vpop.f32.mrb[0].mxu0
        %4701 = vmatprep.mubr.bf16.mxu0 0
        %4702 = vmatmul.mubr.bf16.gmra.mrb[0].mxu0 %v4604
        %v4703 = vpop.f32.mrb[0].mxu0
        %v4704 = vadd.f32 0.0, %v4703
        %v4705 = vpop.f32.mrb[0].mxu0
        %v4706 = vpop.f32.mrb[0].mxu0
        %v4707 = vadd.f32 0.0, %v4706
        %v4708 = vpop.f32.mrb[0].mxu0
        %4709 = vmatprep.mubr.bf16.mxu0 0
        %4710 = vmatmul.mubr.bf16.gmra.mrb[0].mxu0 %v4607
        %v4711 = vpop.f32.mrb[0].mxu0
        %v4712 = vadd.f32 0.0, %v4711
        %v4713 = vpop.f32.mrb[0].mxu0
        %v4714 = vpop.f32.mrb[0].mxu0
        %v4715 = vadd.f32 0.0, %v4714
        %v4716 = vpop.f32.mrb[0].mxu0
        %4717 = vmatprep.mubr.bf16.mxu0 0
        %4718 = vmatmul.mubr.bf16.gmra.mrb[0].mxu0 %v4610
        %v4719 = vpop.f32.mrb[0].mxu0
        %v4720 = vadd.f32 0.0, %v4719
        %v4721 = vpop.f32.mrb[0].mxu0
        %v4722 = vpop.f32.mrb[0].mxu0
        %v4723 = vadd.f32 0.0, %v4722
        %v4724 = vpop.f32.mrb[0].mxu0
        %4725 = vmatprep.mubr.bf16.mxu0 0
        %4726 = vmatmul.mubr.bf16.gmra.mrb[0].mxu0 %v4613
        %v4727 = vpop.f32.mrb[0].mxu0
        %v4728 = vadd.f32 0.0, %v4727
        %v4729 = vpop.f32.mrb[0].mxu0
        %v4730 = vpop.f32.mrb[0].mxu0
        %v4731 = vadd.f32 0.0, %v4730
        %v4732 = vpop.f32.mrb[0].mxu0
        %4733 = vmatprep.mubr.bf16.mxu0 0
        %4734 = vmatmul.mubr.bf16.gmra.mrb[0].mxu0 %v4616
        %v4735 = vpop.f32.mrb[0].mxu0
        %v4736 = vadd.f32 0.0, %v4735
        %v4737 = vpop.f32.mrb[0].mxu0
        %v4738 = vpop.f32.mrb[0].mxu0
        %v4739 = vadd.f32 0.0, %v4738
        %v4740 = vpop.f32.mrb[0].mxu0
        %4741 = vmatprep.mubr.bf16.mxu0 0
        %4742 = vmatmul.mubr.bf16.gmra.mrb[0].mxu0 %v4619
        %v4743 = vpop.f32.mrb[0].mxu0
        %v4744 = vadd.f32 0.0, %v4743
        %v4745 = vpop.f32.mrb[0].mxu0
        %v4746 = vpop.f32.mrb[0].mxu0
        %v4747 = vadd.f32 0.0, %v4746
        %v4748 = vpop.f32.mrb[0].mxu0
        %4749 = vmatprep.mubr.bf16.mxu0 0
        %4750 = vmatmul.mubr.bf16.gmra.mrb[0].mxu0 %v4622
        %v4751 = vpop.f32.mrb[0].mxu0
        %v4752 = vadd.f32 0.0, %v4751
        %v4753 = vpop.f32.mrb[0].mxu0
        %v4754 = vpop.f32.mrb[0].mxu0
        %v4755 = vadd.f32 0.0, %v4754
        %v4756 = vpop.f32.mrb[0].mxu0
        %4757 = vmatprep.mubr.bf16.mxu0 0
        %4758 = vmatmul.mubr.bf16.gmra.mrb[0].mxu0 %v4625
        %v4759 = vpop.f32.mrb[0].mxu0
        %v4760 = vadd.f32 0.0, %v4759
        %v4761 = vpop.f32.mrb[0].mxu0
        %v4762 = vpop.f32.mrb[0].mxu0
        %v4763 = vadd.f32 0.0, %v4762
        %v4764 = vpop.f32.mrb[0].mxu0
        %4765 = vmatprep.mubr.bf16.mxu0 0
        %4766 = vmatmul.mubr.bf16.gmra.mrb[0].mxu0 %v4628
        %v4767 = vpop.f32.mrb[0].mxu0
        %v4768 = vadd.f32 0.0, %v4767
        %v4769 = vpop.f32.mrb[0].mxu0
        %v4770 = vpop.f32.mrb[0].mxu0
        %v4771 = vadd.f32 0.0, %v4770
        %v4772 = vpop.f32.mrb[0].mxu0
        %4773 = vmatprep.mubr.bf16.mxu0 0
        %4774 = vmatmul.mubr.bf16.gmra.mrb[0].mxu0 %v4631
        %v4775 = vpop.f32.mrb[0].mxu0
        %v4776 = vadd.f32 0.0, %v4775
        %v4777 = vpop.f32.mrb[0].mxu0
        %v4778 = vpop.f32.mrb[0].mxu0
        %v4779 = vadd.f32 0.0, %v4778
        %v4780 = vpop.f32.mrb[0].mxu0
        %4781 = vmatprep.mubr.bf16.mxu0 0
        %4782 = vmatmul.mubr.bf16.gmra.mrb[0].mxu0 %v4634
        %v4783 = vpop.f32.mrb[0].mxu0
        %v4784 = vadd.f32 0.0, %v4783
        %v4785 = vpop.f32.mrb[0].mxu0
        %v4786 = vpop.f32.mrb[0].mxu0
        %v4787 = vadd.f32 0.0, %v4786
        %v4788 = vpop.f32.mrb[0].mxu0
        %4789 = vmatprep.mubr.bf16.mxu0 0
        %4790 = vmatmul.mubr.bf16.gmra.mrb[0].mxu0 %v4637
        %v4791 = vpop.f32.mrb[0].mxu0
        %v4792 = vadd.f32 0.0, %v4791
        %v4793 = vpop.f32.mrb[0].mxu0
        %v4794 = vpop.f32.mrb[0].mxu0
        %v4795 = vadd.f32 0.0, %v4794
        %v4796 = vpop.f32.mrb[0].mxu0
        %4797 = vmatprep.mubr.bf16.mxu0 0
        %4798 = vmatmul.mubr.bf16.gmra.mrb[0].mxu0 %v4640
        %v4799 = vpop.f32.mrb[0].mxu0
        %v4800 = vadd.f32 0.0, %v4799
        %v4801 = vpop.f32.mrb[0].mxu0
        %v4802 = vpop.f32.mrb[0].mxu0
        %v4803 = vadd.f32 0.0, %v4802
        %v4804 = vpop.f32.mrb[0].mxu0
        %4805 = vdwg.mxu0
        %v4806 = vld [vmem:[%s8] sm:$0x1]
        %v4808 = vlaneseq
        %v4809 = vshrl.u32 %v4808, 7
        %v4810 = vsub.s32 0, %v4809
        %v4811 = vrot.slane %v4806, %v4810
        %v4813 = vmul.f32 %v4680, %v4811
        %v4814 = vmul.f32 %v4683, %v4811
        %v4815 = vmul.f32 %v4688, %v4811
        %v4816 = vmul.f32 %v4691, %v4811
        %v4817 = vmul.f32 %v4696, %v4811
        %v4818 = vmul.f32 %v4699, %v4811
        %v4819 = vmul.f32 %v4704, %v4811
        %v4820 = vmul.f32 %v4707, %v4811
        %v4821 = vmul.f32 %v4712, %v4811
        %v4822 = vmul.f32 %v4715, %v4811
        %v4823 = vmul.f32 %v4720, %v4811
        %v4824 = vmul.f32 %v4723, %v4811
        %v4825 = vmul.f32 %v4728, %v4811
        %v4826 = vmul.f32 %v4731, %v4811
        %v4827 = vmul.f32 %v4736, %v4811
        %v4828 = vmul.f32 %v4739, %v4811
        %v4829 = vmul.f32 %v4744, %v4811
        %v4830 = vmul.f32 %v4747, %v4811
        %v4831 = vmul.f32 %v4752, %v4811
        %v4832 = vmul.f32 %v4755, %v4811
        %v4833 = vmul.f32 %v4760, %v4811
        %v4834 = vmul.f32 %v4763, %v4811
        %v4835 = vmul.f32 %v4768, %v4811
        %v4836 = vmul.f32 %v4771, %v4811
        %v4837 = vmul.f32 %v4776, %v4811
        %v4838 = vmul.f32 %v4779, %v4811
        %v4839 = vmul.f32 %v4784, %v4811
        %v4840 = vmul.f32 %v4787, %v4811
        %v4841 = vmul.f32 %v4792, %v4811
        %v4842 = vmul.f32 %v4795, %v4811
        %v4843 = vmul.f32 %v4800, %v4811
        %v4844 = vmul.f32 %v4803, %v4811
        %v4845 = vld [vmem:[%s9] sm:$0x1]
        %v4847 = vlaneseq
        %v4848 = vshrl.u32 %v4847, 7
        %v4849 = vsub.s32 0, %v4848
        %v4850 = vrot.slane %v4845, %v4849
        %v4852 = vadd.f32 %v4813, %v4850
        %v4853 = vadd.f32 %v4814, %v4850
        %v4854 = vadd.f32 %v4815, %v4850
        %v4855 = vadd.f32 %v4816, %v4850
        %v4856 = vadd.f32 %v4817, %v4850
        %v4857 = vadd.f32 %v4818, %v4850
        %v4858 = vadd.f32 %v4819, %v4850
        %v4859 = vadd.f32 %v4820, %v4850
        %v4860 = vadd.f32 %v4821, %v4850
        %v4861 = vadd.f32 %v4822, %v4850
        %v4862 = vadd.f32 %v4823, %v4850
        %v4863 = vadd.f32 %v4824, %v4850
        %v4864 = vadd.f32 %v4825, %v4850
        %v4865 = vadd.f32 %v4826, %v4850
        %v4866 = vadd.f32 %v4827, %v4850
        %v4867 = vadd.f32 %v4828, %v4850
        %v4868 = vadd.f32 %v4829, %v4850
        %v4869 = vadd.f32 %v4830, %v4850
        %v4870 = vadd.f32 %v4831, %v4850
        %v4871 = vadd.f32 %v4832, %v4850
        %v4872 = vadd.f32 %v4833, %v4850
        %v4873 = vadd.f32 %v4834, %v4850
        %v4874 = vadd.f32 %v4835, %v4850
        %v4875 = vadd.f32 %v4836, %v4850
        %v4876 = vadd.f32 %v4837, %v4850
        %v4877 = vadd.f32 %v4838, %v4850
        %v4878 = vadd.f32 %v4839, %v4850
        %v4879 = vadd.f32 %v4840, %v4850
        %v4880 = vadd.f32 %v4841, %v4850
        %v4881 = vadd.f32 %v4842, %v4850
        %v4882 = vadd.f32 %v4843, %v4850
        %v4883 = vadd.f32 %v4844, %v4850
        %v4884 = vadd.f32 %v4852, %v379
        %v4885 = vadd.f32 %v4853, %v380
        %v4886 = vadd.f32 %v4854, %v381
        %v4887 = vadd.f32 %v4855, %v382
        %v4888 = vadd.f32 %v4856, %v383
        %v4889 = vadd.f32 %v4857, %v384
        %v4890 = vadd.f32 %v4858, %v385
        %v4891 = vadd.f32 %v4859, %v386
        %v4892 = vadd.f32 %v4860, %v387
        %v4893 = vadd.f32 %v4861, %v388
        %v4894 = vadd.f32 %v4862, %v389
        %v4895 = vadd.f32 %v4863, %v390
        %v4896 = vadd.f32 %v4864, %v391
        %v4897 = vadd.f32 %v4865, %v392
        %v4898 = vadd.f32 %v4866, %v393
        %v4899 = vadd.f32 %v4867, %v394
        %v4900 = vadd.f32 %v4868, %v395
        %v4901 = vadd.f32 %v4869, %v396
        %v4902 = vadd.f32 %v4870, %v397
        %v4903 = vadd.f32 %v4871, %v398
        %v4904 = vadd.f32 %v4872, %v399
        %v4905 = vadd.f32 %v4873, %v400
        %v4906 = vadd.f32 %v4874, %v401
        %v4907 = vadd.f32 %v4875, %v402
        %v4908 = vadd.f32 %v4876, %v403
        %v4909 = vadd.f32 %v4877, %v404
        %v4910 = vadd.f32 %v4878, %v405
        %v4911 = vadd.f32 %v4879, %v406
        %v4912 = vadd.f32 %v4880, %v407
        %v4913 = vadd.f32 %v4881, %v408
        %v4914 = vadd.f32 %v4882, %v409
        %v4915 = vadd.f32 %v4883, %v410
        %v4916 = vmax.f32 %v4884, 0.0
        %v4917 = vmax.f32 %v4885, 0.0
        %v4918 = vmax.f32 %v4886, 0.0
        %v4919 = vmax.f32 %v4887, 0.0
        %v4920 = vmax.f32 %v4888, 0.0
        %v4921 = vmax.f32 %v4889, 0.0
        %v4922 = vmax.f32 %v4890, 0.0
        %v4923 = vmax.f32 %v4891, 0.0
        %v4924 = vmax.f32 %v4892, 0.0
        %v4925 = vmax.f32 %v4893, 0.0
        %v4926 = vmax.f32 %v4894, 0.0
        %v4927 = vmax.f32 %v4895, 0.0
        %v4928 = vmax.f32 %v4896, 0.0
        %v4929 = vmax.f32 %v4897, 0.0
        %v4930 = vmax.f32 %v4898, 0.0
        %v4931 = vmax.f32 %v4899, 0.0
        %v4932 = vmax.f32 %v4900, 0.0
        %v4933 = vmax.f32 %v4901, 0.0
        %v4934 = vmax.f32 %v4902, 0.0
        %v4935 = vmax.f32 %v4903, 0.0
        %v4936 = vmax.f32 %v4904, 0.0
        %v4937 = vmax.f32 %v4905, 0.0
        %v4938 = vmax.f32 %v4906, 0.0
        %v4939 = vmax.f32 %v4907, 0.0
        %v4940 = vmax.f32 %v4908, 0.0
        %v4941 = vmax.f32 %v4909, 0.0
        %v4942 = vmax.f32 %v4910, 0.0
        %v4943 = vmax.f32 %v4911, 0.0
        %v4944 = vmax.f32 %v4912, 0.0
        %v4945 = vmax.f32 %v4913, 0.0
        %v4946 = vmax.f32 %v4914, 0.0
        %v4947 = vmax.f32 %v4915, 0.0
        %4948 = vst [vmem:[%s377] sm:$0xff] %v4916
        %4949 = vst [vmem:[%s377 + $0x8] sm:$0xff] %v4917
        %4950 = vst [vmem:[%s377 + $0x10] sm:$0xff] %v4918
        %4951 = vst [vmem:[%s377 + $0x18] sm:$0xff] %v4919
        %4952 = vst [vmem:[%s377 + $0x20] sm:$0xff] %v4920
        %4953 = vst [vmem:[%s377 + $0x28] sm:$0xff] %v4921
        %4954 = vst [vmem:[%s377 + $0x30] sm:$0xff] %v4922
        %4955 = vst [vmem:[%s377 + $0x38] sm:$0xff] %v4923
        %4956 = vst [vmem:[%s377 + $0x40] sm:$0xff] %v4924
        %4957 = vst [vmem:[%s377 + $0x48] sm:$0xff] %v4925
        %4958 = vst [vmem:[%s377 + $0x50] sm:$0xff] %v4926
        %4959 = vst [vmem:[%s377 + $0x58] sm:$0xff] %v4927
        %4960 = vst [vmem:[%s377 + $0x60] sm:$0xff] %v4928
        %4961 = vst [vmem:[%s377 + $0x68] sm:$0xff] %v4929
        %4962 = vst [vmem:[%s377 + $0x70] sm:$0xff] %v4930
        %4963 = vst [vmem:[%s377 + $0x78] sm:$0xff] %v4931
        %4964 = vst [vmem:[%s377 + $0x80] sm:$0xff] %v4932
        %4965 = vst [vmem:[%s377 + $0x88] sm:$0xff] %v4933
        %4966 = vst [vmem:[%s377 + $0x90] sm:$0xff] %v4934
        %4967 = vst [vmem:[%s377 + $0x98] sm:$0xff] %v4935
        %4968 = vst [vmem:[%s377 + $0xa0] sm:$0xff] %v4936
        %4969 = vst [vmem:[%s377 + $0xa8] sm:$0xff] %v4937
        %4970 = vst [vmem:[%s377 + $0xb0] sm:$0xff] %v4938
        %4971 = vst [vmem:[%s377 + $0xb8] sm:$0xff] %v4939
        %4972 = vst [vmem:[%s377 + $0xc0] sm:$0xff] %v4940
        %4973 = vst [vmem:[%s377 + $0xc8] sm:$0xff] %v4941
        %4974 = vst [vmem:[%s377 + $0xd0] sm:$0xff] %v4942
        %4975 = vst [vmem:[%s377 + $0xd8] sm:$0xff] %v4943
        %4976 = vst [vmem:[%s377 + $0xe0] sm:$0xff] %v4944
        %4977 = vst [vmem:[%s377 + $0xe8] sm:$0xff] %v4945
        %4978 = vst [vmem:[%s377 + $0xf0] sm:$0xff] %v4946
        %4979 = vst [vmem:[%s377 + $0xf8] sm:$0xff] %v4947
        %s4980 = sand.u32 %s250, 1
        %s4981 = scalar_lea.sflag [#allocation4], %s4980
        %s4982 = sand.u32 %s250, 1
        %s4983 = smul.addr %s4982, 256
        %s4984 = scalar_lea.vmem [#allocation5], %s4983
        // Predicated region
        $region65: #{tpu_custom_call.1} parent=59 // pred_check
          %p4985 = pneg %p260
        $region66: #{tpu_custom_call.1} parent=59 // pred_check_branch
          %4987 = sbr.rel (%p4985) target = $region68
        $region67: #{tpu_custom_call.1} parent=59 // pred_region
          %s4989 = ssub.s32 4096, 4096
          %4990 = vsyncadd %s4981, %s4989
          %s4991 = smul.addr %s27, 32
          %s4992 = smul.addr %s4991, 128
          %s4993 = scalar_lea.hbm %s10, %s4992
          %s4994 = sshll.u32 %s4984, 4
          %s4995 = int_to_ptr.vmem [resolvable:$true] %s4994
          %5000 = dma.vmem_to_hbm [thread:$0]  %s4995, 4096, %s4993, %s4981, 128, 128, 8
        $region68: #{tpu_custom_call.1} parent=59 // pred_fallthru
          _
      $region60: #{tpu_custom_call.1} parent=5 // pred_fallthru
        _
      %p5001 = scmp.le.s32.totalorder 2, %s22
      // Predicated region
      $region69: #{tpu_custom_call.1} parent=5 // pred_check
        %p5002 = pneg %p5001
      $region70: #{tpu_custom_call.1} parent=5 // pred_check_branch
        %5004 = sbr.rel (%p5002) target = $region72
      $region71: #{tpu_custom_call.1} parent=5 // pred_region
        %s5005 = ssub.s32 %s22, 2
        // Predicated region
        $region73: #{tpu_custom_call.1} parent=71 // pred_check
          %p5006 = pneg %p266
        $region74: #{tpu_custom_call.1} parent=71 // pred_check_branch
          %5008 = sbr.rel (%p5006) target = $region76
        $region75: #{tpu_custom_call.1} parent=71 // pred_region
          %s5009 = sand.u32 %s251, 1
          %s5010 = scalar_lea.sflag [#allocation4], %s5009
          %s5011 = sand.u32 %s251, 1
          %s5012 = smul.addr %s5011, 256
          %s5013 = scalar_lea.vmem [#allocation5], %s5012
          %5014 = dma.done %s5010, 4096
        $region76: #{tpu_custom_call.1} parent=71 // pred_fallthru
          _
      $region72: #{tpu_custom_call.1} parent=5 // pred_fallthru
        _
    $region6: #{tpu_custom_call.1} parent=1 // loop_footer
      %s26 = sadd.s32 1, %s22
    $region7: #{tpu_custom_call.1} parent=1 // loop_footer_branch
      %21 = sbr.rel target = $region3
    $region8: #{tpu_custom_call.1} parent=1 // loop_exit
      _
    %5015 = vsyncpa [#allocation3], 1
    %s5016 = scalar_lea.sflag [#allocation3], 1
    %5017 = vsyncpa %s5016, 1
    %5018 = vsyncpa [#allocation4], 1
    %s5019 = scalar_lea.sflag [#allocation4], 1
    %5020 = vsyncpa %s5019, 1

</llo_original>
